<compile_context>
chip_gen: v5e
topology: v5e:2x2
jax: 0.10.0
libtpu: 0.0.40
codegen_flags: <defaults>
</compile_context>

<pallas_src>
import math
import jax
import jax.numpy as jnp
from jax.experimental import pallas as pl
from jax.experimental.pallas import tpu as pltpu

# ---- small, module-consistent shapes -----------------------------------
B = 2            # batch
T = 16           # time_length  (input_shape[2])
C = 4            # channel      (input_shape[3])
U = 32           # nb_units
NH = 4           # n_heads in EncoderLayer
DH = U // NH     # per-head width
NCLS = 6         # nb_classes
FF = 4 * U       # d_ff
H3 = 4 * NCLS    # fc3 width
OUT_PAD = 128    # lane-dense padded width of the final output slab
LN_EPS = 1e-5    # PyTorch LayerNorm default


# ----------------------- weight-slab static layout -------------------------
def _round8(n):
    return ((n + 7) // 8) * 8


def _pieces():
    ps = [("fc1_w", (C, U)), ("fc1_b", (1, U))]
    for l in range(2):
        ps += [(f"wq{l}", (U, U)), (f"wk{l}", (U, U)),
               (f"wv{l}", (U, U)), (f"wo{l}", (U, U)),
               (f"bq{l}", (1, U)), (f"bk{l}", (1, U)),
               (f"bv{l}", (1, U)), (f"bo{l}", (1, U)),
               (f"w1_{l}", (U, FF)), (f"b1_{l}", (1, FF)),
               (f"w2_{l}", (FF, U)), (f"b2_{l}", (1, U)),
               (f"ln{l}0_g", (1, U)), (f"ln{l}0_b", (1, U)),
               (f"ln{l}1_g", (1, U)), (f"ln{l}1_b", (1, U))]
    ps += [("ctx_w", (U, U)), ("ctx_b", (1, U)), ("ctx_u", (1, U)),
           ("fc3_w", (U, H3)), ("fc3_b", (1, H3)),
           ("out_w", (H3, OUT_PAD)), ("out_b", (1, OUT_PAD))]
    for hh in range(NH):
        ps += [(f"hmask{hh}", (1, U))]
    return ps


def _build_layout():
    layout, r = {}, 0
    for name, (rows, cols) in _pieces():
        layout[name] = (r, rows, cols)       # every piece starts 8-aligned
        r += _round8(rows)
    return layout, r


_LAYOUT, _SLAB_ROWS = _build_layout()        # ~904 x 128 f32 ~= 460 KiB


def _pack_slab(p):
    """Host-side: pack every parameter into one lane-padded f32 slab."""
    slab = jnp.zeros((_SLAB_ROWS, OUT_PAD), jnp.float32)

    def put(s, name, arr):
        r0, rows, cols = _LAYOUT[name]
        a = jnp.asarray(arr, jnp.float32).reshape(rows, cols)
        return s.at[r0:r0 + rows, :cols].set(a)

    slab = put(slab, "fc1_w", p["fc1_w"])
    slab = put(slab, "fc1_b", p["fc1_b"])
    for l in range(2):
        for i, nm in enumerate(["wq", "wk", "wv", "wo"]):
            slab = put(slab, f"{nm}{l}", p["enc_wa"][l, i])
        for i, nm in enumerate(["bq", "bk", "bv", "bo"]):
            slab = put(slab, f"{nm}{l}", p["enc_ba"][l, i])
        slab = put(slab, f"w1_{l}", p["enc_w1"][l])
        slab = put(slab, f"b1_{l}", p["enc_b1"][l])
        slab = put(slab, f"w2_{l}", p["enc_w2"][l])
        slab = put(slab, f"b2_{l}", p["enc_b2"][l])
        for j in range(2):
            slab = put(slab, f"ln{l}{j}_g", p["enc_ln_g"][l, j])
            slab = put(slab, f"ln{l}{j}_b", p["enc_ln_b"][l, j])
    slab = put(slab, "ctx_w", p["ctx_w"])
    slab = put(slab, "ctx_b", p["ctx_b"])
    slab = put(slab, "ctx_u", p["ctx_u"])
    slab = put(slab, "fc3_w", p["fc3_w"])
    slab = put(slab, "fc3_b", p["fc3_b"])
    # Final Linear lane-padded to 128 output lanes -> unmasked lane-dense store.
    out_w_p = jnp.zeros((H3, OUT_PAD), jnp.float32).at[:, :NCLS].set(p["out_w"])
    out_b_p = jnp.zeros((1, OUT_PAD), jnp.float32).at[:, :NCLS].set(p["out_b"])
    slab = put(slab, "out_w", out_w_p)
    slab = put(slab, "out_b", out_b_p)
    # Per-head lane masks (replace lane slices / concat inside the kernel).
    for hh in range(NH):
        m = jnp.zeros((1, U), jnp.float32).at[:, hh * DH:(hh + 1) * DH].set(1.0)
        slab = put(slab, f"hmask{hh}", m)
    return slab


# ----------------------------- math helpers --------------------------------
def _layernorm(x, g, b):
    mu = jnp.mean(x, axis=-1, keepdims=True)
    var = jnp.mean((x - mu) ** 2, axis=-1, keepdims=True)
    return (x - mu) * jax.lax.rsqrt(var + LN_EPS) * g + b


def _softmax(x, axis):
    m = jnp.max(x, axis=axis, keepdims=True)
    e = jnp.exp(x - m)
    return e / jnp.sum(e, axis=axis, keepdims=True)


# ------------------------------ kernel --------------------------------------
def baseline_attn_kernel(x_ref, slab_ref, o_ref):
    def W(name):
        r0, rows, cols = _LAYOUT[name]
        return slab_ref[r0:r0 + rows, :cols]     # static, 8-aligned row slice

    nrows = x_ref.shape[0]                       # B*T
    bb = nrows // T
    x2 = x_ref[...]                              # (B*T, C), already flattened

    # fc1 + activation_fn (ReLU), all batch rows at once
    h2 = jnp.dot(x2, W("fc1_w"), preferred_element_type=jnp.float32) + W("fc1_b")
    h2 = jnp.maximum(h2, 0.0)                    # (B*T, U)

    # Head masks loaded once (off the critical path), broadcast to (1,1,U).
    masks = [W(f"hmask{hh}").reshape(1, 1, U) for hh in range(NH)]
    scale = 1.0 / math.sqrt(DH)

    # Two transformer encoder layers (post-norm), unrolled statically.
    for l in range(2):
        q2 = jnp.dot(h2, W(f"wq{l}"), preferred_element_type=jnp.float32) + W(f"bq{l}")
        k2 = jnp.dot(h2, W(f"wk{l}"), preferred_element_type=jnp.float32) + W(f"bk{l}")
        v2 = jnp.dot(h2, W(f"wv{l}"), preferred_element_type=jnp.float32) + W(f"bv{l}")
        q = q2.reshape(bb, T, U)
        k = k2.reshape(bb, T, U)
        v = v2.reshape(bb, T, U)

        # Per-head attention via lane masks: no lane slices, no concat.
        attn = None
        for hh in range(NH):
            m = masks[hh]
            s = jnp.einsum('btd,bsd->bts', q * m, k,
                           preferred_element_type=jnp.float32) * scale   # (bb,T,T)
            p = _softmax(s, axis=-1)
            ctx = jnp.einsum('bts,bsd->btd', p, v * m,
                             preferred_element_type=jnp.float32)         # (bb,T,U)
            attn = ctx if attn is None else attn + ctx

        attn2 = jnp.dot(attn.reshape(nrows, U), W(f"wo{l}"),
                        preferred_element_type=jnp.float32) + W(f"bo{l}")
        h2 = _layernorm(h2 + attn2, W(f"ln{l}0_g"), W(f"ln{l}0_b"))

        ff = jnp.dot(h2, W(f"w1_{l}"), preferred_element_type=jnp.float32) + W(f"b1_{l}")
        ff = jnp.maximum(ff, 0.0)
        ff = jnp.dot(ff, W(f"w2_{l}"), preferred_element_type=jnp.float32) + W(f"b2_{l}")
        h2 = _layernorm(h2 + ff, W(f"ln{l}1_g"), W(f"ln{l}1_b"))

    # AttentionWithContext2 (tanh scoring, softmax over time, weighted pool)
    # TODO(synk): the `time_length` ctor arg of AttentionWithContext2 is not
    #             used by the standard context-attention formulation.
    u_it2 = jnp.tanh(jnp.dot(h2, W("ctx_w"),
                             preferred_element_type=jnp.float32) + W("ctx_b"))
    u_it = u_it2.reshape(bb, T, U)
    h3 = h2.reshape(bb, T, U)
    # score = <u_it, ctx_u> as a VPU multiply + lane reduce (no width-1 matmul)
    scores = jnp.sum(u_it * W("ctx_u").reshape(1, 1, U), axis=-1, keepdims=True)
    a = _softmax(scores, axis=1)                                         # over time
    pooled = jnp.sum(h3 * a, axis=1)                                     # (bb, U)

    z = jnp.dot(pooled, W("fc3_w"), preferred_element_type=jnp.float32) + W("fc3_b")
    z = jnp.maximum(z, 0.0)                                              # (bb, 4*NCLS)
    # TODO(synk): nn.Dropout(p=0.2) is identity in inference; no RNG dropout here.
    # Final Linear with lane-padded (H3, 128) weights -> unmasked lane-dense store.
    o_ref[...] = jnp.dot(z, W("out_w"),
                         preferred_element_type=jnp.float32) + W("out_b")


# ------------------------------ wrapper --------------------------------------
def baseline_attn_forward(x, params):
    # layout: x is (B, 1, T, C) as in PyTorch; flatten rows host-side (free in XLA).
    b_, one, t_, c_ = x.shape
    assert one == 1 and t_ == T and c_ == C
    x2 = x.reshape(b_ * t_, c_).astype(jnp.float32)
    slab = _pack_slab(params)

    # Single grid step: the model is a tiny fixed-latency chain; weights
    # (~460 KiB slab) + activations fit trivially in VMEM on v5e/v6e/v7x.
    # A 2-way CORE_PARALLEL batch split on v7x duplicates the weight DMA and
    # prologue for a few-microsecond chain, so it is intentionally not used.
    out_padded = pl.pallas_call(
        baseline_attn_kernel,
        out_shape=jax.ShapeDtypeStruct((b_, OUT_PAD), jnp.float32),
        grid_spec=pltpu.PrefetchScalarGridSpec(
            num_scalar_prefetch=0,
            grid=(1,),
            in_specs=[pl.BlockSpec((b_ * t_, c_), lambda i: (0, 0)),
                      pl.BlockSpec((_SLAB_ROWS, OUT_PAD), lambda i: (0, 0))],
            out_specs=pl.BlockSpec((b_, OUT_PAD), lambda i: (0, 0)),
        ),
        compiler_params=pltpu.CompilerParams(dimension_semantics=("arbitrary",)),
    )(x2, slab)
    return out_padded[:, :NCLS]


# -------------------------- deterministic params ---------------------------
def init_params(key):
    ks = jax.random.split(key, 16)

    def w(k, shape, scale=0.1):
        return jax.random.normal(k, shape, jnp.float32) * scale

    return dict(
        fc1_w=w(ks[0], (C, U)),
        fc1_b=w(ks[1], (1, U)),
        enc_wa=w(ks[2], (2, 4, U, U)),     # [layer][q,k,v,o]
        enc_ba=w(ks[3], (2, 4, U)),
        enc_w1=w(ks[4], (2, U, FF)),
        enc_b1=w(ks[5], (2, FF)),
        enc_w2=w(ks[6], (2, FF, U)),
        enc_b2=w(ks[7], (2, U)),
        enc_ln_g=jnp.ones((2, 2, U), jnp.float32),
        enc_ln_b=jnp.zeros((2, 2, U), jnp.float32),
        ctx_w=w(ks[8], (U, U)),
        ctx_b=w(ks[9], (1, U)),
        ctx_u=w(ks[10], (1, U)),
        fc3_w=w(ks[11], (U, H3)),
        fc3_b=w(ks[12], (1, H3)),
        out_w=w(ks[13], (H3, NCLS)),
        out_b=w(ks[14], (1, NCLS)),
    )


# --------------------------- pure-JAX reference ----------------------------
def _ref_single(x2, p):
    h = jax.nn.relu(x2 @ p['fc1_w'] + p['fc1_b'][0])
    for l in range(2):
        q = h @ p['enc_wa'][l, 0] + p['enc_ba'][l, 0]
        k = h @ p['enc_wa'][l, 1] + p['enc_ba'][l, 1]
        v = h @ p['enc_wa'][l, 2] + p['enc_ba'][l, 2]
        heads = []
        for hh in range(NH):
            sl = slice(hh * DH, (hh + 1) * DH)
            s = q[:, sl] @ k[:, sl].T / math.sqrt(DH)
            heads.append(jax.nn.softmax(s, -1) @ v[:, sl])
        attn = jnp.concatenate(heads, -1) @ p['enc_wa'][l, 3] + p['enc_ba'][l, 3]
        h = _layernorm(h + attn, p['enc_ln_g'][l, 0], p['enc_ln_b'][l, 0])
        ff = jax.nn.relu(h @ p['enc_w1'][l] + p['enc_b1'][l]) @ p['enc_w2'][l] + p['enc_b2'][l]
        h = _layernorm(h + ff, p['enc_ln_g'][l, 1], p['enc_ln_b'][l, 1])
    u_it = jnp.tanh(h @ p['ctx_w'] + p['ctx_b'][0])
    a = jax.nn.softmax(u_it @ p['ctx_u'][0], axis=0)
    pooled = jnp.sum(h * a[:, None], axis=0)
    z = jax.nn.relu(pooled @ p['fc3_w'] + p['fc3_b'][0])
    return z @ p['out_w'] + p['out_b'][0]


def reference_forward(x, p):
    x3 = x.reshape(x.shape[0], T, C).astype(jnp.float32)
    return jax.vmap(lambda xi: _ref_single(xi, p))(x3)


# --------------------------------- main -------------------------------------
if __name__ == "__main__":
    key = jax.random.PRNGKey(0)
    k_x, k_p = jax.random.split(key)
    x = jax.random.normal(k_x, (B, 1, T, C), jnp.float32)
    params = init_params(k_p)

    out = baseline_attn_forward(x, params)
    out = jax.block_until_ready(out)

    ref = jax.block_until_ready(reference_forward(x, params))
    assert out.shape == (B, NCLS), out.shape
    assert jnp.allclose(out, ref, atol=1e-4, rtol=1e-4), (out, ref)

    print("KERNEL_OK")
</pallas_src>

<mosaic_0001>
module attributes {stable_mosaic.version = 11 : i64} {
  func.func @baseline_attn_kernel(%arg0: i32, %arg1: memref<32x4xf32, #tpu.memory_space<vmem>>, %arg2: memref<904x128xf32, #tpu.memory_space<vmem>>, %arg3: memref<2x128xf32, #tpu.memory_space<vmem>>) attributes {dimension_semantics = [#tpu.dimension_semantics<arbitrary>], iteration_bounds = array<i64: 1>, scalar_prefetch = 0 : i64, scratch_operands = 0 : i64, tpu.core_type = #tpu.core_type<tc>, window_params = [{pipeline_mode = #tpu.pipeline_mode<synchronous>, transform_indices = @transform_0, window_bounds = array<i64: 32, 4>}, {pipeline_mode = #tpu.pipeline_mode<synchronous>, transform_indices = @transform_1, window_bounds = array<i64: 904, 128>}, {pipeline_mode = #tpu.pipeline_mode<synchronous>, transform_indices = @transform_2, window_bounds = array<i64: 2, 128>}]} {
    %c0 = arith.constant 0 : index
    %c0_0 = arith.constant 0 : index
    %0 = vector.load %arg1[%c0, %c0_0] : memref<32x4xf32, #tpu.memory_space<vmem>>, vector<32x4xf32>
    %c0_1 = arith.constant 0 : index
    %c0_2 = arith.constant 0 : index
    %1 = vector.load %arg2[%c0_1, %c0_2] : memref<904x128xf32, #tpu.memory_space<vmem>>, vector<4x32xf32>
    %cst = arith.constant dense<0.000000e+00> : vector<32x32xf32>
    %2 = tpu.matmul %0, %1, %cst {dimension_numbers = #tpu.dot_dimension_numbers<[1], [0], [0], [1], [0, 0, 1, 1], [], []>} : vector<32x4xf32>, vector<4x32xf32>, vector<32x32xf32> -> vector<32x32xf32>
    %c8 = arith.constant 8 : index
    %c0_3 = arith.constant 0 : index
    %3 = vector.load %arg2[%c8, %c0_3] : memref<904x128xf32, #tpu.memory_space<vmem>>, vector<1x32xf32>
    %4 = vector.broadcast %3 : vector<1x32xf32> to vector<32x32xf32>
    %5 = arith.addf %2, %4 : vector<32x32xf32>
    %cst_4 = arith.constant 0.000000e+00 : f32
    %6 = vector.broadcast %cst_4 : f32 to vector<32x32xf32>
    %7 = arith.maximumf %5, %6 : vector<32x32xf32>
    %c872 = arith.constant 872 : index
    %c0_5 = arith.constant 0 : index
    %8 = vector.load %arg2[%c872, %c0_5] : memref<904x128xf32, #tpu.memory_space<vmem>>, vector<1x32xf32>
    %9 = vector.shape_cast %8 : vector<1x32xf32> to vector<1x1x32xf32>
    %c880 = arith.constant 880 : index
    %c0_6 = arith.constant 0 : index
    %10 = vector.load %arg2[%c880, %c0_6] : memref<904x128xf32, #tpu.memory_space<vmem>>, vector<1x32xf32>
    %11 = vector.shape_cast %10 : vector<1x32xf32> to vector<1x1x32xf32>
    %c888 = arith.constant 888 : index
    %c0_7 = arith.constant 0 : index
    %12 = vector.load %arg2[%c888, %c0_7] : memref<904x128xf32, #tpu.memory_space<vmem>>, vector<1x32xf32>
    %13 = vector.shape_cast %12 : vector<1x32xf32> to vector<1x1x32xf32>
    %c896 = arith.constant 896 : index
    %c0_8 = arith.constant 0 : index
    %14 = vector.load %arg2[%c896, %c0_8] : memref<904x128xf32, #tpu.memory_space<vmem>>, vector<1x32xf32>
    %15 = vector.shape_cast %14 : vector<1x32xf32> to vector<1x1x32xf32>
    %c16 = arith.constant 16 : index
    %c0_9 = arith.constant 0 : index
    %16 = vector.load %arg2[%c16, %c0_9] : memref<904x128xf32, #tpu.memory_space<vmem>>, vector<32x32xf32>
    %cst_10 = arith.constant dense<0.000000e+00> : vector<32x32xf32>
    %17 = tpu.matmul %7, %16, %cst_10 {dimension_numbers = #tpu.dot_dimension_numbers<[1], [0], [0], [1], [0, 0, 1, 1], [], []>} : vector<32x32xf32>, vector<32x32xf32>, vector<32x32xf32> -> vector<32x32xf32>
    %c144 = arith.constant 144 : index
    %c0_11 = arith.constant 0 : index
    %18 = vector.load %arg2[%c144, %c0_11] : memref<904x128xf32, #tpu.memory_space<vmem>>, vector<1x32xf32>
    %19 = vector.broadcast %18 : vector<1x32xf32> to vector<32x32xf32>
    %20 = arith.addf %17, %19 : vector<32x32xf32>
    %c48 = arith.constant 48 : index
    %c0_12 = arith.constant 0 : index
    %21 = vector.load %arg2[%c48, %c0_12] : memref<904x128xf32, #tpu.memory_space<vmem>>, vector<32x32xf32>
    %cst_13 = arith.constant dense<0.000000e+00> : vector<32x32xf32>
    %22 = tpu.matmul %7, %21, %cst_13 {dimension_numbers = #tpu.dot_dimension_numbers<[1], [0], [0], [1], [0, 0, 1, 1], [], []>} : vector<32x32xf32>, vector<32x32xf32>, vector<32x32xf32> -> vector<32x32xf32>
    %c152 = arith.constant 152 : index
    %c0_14 = arith.constant 0 : index
    %23 = vector.load %arg2[%c152, %c0_14] : memref<904x128xf32, #tpu.memory_space<vmem>>, vector<1x32xf32>
    %24 = vector.broadcast %23 : vector<1x32xf32> to vector<32x32xf32>
    %25 = arith.addf %22, %24 : vector<32x32xf32>
    %c80 = arith.constant 80 : index
    %c0_15 = arith.constant 0 : index
    %26 = vector.load %arg2[%c80, %c0_15] : memref<904x128xf32, #tpu.memory_space<vmem>>, vector<32x32xf32>
    %cst_16 = arith.constant dense<0.000000e+00> : vector<32x32xf32>
    %27 = tpu.matmul %7, %26, %cst_16 {dimension_numbers = #tpu.dot_dimension_numbers<[1], [0], [0], [1], [0, 0, 1, 1], [], []>} : vector<32x32xf32>, vector<32x32xf32>, vector<32x32xf32> -> vector<32x32xf32>
    %c160 = arith.constant 160 : index
    %c0_17 = arith.constant 0 : index
    %28 = vector.load %arg2[%c160, %c0_17] : memref<904x128xf32, #tpu.memory_space<vmem>>, vector<1x32xf32>
    %29 = vector.broadcast %28 : vector<1x32xf32> to vector<32x32xf32>
    %30 = arith.addf %27, %29 : vector<32x32xf32>
    %31 = vector.shape_cast %20 : vector<32x32xf32> to vector<2x16x32xf32>
    %32 = vector.shape_cast %25 : vector<32x32xf32> to vector<2x16x32xf32>
    %33 = vector.shape_cast %30 : vector<32x32xf32> to vector<2x16x32xf32>
    %34 = vector.broadcast %9 : vector<1x1x32xf32> to vector<2x16x32xf32>
    %35 = arith.mulf %31, %34 : vector<2x16x32xf32>
    "tpu.trace_start"() <{level = 10 : i32, message = "btd,bsd->bts"}> : () -> ()
    %cst_18 = arith.constant dense<0.000000e+00> : vector<2x16x16xf32>
    %36 = tpu.matmul %35, %32, %cst_18 {dimension_numbers = #tpu.dot_dimension_numbers<[2], [2], [1], [1], [0, 0, 0, 1, 1, 1], [0], [0]>} : vector<2x16x32xf32>, vector<2x16x32xf32>, vector<2x16x16xf32> -> vector<2x16x16xf32>
    "tpu.trace_stop"() : () -> ()
    %cst_19 = arith.constant 0.353553385 : f32
    %37 = vector.broadcast %cst_19 : f32 to vector<2x16x16xf32>
    %38 = arith.mulf %36, %37 : vector<2x16x16xf32>
    %cst_20 = arith.constant dense<0xFF800000> : vector<2x16xf32>
    %39 = vector.multi_reduction <maximumf>, %38, %cst_20 [2] : vector<2x16x16xf32> to vector<2x16xf32>
    %40 = vector.shape_cast %39 : vector<2x16xf32> to vector<2x16x1xf32>
    %41 = vector.broadcast %40 : vector<2x16x1xf32> to vector<2x16x16xf32>
    %42 = arith.subf %38, %41 : vector<2x16x16xf32>
    %43 = math.exp %42 : vector<2x16x16xf32>
    %cst_21 = arith.constant dense<0.000000e+00> : vector<2x16xf32>
    %44 = vector.multi_reduction <add>, %43, %cst_21 [2] : vector<2x16x16xf32> to vector<2x16xf32>
    %45 = vector.shape_cast %44 : vector<2x16xf32> to vector<2x16x1xf32>
    %46 = vector.broadcast %45 : vector<2x16x1xf32> to vector<2x16x16xf32>
    %47 = arith.divf %43, %46 : vector<2x16x16xf32>
    %48 = vector.broadcast %9 : vector<1x1x32xf32> to vector<2x16x32xf32>
    %49 = arith.mulf %33, %48 : vector<2x16x32xf32>
    "tpu.trace_start"() <{level = 10 : i32, message = "bts,bsd->btd"}> : () -> ()
    %cst_22 = arith.constant dense<0.000000e+00> : vector<2x16x32xf32>
    %50 = tpu.matmul %47, %49, %cst_22 {dimension_numbers = #tpu.dot_dimension_numbers<[2], [1], [1], [2], [0, 0, 0, 1, 1, 2], [0], [0]>} : vector<2x16x16xf32>, vector<2x16x32xf32>, vector<2x16x32xf32> -> vector<2x16x32xf32>
    "tpu.trace_stop"() : () -> ()
    %51 = vector.broadcast %11 : vector<1x1x32xf32> to vector<2x16x32xf32>
    %52 = arith.mulf %31, %51 : vector<2x16x32xf32>
    "tpu.trace_start"() <{level = 10 : i32, message = "btd,bsd->bts"}> : () -> ()
    %cst_23 = arith.constant dense<0.000000e+00> : vector<2x16x16xf32>
    %53 = tpu.matmul %52, %32, %cst_23 {dimension_numbers = #tpu.dot_dimension_numbers<[2], [2], [1], [1], [0, 0, 0, 1, 1, 1], [0], [0]>} : vector<2x16x32xf32>, vector<2x16x32xf32>, vector<2x16x16xf32> -> vector<2x16x16xf32>
    "tpu.trace_stop"() : () -> ()
    %cst_24 = arith.constant 0.353553385 : f32
    %54 = vector.broadcast %cst_24 : f32 to vector<2x16x16xf32>
    %55 = arith.mulf %53, %54 : vector<2x16x16xf32>
    %cst_25 = arith.constant dense<0xFF800000> : vector<2x16xf32>
    %56 = vector.multi_reduction <maximumf>, %55, %cst_25 [2] : vector<2x16x16xf32> to vector<2x16xf32>
    %57 = vector.shape_cast %56 : vector<2x16xf32> to vector<2x16x1xf32>
    %58 = vector.broadcast %57 : vector<2x16x1xf32> to vector<2x16x16xf32>
    %59 = arith.subf %55, %58 : vector<2x16x16xf32>
    %60 = math.exp %59 : vector<2x16x16xf32>
    %cst_26 = arith.constant dense<0.000000e+00> : vector<2x16xf32>
    %61 = vector.multi_reduction <add>, %60, %cst_26 [2] : vector<2x16x16xf32> to vector<2x16xf32>
    %62 = vector.shape_cast %61 : vector<2x16xf32> to vector<2x16x1xf32>
    %63 = vector.broadcast %62 : vector<2x16x1xf32> to vector<2x16x16xf32>
    %64 = arith.divf %60, %63 : vector<2x16x16xf32>
    %65 = vector.broadcast %11 : vector<1x1x32xf32> to vector<2x16x32xf32>
    %66 = arith.mulf %33, %65 : vector<2x16x32xf32>
    "tpu.trace_start"() <{level = 10 : i32, message = "bts,bsd->btd"}> : () -> ()
    %cst_27 = arith.constant dense<0.000000e+00> : vector<2x16x32xf32>
    %67 = tpu.matmul %64, %66, %cst_27 {dimension_numbers = #tpu.dot_dimension_numbers<[2], [1], [1], [2], [0, 0, 0, 1, 1, 2], [0], [0]>} : vector<2x16x16xf32>, vector<2x16x32xf32>, vector<2x16x32xf32> -> vector<2x16x32xf32>
    "tpu.trace_stop"() : () -> ()
    %68 = arith.addf %50, %67 : vector<2x16x32xf32>
    %69 = vector.broadcast %13 : vector<1x1x32xf32> to vector<2x16x32xf32>
    %70 = arith.mulf %31, %69 : vector<2x16x32xf32>
    "tpu.trace_start"() <{level = 10 : i32, message = "btd,bsd->bts"}> : () -> ()
    %cst_28 = arith.constant dense<0.000000e+00> : vector<2x16x16xf32>
    %71 = tpu.matmul %70, %32, %cst_28 {dimension_numbers = #tpu.dot_dimension_numbers<[2], [2], [1], [1], [0, 0, 0, 1, 1, 1], [0], [0]>} : vector<2x16x32xf32>, vector<2x16x32xf32>, vector<2x16x16xf32> -> vector<2x16x16xf32>
    "tpu.trace_stop"() : () -> ()
    %cst_29 = arith.constant 0.353553385 : f32
    %72 = vector.broadcast %cst_29 : f32 to vector<2x16x16xf32>
    %73 = arith.mulf %71, %72 : vector<2x16x16xf32>
    %cst_30 = arith.constant dense<0xFF800000> : vector<2x16xf32>
    %74 = vector.multi_reduction <maximumf>, %73, %cst_30 [2] : vector<2x16x16xf32> to vector<2x16xf32>
    %75 = vector.shape_cast %74 : vector<2x16xf32> to vector<2x16x1xf32>
    %76 = vector.broadcast %75 : vector<2x16x1xf32> to vector<2x16x16xf32>
    %77 = arith.subf %73, %76 : vector<2x16x16xf32>
    %78 = math.exp %77 : vector<2x16x16xf32>
    %cst_31 = arith.constant dense<0.000000e+00> : vector<2x16xf32>
    %79 = vector.multi_reduction <add>, %78, %cst_31 [2] : vector<2x16x16xf32> to vector<2x16xf32>
    %80 = vector.shape_cast %79 : vector<2x16xf32> to vector<2x16x1xf32>
    %81 = vector.broadcast %80 : vector<2x16x1xf32> to vector<2x16x16xf32>
    %82 = arith.divf %78, %81 : vector<2x16x16xf32>
    %83 = vector.broadcast %13 : vector<1x1x32xf32> to vector<2x16x32xf32>
    %84 = arith.mulf %33, %83 : vector<2x16x32xf32>
    "tpu.trace_start"() <{level = 10 : i32, message = "bts,bsd->btd"}> : () -> ()
    %cst_32 = arith.constant dense<0.000000e+00> : vector<2x16x32xf32>
    %85 = tpu.matmul %82, %84, %cst_32 {dimension_numbers = #tpu.dot_dimension_numbers<[2], [1], [1], [2], [0, 0, 0, 1, 1, 2], [0], [0]>} : vector<2x16x16xf32>, vector<2x16x32xf32>, vector<2x16x32xf32> -> vector<2x16x32xf32>
    "tpu.trace_stop"() : () -> ()
    %86 = arith.addf %68, %85 : vector<2x16x32xf32>
    %87 = vector.broadcast %15 : vector<1x1x32xf32> to vector<2x16x32xf32>
    %88 = arith.mulf %31, %87 : vector<2x16x32xf32>
    "tpu.trace_start"() <{level = 10 : i32, message = "btd,bsd->bts"}> : () -> ()
    %cst_33 = arith.constant dense<0.000000e+00> : vector<2x16x16xf32>
    %89 = tpu.matmul %88, %32, %cst_33 {dimension_numbers = #tpu.dot_dimension_numbers<[2], [2], [1], [1], [0, 0, 0, 1, 1, 1], [0], [0]>} : vector<2x16x32xf32>, vector<2x16x32xf32>, vector<2x16x16xf32> -> vector<2x16x16xf32>
    "tpu.trace_stop"() : () -> ()
    %cst_34 = arith.constant 0.353553385 : f32
    %90 = vector.broadcast %cst_34 : f32 to vector<2x16x16xf32>
    %91 = arith.mulf %89, %90 : vector<2x16x16xf32>
    %cst_35 = arith.constant dense<0xFF800000> : vector<2x16xf32>
    %92 = vector.multi_reduction <maximumf>, %91, %cst_35 [2] : vector<2x16x16xf32> to vector<2x16xf32>
    %93 = vector.shape_cast %92 : vector<2x16xf32> to vector<2x16x1xf32>
    %94 = vector.broadcast %93 : vector<2x16x1xf32> to vector<2x16x16xf32>
    %95 = arith.subf %91, %94 : vector<2x16x16xf32>
    %96 = math.exp %95 : vector<2x16x16xf32>
    %cst_36 = arith.constant dense<0.000000e+00> : vector<2x16xf32>
    %97 = vector.multi_reduction <add>, %96, %cst_36 [2] : vector<2x16x16xf32> to vector<2x16xf32>
    %98 = vector.shape_cast %97 : vector<2x16xf32> to vector<2x16x1xf32>
    %99 = vector.broadcast %98 : vector<2x16x1xf32> to vector<2x16x16xf32>
    %100 = arith.divf %96, %99 : vector<2x16x16xf32>
    %101 = vector.broadcast %15 : vector<1x1x32xf32> to vector<2x16x32xf32>
    %102 = arith.mulf %33, %101 : vector<2x16x32xf32>
    "tpu.trace_start"() <{level = 10 : i32, message = "bts,bsd->btd"}> : () -> ()
    %cst_37 = arith.constant dense<0.000000e+00> : vector<2x16x32xf32>
    %103 = tpu.matmul %100, %102, %cst_37 {dimension_numbers = #tpu.dot_dimension_numbers<[2], [1], [1], [2], [0, 0, 0, 1, 1, 2], [0], [0]>} : vector<2x16x16xf32>, vector<2x16x32xf32>, vector<2x16x32xf32> -> vector<2x16x32xf32>
    "tpu.trace_stop"() : () -> ()
    %104 = arith.addf %86, %103 : vector<2x16x32xf32>
    %105 = vector.shape_cast %104 : vector<2x16x32xf32> to vector<32x32xf32>
    %c112 = arith.constant 112 : index
    %c0_38 = arith.constant 0 : index
    %106 = vector.load %arg2[%c112, %c0_38] : memref<904x128xf32, #tpu.memory_space<vmem>>, vector<32x32xf32>
    %cst_39 = arith.constant dense<0.000000e+00> : vector<32x32xf32>
    %107 = tpu.matmul %105, %106, %cst_39 {dimension_numbers = #tpu.dot_dimension_numbers<[1], [0], [0], [1], [0, 0, 1, 1], [], []>} : vector<32x32xf32>, vector<32x32xf32>, vector<32x32xf32> -> vector<32x32xf32>
    %c168 = arith.constant 168 : index
    %c0_40 = arith.constant 0 : index
    %108 = vector.load %arg2[%c168, %c0_40] : memref<904x128xf32, #tpu.memory_space<vmem>>, vector<1x32xf32>
    %109 = vector.broadcast %108 : vector<1x32xf32> to vector<32x32xf32>
    %110 = arith.addf %107, %109 : vector<32x32xf32>
    %111 = arith.addf %7, %110 : vector<32x32xf32>
    %c352 = arith.constant 352 : index
    %c0_41 = arith.constant 0 : index
    %112 = vector.load %arg2[%c352, %c0_41] : memref<904x128xf32, #tpu.memory_space<vmem>>, vector<1x32xf32>
    %c360 = arith.constant 360 : index
    %c0_42 = arith.constant 0 : index
    %113 = vector.load %arg2[%c360, %c0_42] : memref<904x128xf32, #tpu.memory_space<vmem>>, vector<1x32xf32>
    %cst_43 = arith.constant dense<0.000000e+00> : vector<32xf32>
    %114 = vector.multi_reduction <add>, %111, %cst_43 [1] : vector<32x32xf32> to vector<32xf32>
    %115 = vector.shape_cast %114 : vector<32xf32> to vector<32x1xf32>
    %cst_44 = arith.constant 3.200000e+01 : f32
    %116 = vector.broadcast %cst_44 : f32 to vector<32x1xf32>
    %117 = arith.divf %115, %116 : vector<32x1xf32>
    %118 = vector.broadcast %117 : vector<32x1xf32> to vector<32x32xf32>
    %119 = arith.subf %111, %118 : vector<32x32xf32>
    %120 = arith.mulf %119, %119 : vector<32x32xf32>
    %cst_45 = arith.constant dense<0.000000e+00> : vector<32xf32>
    %121 = vector.multi_reduction <add>, %120, %cst_45 [1] : vector<32x32xf32> to vector<32xf32>
    %122 = vector.shape_cast %121 : vector<32xf32> to vector<32x1xf32>
    %cst_46 = arith.constant 3.200000e+01 : f32
    %123 = vector.broadcast %cst_46 : f32 to vector<32x1xf32>
    %124 = arith.divf %122, %123 : vector<32x1xf32>
    %125 = vector.broadcast %117 : vector<32x1xf32> to vector<32x32xf32>
    %126 = arith.subf %111, %125 : vector<32x32xf32>
    %cst_47 = arith.constant 9.99999974E-6 : f32
    %127 = vector.broadcast %cst_47 : f32 to vector<32x1xf32>
    %128 = arith.addf %124, %127 : vector<32x1xf32>
    %129 = math.rsqrt %128 : vector<32x1xf32>
    %130 = vector.broadcast %129 : vector<32x1xf32> to vector<32x32xf32>
    %131 = arith.mulf %126, %130 : vector<32x32xf32>
    %132 = vector.broadcast %112 : vector<1x32xf32> to vector<32x32xf32>
    %133 = arith.mulf %131, %132 : vector<32x32xf32>
    %134 = vector.broadcast %113 : vector<1x32xf32> to vector<32x32xf32>
    %135 = arith.addf %133, %134 : vector<32x32xf32>
    %c176 = arith.constant 176 : index
    %c0_48 = arith.constant 0 : index
    %136 = vector.load %arg2[%c176, %c0_48] : memref<904x128xf32, #tpu.memory_space<vmem>>, vector<32x128xf32>
    %cst_49 = arith.constant dense<0.000000e+00> : vector<32x128xf32>
    %137 = tpu.matmul %135, %136, %cst_49 {dimension_numbers = #tpu.dot_dimension_numbers<[1], [0], [0], [1], [0, 0, 1, 1], [], []>} : vector<32x32xf32>, vector<32x128xf32>, vector<32x128xf32> -> vector<32x128xf32>
    %c208 = arith.constant 208 : index
    %c0_50 = arith.constant 0 : index
    %138 = vector.load %arg2[%c208, %c0_50] : memref<904x128xf32, #tpu.memory_space<vmem>>, vector<1x128xf32>
    %139 = vector.broadcast %138 : vector<1x128xf32> to vector<32x128xf32>
    %140 = arith.addf %137, %139 : vector<32x128xf32>
    %cst_51 = arith.constant 0.000000e+00 : f32
    %141 = vector.broadcast %cst_51 : f32 to vector<32x128xf32>
    %142 = arith.maximumf %140, %141 : vector<32x128xf32>
    %c216 = arith.constant 216 : index
    %c0_52 = arith.constant 0 : index
    %143 = vector.load %arg2[%c216, %c0_52] : memref<904x128xf32, #tpu.memory_space<vmem>>, vector<128x32xf32>
    %cst_53 = arith.constant dense<0.000000e+00> : vector<32x32xf32>
    %144 = tpu.matmul %142, %143, %cst_53 {dimension_numbers = #tpu.dot_dimension_numbers<[1], [0], [0], [1], [0, 0, 1, 1], [], []>} : vector<32x128xf32>, vector<128x32xf32>, vector<32x32xf32> -> vector<32x32xf32>
    %c344 = arith.constant 344 : index
    %c0_54 = arith.constant 0 : index
    %145 = vector.load %arg2[%c344, %c0_54] : memref<904x128xf32, #tpu.memory_space<vmem>>, vector<1x32xf32>
    %146 = vector.broadcast %145 : vector<1x32xf32> to vector<32x32xf32>
    %147 = arith.addf %144, %146 : vector<32x32xf32>
    %148 = arith.addf %135, %147 : vector<32x32xf32>
    %c368 = arith.constant 368 : index
    %c0_55 = arith.constant 0 : index
    %149 = vector.load %arg2[%c368, %c0_55] : memref<904x128xf32, #tpu.memory_space<vmem>>, vector<1x32xf32>
    %c376 = arith.constant 376 : index
    %c0_56 = arith.constant 0 : index
    %150 = vector.load %arg2[%c376, %c0_56] : memref<904x128xf32, #tpu.memory_space<vmem>>, vector<1x32xf32>
    %cst_57 = arith.constant dense<0.000000e+00> : vector<32xf32>
    %151 = vector.multi_reduction <add>, %148, %cst_57 [1] : vector<32x32xf32> to vector<32xf32>
    %152 = vector.shape_cast %151 : vector<32xf32> to vector<32x1xf32>
    %cst_58 = arith.constant 3.200000e+01 : f32
    %153 = vector.broadcast %cst_58 : f32 to vector<32x1xf32>
    %154 = arith.divf %152, %153 : vector<32x1xf32>
    %155 = vector.broadcast %154 : vector<32x1xf32> to vector<32x32xf32>
    %156 = arith.subf %148, %155 : vector<32x32xf32>
    %157 = arith.mulf %156, %156 : vector<32x32xf32>
    %cst_59 = arith.constant dense<0.000000e+00> : vector<32xf32>
    %158 = vector.multi_reduction <add>, %157, %cst_59 [1] : vector<32x32xf32> to vector<32xf32>
    %159 = vector.shape_cast %158 : vector<32xf32> to vector<32x1xf32>
    %cst_60 = arith.constant 3.200000e+01 : f32
    %160 = vector.broadcast %cst_60 : f32 to vector<32x1xf32>
    %161 = arith.divf %159, %160 : vector<32x1xf32>
    %162 = vector.broadcast %154 : vector<32x1xf32> to vector<32x32xf32>
    %163 = arith.subf %148, %162 : vector<32x32xf32>
    %cst_61 = arith.constant 9.99999974E-6 : f32
    %164 = vector.broadcast %cst_61 : f32 to vector<32x1xf32>
    %165 = arith.addf %161, %164 : vector<32x1xf32>
    %166 = math.rsqrt %165 : vector<32x1xf32>
    %167 = vector.broadcast %166 : vector<32x1xf32> to vector<32x32xf32>
    %168 = arith.mulf %163, %167 : vector<32x32xf32>
    %169 = vector.broadcast %149 : vector<1x32xf32> to vector<32x32xf32>
    %170 = arith.mulf %168, %169 : vector<32x32xf32>
    %171 = vector.broadcast %150 : vector<1x32xf32> to vector<32x32xf32>
    %172 = arith.addf %170, %171 : vector<32x32xf32>
    %c384 = arith.constant 384 : index
    %c0_62 = arith.constant 0 : index
    %173 = vector.load %arg2[%c384, %c0_62] : memref<904x128xf32, #tpu.memory_space<vmem>>, vector<32x32xf32>
    %cst_63 = arith.constant dense<0.000000e+00> : vector<32x32xf32>
    %174 = tpu.matmul %172, %173, %cst_63 {dimension_numbers = #tpu.dot_dimension_numbers<[1], [0], [0], [1], [0, 0, 1, 1], [], []>} : vector<32x32xf32>, vector<32x32xf32>, vector<32x32xf32> -> vector<32x32xf32>
    %c512 = arith.constant 512 : index
    %c0_64 = arith.constant 0 : index
    %175 = vector.load %arg2[%c512, %c0_64] : memref<904x128xf32, #tpu.memory_space<vmem>>, vector<1x32xf32>
    %176 = vector.broadcast %175 : vector<1x32xf32> to vector<32x32xf32>
    %177 = arith.addf %174, %176 : vector<32x32xf32>
    %c416 = arith.constant 416 : index
    %c0_65 = arith.constant 0 : index
    %178 = vector.load %arg2[%c416, %c0_65] : memref<904x128xf32, #tpu.memory_space<vmem>>, vector<32x32xf32>
    %cst_66 = arith.constant dense<0.000000e+00> : vector<32x32xf32>
    %179 = tpu.matmul %172, %178, %cst_66 {dimension_numbers = #tpu.dot_dimension_numbers<[1], [0], [0], [1], [0, 0, 1, 1], [], []>} : vector<32x32xf32>, vector<32x32xf32>, vector<32x32xf32> -> vector<32x32xf32>
    %c520 = arith.constant 520 : index
    %c0_67 = arith.constant 0 : index
    %180 = vector.load %arg2[%c520, %c0_67] : memref<904x128xf32, #tpu.memory_space<vmem>>, vector<1x32xf32>
    %181 = vector.broadcast %180 : vector<1x32xf32> to vector<32x32xf32>
    %182 = arith.addf %179, %181 : vector<32x32xf32>
    %c448 = arith.constant 448 : index
    %c0_68 = arith.constant 0 : index
    %183 = vector.load %arg2[%c448, %c0_68] : memref<904x128xf32, #tpu.memory_space<vmem>>, vector<32x32xf32>
    %cst_69 = arith.constant dense<0.000000e+00> : vector<32x32xf32>
    %184 = tpu.matmul %172, %183, %cst_69 {dimension_numbers = #tpu.dot_dimension_numbers<[1], [0], [0], [1], [0, 0, 1, 1], [], []>} : vector<32x32xf32>, vector<32x32xf32>, vector<32x32xf32> -> vector<32x32xf32>
    %c528 = arith.constant 528 : index
    %c0_70 = arith.constant 0 : index
    %185 = vector.load %arg2[%c528, %c0_70] : memref<904x128xf32, #tpu.memory_space<vmem>>, vector<1x32xf32>
    %186 = vector.broadcast %185 : vector<1x32xf32> to vector<32x32xf32>
    %187 = arith.addf %184, %186 : vector<32x32xf32>
    %188 = vector.shape_cast %177 : vector<32x32xf32> to vector<2x16x32xf32>
    %189 = vector.shape_cast %182 : vector<32x32xf32> to vector<2x16x32xf32>
    %190 = vector.shape_cast %187 : vector<32x32xf32> to vector<2x16x32xf32>
    %191 = vector.broadcast %9 : vector<1x1x32xf32> to vector<2x16x32xf32>
    %192 = arith.mulf %188, %191 : vector<2x16x32xf32>
    "tpu.trace_start"() <{level = 10 : i32, message = "btd,bsd->bts"}> : () -> ()
    %cst_71 = arith.constant dense<0.000000e+00> : vector<2x16x16xf32>
    %193 = tpu.matmul %192, %189, %cst_71 {dimension_numbers = #tpu.dot_dimension_numbers<[2], [2], [1], [1], [0, 0, 0, 1, 1, 1], [0], [0]>} : vector<2x16x32xf32>, vector<2x16x32xf32>, vector<2x16x16xf32> -> vector<2x16x16xf32>
    "tpu.trace_stop"() : () -> ()
    %cst_72 = arith.constant 0.353553385 : f32
    %194 = vector.broadcast %cst_72 : f32 to vector<2x16x16xf32>
    %195 = arith.mulf %193, %194 : vector<2x16x16xf32>
    %cst_73 = arith.constant dense<0xFF800000> : vector<2x16xf32>
    %196 = vector.multi_reduction <maximumf>, %195, %cst_73 [2] : vector<2x16x16xf32> to vector<2x16xf32>
    %197 = vector.shape_cast %196 : vector<2x16xf32> to vector<2x16x1xf32>
    %198 = vector.broadcast %197 : vector<2x16x1xf32> to vector<2x16x16xf32>
    %199 = arith.subf %195, %198 : vector<2x16x16xf32>
    %200 = math.exp %199 : vector<2x16x16xf32>
    %cst_74 = arith.constant dense<0.000000e+00> : vector<2x16xf32>
    %201 = vector.multi_reduction <add>, %200, %cst_74 [2] : vector<2x16x16xf32> to vector<2x16xf32>
    %202 = vector.shape_cast %201 : vector<2x16xf32> to vector<2x16x1xf32>
    %203 = vector.broadcast %202 : vector<2x16x1xf32> to vector<2x16x16xf32>
    %204 = arith.divf %200, %203 : vector<2x16x16xf32>
    %205 = vector.broadcast %9 : vector<1x1x32xf32> to vector<2x16x32xf32>
    %206 = arith.mulf %190, %205 : vector<2x16x32xf32>
    "tpu.trace_start"() <{level = 10 : i32, message = "bts,bsd->btd"}> : () -> ()
    %cst_75 = arith.constant dense<0.000000e+00> : vector<2x16x32xf32>
    %207 = tpu.matmul %204, %206, %cst_75 {dimension_numbers = #tpu.dot_dimension_numbers<[2], [1], [1], [2], [0, 0, 0, 1, 1, 2], [0], [0]>} : vector<2x16x16xf32>, vector<2x16x32xf32>, vector<2x16x32xf32> -> vector<2x16x32xf32>
    "tpu.trace_stop"() : () -> ()
    %208 = vector.broadcast %11 : vector<1x1x32xf32> to vector<2x16x32xf32>
    %209 = arith.mulf %188, %208 : vector<2x16x32xf32>
    "tpu.trace_start"() <{level = 10 : i32, message = "btd,bsd->bts"}> : () -> ()
    %cst_76 = arith.constant dense<0.000000e+00> : vector<2x16x16xf32>
    %210 = tpu.matmul %209, %189, %cst_76 {dimension_numbers = #tpu.dot_dimension_numbers<[2], [2], [1], [1], [0, 0, 0, 1, 1, 1], [0], [0]>} : vector<2x16x32xf32>, vector<2x16x32xf32>, vector<2x16x16xf32> -> vector<2x16x16xf32>
    "tpu.trace_stop"() : () -> ()
    %cst_77 = arith.constant 0.353553385 : f32
    %211 = vector.broadcast %cst_77 : f32 to vector<2x16x16xf32>
    %212 = arith.mulf %210, %211 : vector<2x16x16xf32>
    %cst_78 = arith.constant dense<0xFF800000> : vector<2x16xf32>
    %213 = vector.multi_reduction <maximumf>, %212, %cst_78 [2] : vector<2x16x16xf32> to vector<2x16xf32>
    %214 = vector.shape_cast %213 : vector<2x16xf32> to vector<2x16x1xf32>
    %215 = vector.broadcast %214 : vector<2x16x1xf32> to vector<2x16x16xf32>
    %216 = arith.subf %212, %215 : vector<2x16x16xf32>
    %217 = math.exp %216 : vector<2x16x16xf32>
    %cst_79 = arith.constant dense<0.000000e+00> : vector<2x16xf32>
    %218 = vector.multi_reduction <add>, %217, %cst_79 [2] : vector<2x16x16xf32> to vector<2x16xf32>
    %219 = vector.shape_cast %218 : vector<2x16xf32> to vector<2x16x1xf32>
    %220 = vector.broadcast %219 : vector<2x16x1xf32> to vector<2x16x16xf32>
    %221 = arith.divf %217, %220 : vector<2x16x16xf32>
    %222 = vector.broadcast %11 : vector<1x1x32xf32> to vector<2x16x32xf32>
    %223 = arith.mulf %190, %222 : vector<2x16x32xf32>
    "tpu.trace_start"() <{level = 10 : i32, message = "bts,bsd->btd"}> : () -> ()
    %cst_80 = arith.constant dense<0.000000e+00> : vector<2x16x32xf32>
    %224 = tpu.matmul %221, %223, %cst_80 {dimension_numbers = #tpu.dot_dimension_numbers<[2], [1], [1], [2], [0, 0, 0, 1, 1, 2], [0], [0]>} : vector<2x16x16xf32>, vector<2x16x32xf32>, vector<2x16x32xf32> -> vector<2x16x32xf32>
    "tpu.trace_stop"() : () -> ()
    %225 = arith.addf %207, %224 : vector<2x16x32xf32>
    %226 = vector.broadcast %13 : vector<1x1x32xf32> to vector<2x16x32xf32>
    %227 = arith.mulf %188, %226 : vector<2x16x32xf32>
    "tpu.trace_start"() <{level = 10 : i32, message = "btd,bsd->bts"}> : () -> ()
    %cst_81 = arith.constant dense<0.000000e+00> : vector<2x16x16xf32>
    %228 = tpu.matmul %227, %189, %cst_81 {dimension_numbers = #tpu.dot_dimension_numbers<[2], [2], [1], [1], [0, 0, 0, 1, 1, 1], [0], [0]>} : vector<2x16x32xf32>, vector<2x16x32xf32>, vector<2x16x16xf32> -> vector<2x16x16xf32>
    "tpu.trace_stop"() : () -> ()
    %cst_82 = arith.constant 0.353553385 : f32
    %229 = vector.broadcast %cst_82 : f32 to vector<2x16x16xf32>
    %230 = arith.mulf %228, %229 : vector<2x16x16xf32>
    %cst_83 = arith.constant dense<0xFF800000> : vector<2x16xf32>
    %231 = vector.multi_reduction <maximumf>, %230, %cst_83 [2] : vector<2x16x16xf32> to vector<2x16xf32>
    %232 = vector.shape_cast %231 : vector<2x16xf32> to vector<2x16x1xf32>
    %233 = vector.broadcast %232 : vector<2x16x1xf32> to vector<2x16x16xf32>
    %234 = arith.subf %230, %233 : vector<2x16x16xf32>
    %235 = math.exp %234 : vector<2x16x16xf32>
    %cst_84 = arith.constant dense<0.000000e+00> : vector<2x16xf32>
    %236 = vector.multi_reduction <add>, %235, %cst_84 [2] : vector<2x16x16xf32> to vector<2x16xf32>
    %237 = vector.shape_cast %236 : vector<2x16xf32> to vector<2x16x1xf32>
    %238 = vector.broadcast %237 : vector<2x16x1xf32> to vector<2x16x16xf32>
    %239 = arith.divf %235, %238 : vector<2x16x16xf32>
    %240 = vector.broadcast %13 : vector<1x1x32xf32> to vector<2x16x32xf32>
    %241 = arith.mulf %190, %240 : vector<2x16x32xf32>
    "tpu.trace_start"() <{level = 10 : i32, message = "bts,bsd->btd"}> : () -> ()
    %cst_85 = arith.constant dense<0.000000e+00> : vector<2x16x32xf32>
    %242 = tpu.matmul %239, %241, %cst_85 {dimension_numbers = #tpu.dot_dimension_numbers<[2], [1], [1], [2], [0, 0, 0, 1, 1, 2], [0], [0]>} : vector<2x16x16xf32>, vector<2x16x32xf32>, vector<2x16x32xf32> -> vector<2x16x32xf32>
    "tpu.trace_stop"() : () -> ()
    %243 = arith.addf %225, %242 : vector<2x16x32xf32>
    %244 = vector.broadcast %15 : vector<1x1x32xf32> to vector<2x16x32xf32>
    %245 = arith.mulf %188, %244 : vector<2x16x32xf32>
    "tpu.trace_start"() <{level = 10 : i32, message = "btd,bsd->bts"}> : () -> ()
    %cst_86 = arith.constant dense<0.000000e+00> : vector<2x16x16xf32>
    %246 = tpu.matmul %245, %189, %cst_86 {dimension_numbers = #tpu.dot_dimension_numbers<[2], [2], [1], [1], [0, 0, 0, 1, 1, 1], [0], [0]>} : vector<2x16x32xf32>, vector<2x16x32xf32>, vector<2x16x16xf32> -> vector<2x16x16xf32>
    "tpu.trace_stop"() : () -> ()
    %cst_87 = arith.constant 0.353553385 : f32
    %247 = vector.broadcast %cst_87 : f32 to vector<2x16x16xf32>
    %248 = arith.mulf %246, %247 : vector<2x16x16xf32>
    %cst_88 = arith.constant dense<0xFF800000> : vector<2x16xf32>
    %249 = vector.multi_reduction <maximumf>, %248, %cst_88 [2] : vector<2x16x16xf32> to vector<2x16xf32>
    %250 = vector.shape_cast %249 : vector<2x16xf32> to vector<2x16x1xf32>
    %251 = vector.broadcast %250 : vector<2x16x1xf32> to vector<2x16x16xf32>
    %252 = arith.subf %248, %251 : vector<2x16x16xf32>
    %253 = math.exp %252 : vector<2x16x16xf32>
    %cst_89 = arith.constant dense<0.000000e+00> : vector<2x16xf32>
    %254 = vector.multi_reduction <add>, %253, %cst_89 [2] : vector<2x16x16xf32> to vector<2x16xf32>
    %255 = vector.shape_cast %254 : vector<2x16xf32> to vector<2x16x1xf32>
    %256 = vector.broadcast %255 : vector<2x16x1xf32> to vector<2x16x16xf32>
    %257 = arith.divf %253, %256 : vector<2x16x16xf32>
    %258 = vector.broadcast %15 : vector<1x1x32xf32> to vector<2x16x32xf32>
    %259 = arith.mulf %190, %258 : vector<2x16x32xf32>
    "tpu.trace_start"() <{level = 10 : i32, message = "bts,bsd->btd"}> : () -> ()
    %cst_90 = arith.constant dense<0.000000e+00> : vector<2x16x32xf32>
    %260 = tpu.matmul %257, %259, %cst_90 {dimension_numbers = #tpu.dot_dimension_numbers<[2], [1], [1], [2], [0, 0, 0, 1, 1, 2], [0], [0]>} : vector<2x16x16xf32>, vector<2x16x32xf32>, vector<2x16x32xf32> -> vector<2x16x32xf32>
    "tpu.trace_stop"() : () -> ()
    %261 = arith.addf %243, %260 : vector<2x16x32xf32>
    %262 = vector.shape_cast %261 : vector<2x16x32xf32> to vector<32x32xf32>
    %c480 = arith.constant 480 : index
    %c0_91 = arith.constant 0 : index
    %263 = vector.load %arg2[%c480, %c0_91] : memref<904x128xf32, #tpu.memory_space<vmem>>, vector<32x32xf32>
    %cst_92 = arith.constant dense<0.000000e+00> : vector<32x32xf32>
    %264 = tpu.matmul %262, %263, %cst_92 {dimension_numbers = #tpu.dot_dimension_numbers<[1], [0], [0], [1], [0, 0, 1, 1], [], []>} : vector<32x32xf32>, vector<32x32xf32>, vector<32x32xf32> -> vector<32x32xf32>
    %c536 = arith.constant 536 : index
    %c0_93 = arith.constant 0 : index
    %265 = vector.load %arg2[%c536, %c0_93] : memref<904x128xf32, #tpu.memory_space<vmem>>, vector<1x32xf32>
    %266 = vector.broadcast %265 : vector<1x32xf32> to vector<32x32xf32>
    %267 = arith.addf %264, %266 : vector<32x32xf32>
    %268 = arith.addf %172, %267 : vector<32x32xf32>
    %c720 = arith.constant 720 : index
    %c0_94 = arith.constant 0 : index
    %269 = vector.load %arg2[%c720, %c0_94] : memref<904x128xf32, #tpu.memory_space<vmem>>, vector<1x32xf32>
    %c728 = arith.constant 728 : index
    %c0_95 = arith.constant 0 : index
    %270 = vector.load %arg2[%c728, %c0_95] : memref<904x128xf32, #tpu.memory_space<vmem>>, vector<1x32xf32>
    %cst_96 = arith.constant dense<0.000000e+00> : vector<32xf32>
    %271 = vector.multi_reduction <add>, %268, %cst_96 [1] : vector<32x32xf32> to vector<32xf32>
    %272 = vector.shape_cast %271 : vector<32xf32> to vector<32x1xf32>
    %cst_97 = arith.constant 3.200000e+01 : f32
    %273 = vector.broadcast %cst_97 : f32 to vector<32x1xf32>
    %274 = arith.divf %272, %273 : vector<32x1xf32>
    %275 = vector.broadcast %274 : vector<32x1xf32> to vector<32x32xf32>
    %276 = arith.subf %268, %275 : vector<32x32xf32>
    %277 = arith.mulf %276, %276 : vector<32x32xf32>
    %cst_98 = arith.constant dense<0.000000e+00> : vector<32xf32>
    %278 = vector.multi_reduction <add>, %277, %cst_98 [1] : vector<32x32xf32> to vector<32xf32>
    %279 = vector.shape_cast %278 : vector<32xf32> to vector<32x1xf32>
    %cst_99 = arith.constant 3.200000e+01 : f32
    %280 = vector.broadcast %cst_99 : f32 to vector<32x1xf32>
    %281 = arith.divf %279, %280 : vector<32x1xf32>
    %282 = vector.broadcast %274 : vector<32x1xf32> to vector<32x32xf32>
    %283 = arith.subf %268, %282 : vector<32x32xf32>
    %cst_100 = arith.constant 9.99999974E-6 : f32
    %284 = vector.broadcast %cst_100 : f32 to vector<32x1xf32>
    %285 = arith.addf %281, %284 : vector<32x1xf32>
    %286 = math.rsqrt %285 : vector<32x1xf32>
    %287 = vector.broadcast %286 : vector<32x1xf32> to vector<32x32xf32>
    %288 = arith.mulf %283, %287 : vector<32x32xf32>
    %289 = vector.broadcast %269 : vector<1x32xf32> to vector<32x32xf32>
    %290 = arith.mulf %288, %289 : vector<32x32xf32>
    %291 = vector.broadcast %270 : vector<1x32xf32> to vector<32x32xf32>
    %292 = arith.addf %290, %291 : vector<32x32xf32>
    %c544 = arith.constant 544 : index
    %c0_101 = arith.constant 0 : index
    %293 = vector.load %arg2[%c544, %c0_101] : memref<904x128xf32, #tpu.memory_space<vmem>>, vector<32x128xf32>
    %cst_102 = arith.constant dense<0.000000e+00> : vector<32x128xf32>
    %294 = tpu.matmul %292, %293, %cst_102 {dimension_numbers = #tpu.dot_dimension_numbers<[1], [0], [0], [1], [0, 0, 1, 1], [], []>} : vector<32x32xf32>, vector<32x128xf32>, vector<32x128xf32> -> vector<32x128xf32>
    %c576 = arith.constant 576 : index
    %c0_103 = arith.constant 0 : index
    %295 = vector.load %arg2[%c576, %c0_103] : memref<904x128xf32, #tpu.memory_space<vmem>>, vector<1x128xf32>
    %296 = vector.broadcast %295 : vector<1x128xf32> to vector<32x128xf32>
    %297 = arith.addf %294, %296 : vector<32x128xf32>
    %cst_104 = arith.constant 0.000000e+00 : f32
    %298 = vector.broadcast %cst_104 : f32 to vector<32x128xf32>
    %299 = arith.maximumf %297, %298 : vector<32x128xf32>
    %c584 = arith.constant 584 : index
    %c0_105 = arith.constant 0 : index
    %300 = vector.load %arg2[%c584, %c0_105] : memref<904x128xf32, #tpu.memory_space<vmem>>, vector<128x32xf32>
    %cst_106 = arith.constant dense<0.000000e+00> : vector<32x32xf32>
    %301 = tpu.matmul %299, %300, %cst_106 {dimension_numbers = #tpu.dot_dimension_numbers<[1], [0], [0], [1], [0, 0, 1, 1], [], []>} : vector<32x128xf32>, vector<128x32xf32>, vector<32x32xf32> -> vector<32x32xf32>
    %c712 = arith.constant 712 : index
    %c0_107 = arith.constant 0 : index
    %302 = vector.load %arg2[%c712, %c0_107] : memref<904x128xf32, #tpu.memory_space<vmem>>, vector<1x32xf32>
    %303 = vector.broadcast %302 : vector<1x32xf32> to vector<32x32xf32>
    %304 = arith.addf %301, %303 : vector<32x32xf32>
    %305 = arith.addf %292, %304 : vector<32x32xf32>
    %c736 = arith.constant 736 : index
    %c0_108 = arith.constant 0 : index
    %306 = vector.load %arg2[%c736, %c0_108] : memref<904x128xf32, #tpu.memory_space<vmem>>, vector<1x32xf32>
    %c744 = arith.constant 744 : index
    %c0_109 = arith.constant 0 : index
    %307 = vector.load %arg2[%c744, %c0_109] : memref<904x128xf32, #tpu.memory_space<vmem>>, vector<1x32xf32>
    %cst_110 = arith.constant dense<0.000000e+00> : vector<32xf32>
    %308 = vector.multi_reduction <add>, %305, %cst_110 [1] : vector<32x32xf32> to vector<32xf32>
    %309 = vector.shape_cast %308 : vector<32xf32> to vector<32x1xf32>
    %cst_111 = arith.constant 3.200000e+01 : f32
    %310 = vector.broadcast %cst_111 : f32 to vector<32x1xf32>
    %311 = arith.divf %309, %310 : vector<32x1xf32>
    %312 = vector.broadcast %311 : vector<32x1xf32> to vector<32x32xf32>
    %313 = arith.subf %305, %312 : vector<32x32xf32>
    %314 = arith.mulf %313, %313 : vector<32x32xf32>
    %cst_112 = arith.constant dense<0.000000e+00> : vector<32xf32>
    %315 = vector.multi_reduction <add>, %314, %cst_112 [1] : vector<32x32xf32> to vector<32xf32>
    %316 = vector.shape_cast %315 : vector<32xf32> to vector<32x1xf32>
    %cst_113 = arith.constant 3.200000e+01 : f32
    %317 = vector.broadcast %cst_113 : f32 to vector<32x1xf32>
    %318 = arith.divf %316, %317 : vector<32x1xf32>
    %319 = vector.broadcast %311 : vector<32x1xf32> to vector<32x32xf32>
    %320 = arith.subf %305, %319 : vector<32x32xf32>
    %cst_114 = arith.constant 9.99999974E-6 : f32
    %321 = vector.broadcast %cst_114 : f32 to vector<32x1xf32>
    %322 = arith.addf %318, %321 : vector<32x1xf32>
    %323 = math.rsqrt %322 : vector<32x1xf32>
    %324 = vector.broadcast %323 : vector<32x1xf32> to vector<32x32xf32>
    %325 = arith.mulf %320, %324 : vector<32x32xf32>
    %326 = vector.broadcast %306 : vector<1x32xf32> to vector<32x32xf32>
    %327 = arith.mulf %325, %326 : vector<32x32xf32>
    %328 = vector.broadcast %307 : vector<1x32xf32> to vector<32x32xf32>
    %329 = arith.addf %327, %328 : vector<32x32xf32>
    %c752 = arith.constant 752 : index
    %c0_115 = arith.constant 0 : index
    %330 = vector.load %arg2[%c752, %c0_115] : memref<904x128xf32, #tpu.memory_space<vmem>>, vector<32x32xf32>
    %cst_116 = arith.constant dense<0.000000e+00> : vector<32x32xf32>
    %331 = tpu.matmul %329, %330, %cst_116 {dimension_numbers = #tpu.dot_dimension_numbers<[1], [0], [0], [1], [0, 0, 1, 1], [], []>} : vector<32x32xf32>, vector<32x32xf32>, vector<32x32xf32> -> vector<32x32xf32>
    %c784 = arith.constant 784 : index
    %c0_117 = arith.constant 0 : index
    %332 = vector.load %arg2[%c784, %c0_117] : memref<904x128xf32, #tpu.memory_space<vmem>>, vector<1x32xf32>
    %333 = vector.broadcast %332 : vector<1x32xf32> to vector<32x32xf32>
    %334 = arith.addf %331, %333 : vector<32x32xf32>
    %335 = math.tanh %334 : vector<32x32xf32>
    %336 = vector.shape_cast %335 : vector<32x32xf32> to vector<2x16x32xf32>
    %337 = vector.shape_cast %329 : vector<32x32xf32> to vector<2x16x32xf32>
    %c792 = arith.constant 792 : index
    %c0_118 = arith.constant 0 : index
    %338 = vector.load %arg2[%c792, %c0_118] : memref<904x128xf32, #tpu.memory_space<vmem>>, vector<1x32xf32>
    %339 = vector.shape_cast %338 : vector<1x32xf32> to vector<1x1x32xf32>
    %340 = vector.broadcast %339 : vector<1x1x32xf32> to vector<2x16x32xf32>
    %341 = arith.mulf %336, %340 : vector<2x16x32xf32>
    %cst_119 = arith.constant dense<0.000000e+00> : vector<2x16xf32>
    %342 = vector.multi_reduction <add>, %341, %cst_119 [2] : vector<2x16x32xf32> to vector<2x16xf32>
    %343 = vector.shape_cast %342 : vector<2x16xf32> to vector<2x16x1xf32>
    %cst_120 = arith.constant dense<0xFF800000> : vector<2x1xf32>
    %344 = vector.multi_reduction <maximumf>, %343, %cst_120 [1] : vector<2x16x1xf32> to vector<2x1xf32>
    %345 = vector.shape_cast %344 : vector<2x1xf32> to vector<2x1x1xf32>
    %346 = vector.broadcast %345 : vector<2x1x1xf32> to vector<2x16x1xf32>
    %347 = arith.subf %343, %346 : vector<2x16x1xf32>
    %348 = math.exp %347 : vector<2x16x1xf32>
    %cst_121 = arith.constant dense<0.000000e+00> : vector<2x1xf32>
    %349 = vector.multi_reduction <add>, %348, %cst_121 [1] : vector<2x16x1xf32> to vector<2x1xf32>
    %350 = vector.shape_cast %349 : vector<2x1xf32> to vector<2x1x1xf32>
    %351 = vector.broadcast %350 : vector<2x1x1xf32> to vector<2x16x1xf32>
    %352 = arith.divf %348, %351 : vector<2x16x1xf32>
    %353 = vector.broadcast %352 : vector<2x16x1xf32> to vector<2x16x32xf32>
    %354 = arith.mulf %337, %353 : vector<2x16x32xf32>
    %cst_122 = arith.constant dense<0.000000e+00> : vector<2x32xf32>
    %355 = vector.multi_reduction <add>, %354, %cst_122 [1] : vector<2x16x32xf32> to vector<2x32xf32>
    %c800 = arith.constant 800 : index
    %c0_123 = arith.constant 0 : index
    %356 = vector.load %arg2[%c800, %c0_123] : memref<904x128xf32, #tpu.memory_space<vmem>>, vector<32x24xf32>
    %cst_124 = arith.constant dense<0.000000e+00> : vector<2x24xf32>
    %357 = tpu.matmul %355, %356, %cst_124 {dimension_numbers = #tpu.dot_dimension_numbers<[1], [0], [0], [1], [0, 0, 1, 1], [], []>} : vector<2x32xf32>, vector<32x24xf32>, vector<2x24xf32> -> vector<2x24xf32>
    %c832 = arith.constant 832 : index
    %c0_125 = arith.constant 0 : index
    %358 = vector.load %arg2[%c832, %c0_125] : memref<904x128xf32, #tpu.memory_space<vmem>>, vector<1x24xf32>
    %359 = vector.broadcast %358 : vector<1x24xf32> to vector<2x24xf32>
    %360 = arith.addf %357, %359 : vector<2x24xf32>
    %cst_126 = arith.constant 0.000000e+00 : f32
    %361 = vector.broadcast %cst_126 : f32 to vector<2x24xf32>
    %362 = arith.maximumf %360, %361 : vector<2x24xf32>
    %c840 = arith.constant 840 : index
    %c0_127 = arith.constant 0 : index
    %363 = vector.load %arg2[%c840, %c0_127] : memref<904x128xf32, #tpu.memory_space<vmem>>, vector<24x128xf32>
    %cst_128 = arith.constant dense<0.000000e+00> : vector<2x128xf32>
    %364 = tpu.matmul %362, %363, %cst_128 {dimension_numbers = #tpu.dot_dimension_numbers<[1], [0], [0], [1], [0, 0, 1, 1], [], []>} : vector<2x24xf32>, vector<24x128xf32>, vector<2x128xf32> -> vector<2x128xf32>
    %c864 = arith.constant 864 : index
    %c0_129 = arith.constant 0 : index
    %365 = vector.load %arg2[%c864, %c0_129] : memref<904x128xf32, #tpu.memory_space<vmem>>, vector<1x128xf32>
    %366 = vector.broadcast %365 : vector<1x128xf32> to vector<2x128xf32>
    %367 = arith.addf %364, %366 : vector<2x128xf32>
    %c0_130 = arith.constant 0 : index
    %c0_131 = arith.constant 0 : index
    %368 = vector.load %arg3[%c0_130, %c0_131] : memref<2x128xf32, #tpu.memory_space<vmem>>, vector<2x128xf32>
    tpu.vector_store %arg3[%c0_130, %c0_131], %367 {strides = array<i32>} : memref<2x128xf32, #tpu.memory_space<vmem>>, vector<2x128xf32>,
    return
  }
  func.func @transform_0(%arg0: i32) -> (i32, i32) {
    %c0_i32 = arith.constant 0 : i32
    %c0_i32_0 = arith.constant 0 : i32
    %c0_i32_1 = arith.constant 0 : i32
    return %c0_i32, %c0_i32_0 : i32, i32
  }
  func.func @transform_1(%arg0: i32) -> (i32, i32) {
    %c0_i32 = arith.constant 0 : i32
    %c0_i32_0 = arith.constant 0 : i32
    %c0_i32_1 = arith.constant 0 : i32
    return %c0_i32, %c0_i32_0 : i32, i32
  }
  func.func @transform_2(%arg0: i32) -> (i32, i32) {
    %c0_i32 = arith.constant 0 : i32
    %c0_i32_0 = arith.constant 0 : i32
    %c0_i32_1 = arith.constant 0 : i32
    return %c0_i32, %c0_i32_0 : i32, i32
  }
}

</mosaic_0001>

<llo_original>
// kernel: tpu_custom_call.1
$region0: #{tpu_custom_call.1}
  #allocation0 [shape = 'u32[]', space=smem, size = 0x4, offset = 0x4, fixed_abs, tag = 'smem constant byte address 0x4 - core index']
  #allocation1 [shape = 'u32[72,128]{1,0:T(1,128)}', space=vmem, size = 0x9000, scoped, tag = 'internal scratch']
  %s0 = inlined_call_operand.vmem [shape: f32[32,4], index: 0, kind: input, shape index: {}]
  %s1 = inlined_call_operand.hbm [shape: f32[904,128], index: 1, kind: input, shape index: {}]
  %s2 = inlined_call_operand.hbm [shape: f32[2,128], index: 2, kind: output, shape index: {}]
  %s3 = sld [smem:[#allocation0]]
  $region22: #{tpu_custom_call.1} parent=0
    _
  %s5 = ssub.s32 1, %s3
  %s6 = scalar_select 0, %s5, %s3
  $region1: #{tpu_custom_call.1} parent=0
    #allocation2 [shape = 'u8[462848]{0}', space=vmem, size = 0x71000, scoped, tag = 'input window, operand 1, single buffered']
    #allocation3 [shape = 's32[1]{0}', space=sflag, size = 0x4, scoped, tag = 'scoped memory for tpu_custom_call.1']
    #allocation4 [shape = 's32[1]{0}', space=sflag, size = 0x4, scoped, tag = 'scoped memory for tpu_custom_call.1']
    #allocation5 [shape = 'u8[1024]{0}', space=vmem, size = 0x400, scoped, tag = 'output window, operand 0, single buffered']
    %7 = vsyncpa [#allocation3], 0
    %8 = vsyncpa [#allocation4], 0
    // Predicated region
    $region2: #{tpu_custom_call.1} parent=1 // pred_check
      _
    $region3: #{tpu_custom_call.1} parent=1 // pred_check_branch
      %10 = sbr.rel (0) target = $region5
    $region4: #{tpu_custom_call.1} parent=1 // pred_region
      _
    $region5: #{tpu_custom_call.1} parent=1 // pred_fallthru
      _
    // Predicated region
    $region6: #{tpu_custom_call.1} parent=1 // pred_check
      _
    $region7: #{tpu_custom_call.1} parent=1 // pred_check_branch
      %12 = sbr.rel (0) target = $region9
    $region8: #{tpu_custom_call.1} parent=1 // pred_region
      %14 = vsyncadd [#allocation3], 0
      %s15 = sshll.u32 %s1, 4
      %s16 = int_to_ptr.hbm [resolvable:$true] %s15
      %s17 = sshll.u32 [#allocation2], 4
      %s18 = int_to_ptr.vmem [resolvable:$true] %s17
      %23 = dma.hbm_to_vmem [thread:$0]  %s16, 14464, %s18, [#allocation3], 128, 128, 8
    $region9: #{tpu_custom_call.1} parent=1 // pred_fallthru
      _
    // Predicated region
    $region10: #{tpu_custom_call.1} parent=1 // pred_check
      _
    $region11: #{tpu_custom_call.1} parent=1 // pred_check_branch
      %25 = sbr.rel (0) target = $region13
    $region12: #{tpu_custom_call.1} parent=1 // pred_region
      %27 = dma.done [#allocation3], 14464
    $region13: #{tpu_custom_call.1} parent=1 // pred_fallthru
      _
    %v28 = vld [vmem:[%s0] sm:$0xff]
    %v29 = vld [vmem:[%s0 + $0x8] sm:$0xff]
    %v30 = vld [vmem:[%s0 + $0x10] sm:$0xff]
    %v31 = vld [vmem:[%s0 + $0x18] sm:$0xff]
    %v32 = vld [vmem:[#allocation2] sm:$0xf]
    %v33 = vld [vmem:[#allocation2 + $0x8] sm:$0x1]
    %v34 = vperm.slane %v33, 0
    %vm35 = vcmask 31744
    %v37 = vsel %vm35, %v28, 0
    %v40 = vsel %vm35, %v29, 0
    %v43 = vsel %vm35, %v30, 0
    %v46 = vsel %vm35, %v31, 0
    %vm48 = vcmask 1043456
    %v50 = vsel %vm48, %v32, 0
    %52 = vmatpush.msra.mxu0 0.0
    %53 = vmatpush.msra.mxu0 0.0
    %54 = vmatpush.msra.mxu0 0.0
    %55 = vmatpush.msra.mxu0 0.0
    %56 = vmatpush.msra.mxu0 0.0
    %57 = vmatpush.msra.mxu0 0.0
    %58 = vmatpush.msra.mxu0 0.0
    %59 = vmatpush.msra.mxu0 0.0
    %60 = vmatpush.msra.mxu0 0.0
    %61 = vmatpush.msra.mxu0 0.0
    %62 = vmatpush.msra.mxu0 0.0
    %63 = vmatpush.msra.mxu0 0.0
    %64 = vmatpush.msra.mxu0 0.0
    %65 = vmatpush.msra.mxu0 0.0
    %66 = vmatpush.msra.mxu0 0.0
    %67 = vmatpush.msra.mxu0 %v50
    %68 = vmatmul.f32.gmra.mxu0 %v37
    %v69 = vpop.f32.mrf.mxu0
    %v70 = vadd.f32 %v34, %v69
    %71 = vmatmul.f32.gmra.mxu0 %v40
    %v72 = vpop.f32.mrf.mxu0
    %v73 = vadd.f32 %v34, %v72
    %74 = vmatmul.f32.gmra.mxu0 %v43
    %v75 = vpop.f32.mrf.mxu0
    %v76 = vadd.f32 %v34, %v75
    %77 = vmatmul.f32.gmra.mxu0 %v46
    %v78 = vpop.f32.mrf.mxu0
    %v79 = vadd.f32 %v34, %v78
    %80 = vdwg.mxu0
    %v81 = vmax.f32 %v70, 0.0
    %v82 = vmax.f32 %v73, 0.0
    %v83 = vmax.f32 %v76, 0.0
    %v84 = vmax.f32 %v79, 0.0
    %v85 = vld [vmem:[#allocation2 + $0x368] sm:$0x1]
    %v86 = vld [vmem:[#allocation2 + $0x370] sm:$0x1]
    %v87 = vld [vmem:[#allocation2 + $0x378] sm:$0x1]
    %v88 = vld [vmem:[#allocation2 + $0x380] sm:$0x1]
    %v89 = vld [vmem:[#allocation2 + $0x10] sm:$0xff]
    %v90 = vld [vmem:[#allocation2 + $0x18] sm:$0xff]
    %v91 = vld [vmem:[#allocation2 + $0x20] sm:$0xff]
    %v92 = vld [vmem:[#allocation2 + $0x28] sm:$0xff]
    %v93 = vld [vmem:[#allocation2 + $0x90] sm:$0x1]
    %v94 = vperm.slane %v93, 0
    %vm95 = vcmask 261120
    %v97 = vsel %vm95, %v81, 0
    %v100 = vsel %vm95, %v82, 0
    %v103 = vsel %vm95, %v83, 0
    %v106 = vsel %vm95, %v84, 0
    %108 = vmatpush.msra.mxu0 0.0
    %109 = vmatpush.msra.mxu0 0.0
    %110 = vmatpush.msra.mxu0 0.0
    %111 = vmatpush.msra.mxu0 0.0
    %112 = vmatpush.msra.mxu0 0.0
    %113 = vmatpush.msra.mxu0 0.0
    %114 = vmatpush.msra.mxu0 0.0
    %115 = vmatpush.msra.mxu0 0.0
    %116 = vmatpush.msra.mxu0 0.0
    %117 = vmatpush.msra.mxu0 0.0
    %118 = vmatpush.msra.mxu0 0.0
    %119 = vmatpush.msra.mxu0 0.0
    %120 = vmatpush.msra.mxu0 %v92
    %121 = vmatpush.msra.mxu0 %v91
    %122 = vmatpush.msra.mxu0 %v90
    %123 = vmatpush.msra.mxu0 %v89
    %124 = vmatmul.f32.gmra.mxu0 %v97
    %v125 = vpop.f32.mrf.mxu0
    %v126 = vadd.f32 %v94, %v125
    %127 = vmatmul.f32.gmra.mxu0 %v100
    %v128 = vpop.f32.mrf.mxu0
    %v129 = vadd.f32 %v94, %v128
    %130 = vmatmul.f32.gmra.mxu0 %v103
    %v131 = vpop.f32.mrf.mxu0
    %v132 = vadd.f32 %v94, %v131
    %133 = vmatmul.f32.gmra.mxu0 %v106
    %v134 = vpop.f32.mrf.mxu0
    %v135 = vadd.f32 %v94, %v134
    %136 = vdwg.mxu0
    %v137 = vld [vmem:[#allocation2 + $0x30] sm:$0xff]
    %v138 = vld [vmem:[#allocation2 + $0x38] sm:$0xff]
    %v139 = vld [vmem:[#allocation2 + $0x40] sm:$0xff]
    %v140 = vld [vmem:[#allocation2 + $0x48] sm:$0xff]
    %v141 = vld [vmem:[#allocation2 + $0x98] sm:$0x1]
    %v142 = vperm.slane %v141, 0
    %143 = vmatpush.msra.mxu0 0.0
    %144 = vmatpush.msra.mxu0 0.0
    %145 = vmatpush.msra.mxu0 0.0
    %146 = vmatpush.msra.mxu0 0.0
    %147 = vmatpush.msra.mxu0 0.0
    %148 = vmatpush.msra.mxu0 0.0
    %149 = vmatpush.msra.mxu0 0.0
    %150 = vmatpush.msra.mxu0 0.0
    %151 = vmatpush.msra.mxu0 0.0
    %152 = vmatpush.msra.mxu0 0.0
    %153 = vmatpush.msra.mxu0 0.0
    %154 = vmatpush.msra.mxu0 0.0
    %155 = vmatpush.msra.mxu0 %v140
    %156 = vmatpush.msra.mxu0 %v139
    %157 = vmatpush.msra.mxu0 %v138
    %158 = vmatpush.msra.mxu0 %v137
    %159 = vmatmul.f32.gmra.mxu0 %v97
    %v160 = vpop.f32.mrf.mxu0
    %v161 = vadd.f32 %v142, %v160
    %162 = vmatmul.f32.gmra.mxu0 %v100
    %v163 = vpop.f32.mrf.mxu0
    %v164 = vadd.f32 %v142, %v163
    %165 = vmatmul.f32.gmra.mxu0 %v103
    %v166 = vpop.f32.mrf.mxu0
    %v167 = vadd.f32 %v142, %v166
    %168 = vmatmul.f32.gmra.mxu0 %v106
    %v169 = vpop.f32.mrf.mxu0
    %v170 = vadd.f32 %v142, %v169
    %171 = vdwg.mxu0
    %v172 = vld [vmem:[#allocation2 + $0x50] sm:$0xff]
    %v173 = vld [vmem:[#allocation2 + $0x58] sm:$0xff]
    %v174 = vld [vmem:[#allocation2 + $0x60] sm:$0xff]
    %v175 = vld [vmem:[#allocation2 + $0x68] sm:$0xff]
    %v176 = vld [vmem:[#allocation2 + $0xa0] sm:$0x1]
    %v177 = vperm.slane %v176, 0
    %178 = vmatpush.msra.mxu0 0.0
    %179 = vmatpush.msra.mxu0 0.0
    %180 = vmatpush.msra.mxu0 0.0
    %181 = vmatpush.msra.mxu0 0.0
    %182 = vmatpush.msra.mxu0 0.0
    %183 = vmatpush.msra.mxu0 0.0
    %184 = vmatpush.msra.mxu0 0.0
    %185 = vmatpush.msra.mxu0 0.0
    %186 = vmatpush.msra.mxu0 0.0
    %187 = vmatpush.msra.mxu0 0.0
    %188 = vmatpush.msra.mxu0 0.0
    %189 = vmatpush.msra.mxu0 0.0
    %190 = vmatpush.msra.mxu0 %v175
    %191 = vmatpush.msra.mxu0 %v174
    %192 = vmatpush.msra.mxu0 %v173
    %193 = vmatpush.msra.mxu0 %v172
    %194 = vmatmul.f32.gmra.mxu0 %v97
    %v195 = vpop.f32.mrf.mxu0
    %v196 = vadd.f32 %v177, %v195
    %197 = vmatmul.f32.gmra.mxu0 %v100
    %v198 = vpop.f32.mrf.mxu0
    %v199 = vadd.f32 %v177, %v198
    %200 = vmatmul.f32.gmra.mxu0 %v103
    %v201 = vpop.f32.mrf.mxu0
    %v202 = vadd.f32 %v177, %v201
    %203 = vmatmul.f32.gmra.mxu0 %v106
    %v204 = vpop.f32.mrf.mxu0
    %v205 = vadd.f32 %v177, %v204
    %206 = vdwg.mxu0
    %v207 = vperm.slane %v85, 0
    %v208 = vmul.f32 %v126, %v207
    %v209 = vmul.f32 %v129, %v207
    %v210 = vmul.f32 %v132, %v207
    %v211 = vmul.f32 %v135, %v207
    %v213 = vsel %vm95, %v208, 0
    %v216 = vsel %vm95, %v209, 0
    %v219 = vsel %vm95, %v161, 0
    %v222 = vsel %vm95, %v164, 0
    %224 = vmatpush.xpose.msra.mxu0 0.0
    %225 = vmatpush.xpose.msra.mxu0 0.0
    %226 = vmatpush.xpose.msra.mxu0 0.0
    %227 = vmatpush.xpose.msra.mxu0 0.0
    %228 = vmatpush.xpose.msra.mxu0 0.0
    %229 = vmatpush.xpose.msra.mxu0 0.0
    %230 = vmatpush.xpose.msra.mxu0 0.0
    %231 = vmatpush.xpose.msra.mxu0 0.0
    %232 = vmatpush.xpose.msra.mxu0 0.0
    %233 = vmatpush.xpose.msra.mxu0 0.0
    %234 = vmatpush.xpose.msra.mxu0 0.0
    %235 = vmatpush.xpose.msra.mxu0 0.0
    %236 = vmatpush.xpose.msra.mxu0 0.0
    %237 = vmatpush.xpose.msra.mxu0 0.0
    %238 = vmatpush.xpose.msra.mxu0 %v222
    %239 = vmatpush.xpose.msra.mxu0 %v219
    %240 = vmatmul.f32.gmra.mxu0 %v213
    %v241 = vpop.f32.mrf.mxu0
    %v242 = vadd.f32 0.0, %v241
    %243 = vmatmul.f32.gmra.mxu0 %v216
    %v244 = vpop.f32.mrf.mxu0
    %v245 = vadd.f32 0.0, %v244
    %246 = vdwg.mxu0
    %v248 = vsel %vm95, %v210, 0
    %v251 = vsel %vm95, %v211, 0
    %v254 = vsel %vm95, %v167, 0
    %v257 = vsel %vm95, %v170, 0
    %259 = vmatpush.xpose.msra.mxu0 0.0
    %260 = vmatpush.xpose.msra.mxu0 0.0
    %261 = vmatpush.xpose.msra.mxu0 0.0
    %262 = vmatpush.xpose.msra.mxu0 0.0
    %263 = vmatpush.xpose.msra.mxu0 0.0
    %264 = vmatpush.xpose.msra.mxu0 0.0
    %265 = vmatpush.xpose.msra.mxu0 0.0
    %266 = vmatpush.xpose.msra.mxu0 0.0
    %267 = vmatpush.xpose.msra.mxu0 0.0
    %268 = vmatpush.xpose.msra.mxu0 0.0
    %269 = vmatpush.xpose.msra.mxu0 0.0
    %270 = vmatpush.xpose.msra.mxu0 0.0
    %271 = vmatpush.xpose.msra.mxu0 0.0
    %272 = vmatpush.xpose.msra.mxu0 0.0
    %273 = vmatpush.xpose.msra.mxu0 %v257
    %274 = vmatpush.xpose.msra.mxu0 %v254
    %275 = vmatmul.f32.gmra.mxu0 %v248
    %v276 = vpop.f32.mrf.mxu0
    %v277 = vadd.f32 0.0, %v276
    %278 = vmatmul.f32.gmra.mxu0 %v251
    %v279 = vpop.f32.mrf.mxu0
    %v280 = vadd.f32 0.0, %v279
    %281 = vdwg.mxu0
    %v282 = vmul.f32 %v242, 0.35355338
    %v283 = vmul.f32 %v245, 0.35355338
    %v284 = vmul.f32 %v277, 0.35355338
    %v285 = vmul.f32 %v280, 0.35355338
    %vm286 = vcmask 130048
    %v287 = vsel %vm286, %v282, -inf
    %288 = vmax.xlane.f32.xlu0 %v287
    %v289 = vpop.xlane.xlu0 %288
    %v290 = vsel %vm286, %v283, -inf
    %291 = vmax.xlane.f32.xlu0 %v290
    %v292 = vpop.xlane.xlu0 %291
    %v293 = vsel %vm286, %v284, -inf
    %294 = vmax.xlane.f32.xlu0 %v293
    %v295 = vpop.xlane.xlu0 %294
    %v296 = vsel %vm286, %v285, -inf
    %297 = vmax.xlane.f32.xlu0 %v296
    %v298 = vpop.xlane.xlu0 %297
    %v299 = vsub.f32 %v282, %v289
    %v300 = vsub.f32 %v283, %v292
    %v301 = vsub.f32 %v284, %v295
    %v302 = vsub.f32 %v285, %v298
    %v303 = vmul.f32 %v299, 1.442695
    %v304 = vpow.pop %v303
    %v305 = vmul.f32 %v300, 1.442695
    %v306 = vpow.pop %v305
    %v307 = vmul.f32 %v301, 1.442695
    %v308 = vpow.pop %v307
    %v309 = vmul.f32 %v302, 1.442695
    %v310 = vpow.pop %v309
    %v311 = vsel %vm286, %v304, 0.0
    %312 = vadd.xlane.f32.xlu0 %v311
    %v313 = vpop.xlane.xlu0 %312
    %v314 = vsel %vm286, %v306, 0.0
    %315 = vadd.xlane.f32.xlu0 %v314
    %v316 = vpop.xlane.xlu0 %315
    %v317 = vsel %vm286, %v308, 0.0
    %318 = vadd.xlane.f32.xlu0 %v317
    %v319 = vpop.xlane.xlu0 %318
    %v320 = vsel %vm286, %v310, 0.0
    %321 = vadd.xlane.f32.xlu0 %v320
    %v322 = vpop.xlane.xlu0 %321
    %v323 = vrcp.pop %v313
    %v324 = vmul.f32 %v313, %v323
    %v325 = vsub.f32 1.0, %v324
    %v326 = vmul.f32 %v323, %v325
    %v327 = vadd.f32 %v323, %v326
    %vm328 = vweird.f32 %v313
    %vm329 = vweird.f32 %v323
    %vm330 = vmor %vm328, %vm329
    %v331 = vsel %vm330, %v323, %v327
    %v332 = vand.u32 2147483647, %v313
    %vm333 = vcmp.eq.f32.partialorder %v332, 8.507059e+37
    %v334 = vand.u32 %v313, 2147483648
    %v335 = vor.u32 1.1754944e-38, %v334
    %v336 = vsel %vm333, %v335, %v331
    %v337 = vmul.f32 %v304, %v336
    %v338 = vrcp.pop %v316
    %v339 = vmul.f32 %v316, %v338
    %v340 = vsub.f32 1.0, %v339
    %v341 = vmul.f32 %v338, %v340
    %v342 = vadd.f32 %v338, %v341
    %vm343 = vweird.f32 %v316
    %vm344 = vweird.f32 %v338
    %vm345 = vmor %vm343, %vm344
    %v346 = vsel %vm345, %v338, %v342
    %v347 = vand.u32 2147483647, %v316
    %vm348 = vcmp.eq.f32.partialorder %v347, 8.507059e+37
    %v349 = vand.u32 %v316, 2147483648
    %v350 = vor.u32 1.1754944e-38, %v349
    %v351 = vsel %vm348, %v350, %v346
    %v352 = vmul.f32 %v306, %v351
    %v353 = vrcp.pop %v319
    %v354 = vmul.f32 %v319, %v353
    %v355 = vsub.f32 1.0, %v354
    %v356 = vmul.f32 %v353, %v355
    %v357 = vadd.f32 %v353, %v356
    %vm358 = vweird.f32 %v319
    %vm359 = vweird.f32 %v353
    %vm360 = vmor %vm358, %vm359
    %v361 = vsel %vm360, %v353, %v357
    %v362 = vand.u32 2147483647, %v319
    %vm363 = vcmp.eq.f32.partialorder %v362, 8.507059e+37
    %v364 = vand.u32 %v319, 2147483648
    %v365 = vor.u32 1.1754944e-38, %v364
    %v366 = vsel %vm363, %v365, %v361
    %v367 = vmul.f32 %v308, %v366
    %v368 = vrcp.pop %v322
    %v369 = vmul.f32 %v322, %v368
    %v370 = vsub.f32 1.0, %v369
    %v371 = vmul.f32 %v368, %v370
    %v372 = vadd.f32 %v368, %v371
    %vm373 = vweird.f32 %v322
    %vm374 = vweird.f32 %v368
    %vm375 = vmor %vm373, %vm374
    %v376 = vsel %vm375, %v368, %v372
    %v377 = vand.u32 2147483647, %v322
    %vm378 = vcmp.eq.f32.partialorder %v377, 8.507059e+37
    %v379 = vand.u32 %v322, 2147483648
    %v380 = vor.u32 1.1754944e-38, %v379
    %v381 = vsel %vm378, %v380, %v376
    %v382 = vmul.f32 %v310, %v381
    %v383 = vmul.f32 %v196, %v207
    %v384 = vmul.f32 %v199, %v207
    %v385 = vmul.f32 %v202, %v207
    %v386 = vmul.f32 %v205, %v207
    %v387 = vperm.slane %v86, 0
    %v388 = vmul.f32 %v126, %v387
    %v389 = vmul.f32 %v129, %v387
    %v390 = vmul.f32 %v132, %v387
    %v391 = vmul.f32 %v135, %v387
    %v393 = vsel %vm95, %v388, 0
    %v396 = vsel %vm95, %v389, 0
    %398 = vmatpush.xpose.msra.mxu0 0.0
    %399 = vmatpush.xpose.msra.mxu0 0.0
    %400 = vmatpush.xpose.msra.mxu0 0.0
    %401 = vmatpush.xpose.msra.mxu0 0.0
    %402 = vmatpush.xpose.msra.mxu0 0.0
    %403 = vmatpush.xpose.msra.mxu0 0.0
    %404 = vmatpush.xpose.msra.mxu0 0.0
    %405 = vmatpush.xpose.msra.mxu0 0.0
    %406 = vmatpush.xpose.msra.mxu0 0.0
    %407 = vmatpush.xpose.msra.mxu0 0.0
    %408 = vmatpush.xpose.msra.mxu0 0.0
    %409 = vmatpush.xpose.msra.mxu0 0.0
    %410 = vmatpush.xpose.msra.mxu0 0.0
    %411 = vmatpush.xpose.msra.mxu0 0.0
    %412 = vmatpush.xpose.msra.mxu0 %v222
    %413 = vmatpush.xpose.msra.mxu0 %v219
    %414 = vmatmul.f32.gmra.mxu0 %v393
    %v415 = vpop.f32.mrf.mxu0
    %v416 = vadd.f32 0.0, %v415
    %417 = vmatmul.f32.gmra.mxu0 %v396
    %v418 = vpop.f32.mrf.mxu0
    %v419 = vadd.f32 0.0, %v418
    %420 = vdwg.mxu0
    %v422 = vsel %vm95, %v390, 0
    %v425 = vsel %vm95, %v391, 0
    %427 = vmatpush.xpose.msra.mxu0 0.0
    %428 = vmatpush.xpose.msra.mxu0 0.0
    %429 = vmatpush.xpose.msra.mxu0 0.0
    %430 = vmatpush.xpose.msra.mxu0 0.0
    %431 = vmatpush.xpose.msra.mxu0 0.0
    %432 = vmatpush.xpose.msra.mxu0 0.0
    %433 = vmatpush.xpose.msra.mxu0 0.0
    %434 = vmatpush.xpose.msra.mxu0 0.0
    %435 = vmatpush.xpose.msra.mxu0 0.0
    %436 = vmatpush.xpose.msra.mxu0 0.0
    %437 = vmatpush.xpose.msra.mxu0 0.0
    %438 = vmatpush.xpose.msra.mxu0 0.0
    %439 = vmatpush.xpose.msra.mxu0 0.0
    %440 = vmatpush.xpose.msra.mxu0 0.0
    %441 = vmatpush.xpose.msra.mxu0 %v257
    %442 = vmatpush.xpose.msra.mxu0 %v254
    %443 = vmatmul.f32.gmra.mxu0 %v422
    %v444 = vpop.f32.mrf.mxu0
    %v445 = vadd.f32 0.0, %v444
    %446 = vmatmul.f32.gmra.mxu0 %v425
    %v447 = vpop.f32.mrf.mxu0
    %v448 = vadd.f32 0.0, %v447
    %449 = vdwg.mxu0
    %v450 = vmul.f32 %v416, 0.35355338
    %v451 = vmul.f32 %v419, 0.35355338
    %v452 = vmul.f32 %v445, 0.35355338
    %v453 = vmul.f32 %v448, 0.35355338
    %v454 = vsel %vm286, %v450, -inf
    %455 = vmax.xlane.f32.xlu0 %v454
    %v456 = vpop.xlane.xlu0 %455
    %v457 = vsel %vm286, %v451, -inf
    %458 = vmax.xlane.f32.xlu0 %v457
    %v459 = vpop.xlane.xlu0 %458
    %v460 = vsel %vm286, %v452, -inf
    %461 = vmax.xlane.f32.xlu0 %v460
    %v462 = vpop.xlane.xlu0 %461
    %v463 = vsel %vm286, %v453, -inf
    %464 = vmax.xlane.f32.xlu0 %v463
    %v465 = vpop.xlane.xlu0 %464
    %v466 = vsub.f32 %v450, %v456
    %v467 = vsub.f32 %v451, %v459
    %v468 = vsub.f32 %v452, %v462
    %v469 = vsub.f32 %v453, %v465
    %v470 = vmul.f32 %v466, 1.442695
    %v471 = vpow.pop %v470
    %v472 = vmul.f32 %v467, 1.442695
    %v473 = vpow.pop %v472
    %v474 = vmul.f32 %v468, 1.442695
    %v475 = vpow.pop %v474
    %v476 = vmul.f32 %v469, 1.442695
    %v477 = vpow.pop %v476
    %v478 = vsel %vm286, %v471, 0.0
    %479 = vadd.xlane.f32.xlu0 %v478
    %v480 = vpop.xlane.xlu0 %479
    %v481 = vsel %vm286, %v473, 0.0
    %482 = vadd.xlane.f32.xlu0 %v481
    %v483 = vpop.xlane.xlu0 %482
    %v484 = vsel %vm286, %v475, 0.0
    %485 = vadd.xlane.f32.xlu0 %v484
    %v486 = vpop.xlane.xlu0 %485
    %v487 = vsel %vm286, %v477, 0.0
    %488 = vadd.xlane.f32.xlu0 %v487
    %v489 = vpop.xlane.xlu0 %488
    %v490 = vrcp.pop %v480
    %v491 = vmul.f32 %v480, %v490
    %v492 = vsub.f32 1.0, %v491
    %v493 = vmul.f32 %v490, %v492
    %v494 = vadd.f32 %v490, %v493
    %vm495 = vweird.f32 %v480
    %vm496 = vweird.f32 %v490
    %vm497 = vmor %vm495, %vm496
    %v498 = vsel %vm497, %v490, %v494
    %v499 = vand.u32 2147483647, %v480
    %vm500 = vcmp.eq.f32.partialorder %v499, 8.507059e+37
    %v501 = vand.u32 %v480, 2147483648
    %v502 = vor.u32 1.1754944e-38, %v501
    %v503 = vsel %vm500, %v502, %v498
    %v504 = vmul.f32 %v471, %v503
    %v505 = vrcp.pop %v483
    %v506 = vmul.f32 %v483, %v505
    %v507 = vsub.f32 1.0, %v506
    %v508 = vmul.f32 %v505, %v507
    %v509 = vadd.f32 %v505, %v508
    %vm510 = vweird.f32 %v483
    %vm511 = vweird.f32 %v505
    %vm512 = vmor %vm510, %vm511
    %v513 = vsel %vm512, %v505, %v509
    %v514 = vand.u32 2147483647, %v483
    %vm515 = vcmp.eq.f32.partialorder %v514, 8.507059e+37
    %v516 = vand.u32 %v483, 2147483648
    %v517 = vor.u32 1.1754944e-38, %v516
    %v518 = vsel %vm515, %v517, %v513
    %v519 = vmul.f32 %v473, %v518
    %v520 = vrcp.pop %v486
    %v521 = vmul.f32 %v486, %v520
    %v522 = vsub.f32 1.0, %v521
    %v523 = vmul.f32 %v520, %v522
    %v524 = vadd.f32 %v520, %v523
    %vm525 = vweird.f32 %v486
    %vm526 = vweird.f32 %v520
    %vm527 = vmor %vm525, %vm526
    %v528 = vsel %vm527, %v520, %v524
    %v529 = vand.u32 2147483647, %v486
    %vm530 = vcmp.eq.f32.partialorder %v529, 8.507059e+37
    %v531 = vand.u32 %v486, 2147483648
    %v532 = vor.u32 1.1754944e-38, %v531
    %v533 = vsel %vm530, %v532, %v528
    %v534 = vmul.f32 %v475, %v533
    %v535 = vrcp.pop %v489
    %v536 = vmul.f32 %v489, %v535
    %v537 = vsub.f32 1.0, %v536
    %v538 = vmul.f32 %v535, %v537
    %v539 = vadd.f32 %v535, %v538
    %vm540 = vweird.f32 %v489
    %vm541 = vweird.f32 %v535
    %vm542 = vmor %vm540, %vm541
    %v543 = vsel %vm542, %v535, %v539
    %v544 = vand.u32 2147483647, %v489
    %vm545 = vcmp.eq.f32.partialorder %v544, 8.507059e+37
    %v546 = vand.u32 %v489, 2147483648
    %v547 = vor.u32 1.1754944e-38, %v546
    %v548 = vsel %vm545, %v547, %v543
    %v549 = vmul.f32 %v477, %v548
    %v550 = vmul.f32 %v196, %v387
    %v551 = vmul.f32 %v199, %v387
    %v552 = vmul.f32 %v202, %v387
    %v553 = vmul.f32 %v205, %v387
    %v555 = vsel %vm286, %v504, 0
    %v558 = vsel %vm286, %v519, 0
    %560 = vmatpush.msra.mxu0 0.0
    %561 = vmatpush.msra.mxu0 0.0
    %562 = vmatpush.msra.mxu0 0.0
    %563 = vmatpush.msra.mxu0 0.0
    %564 = vmatpush.msra.mxu0 0.0
    %565 = vmatpush.msra.mxu0 0.0
    %566 = vmatpush.msra.mxu0 0.0
    %567 = vmatpush.msra.mxu0 0.0
    %568 = vmatpush.msra.mxu0 0.0
    %569 = vmatpush.msra.mxu0 0.0
    %570 = vmatpush.msra.mxu0 0.0
    %571 = vmatpush.msra.mxu0 0.0
    %572 = vmatpush.msra.mxu0 0.0
    %573 = vmatpush.msra.mxu0 0.0
    %574 = vmatpush.msra.mxu0 %v551
    %575 = vmatpush.msra.mxu0 %v550
    %576 = vmatmul.f32.gmra.mxu0 %v555
    %v577 = vpop.f32.mrf.mxu0
    %v578 = vadd.f32 0.0, %v577
    %579 = vmatmul.f32.gmra.mxu0 %v558
    %v580 = vpop.f32.mrf.mxu0
    %v581 = vadd.f32 0.0, %v580
    %582 = vdwg.mxu0
    %v584 = vsel %vm286, %v534, 0
    %v587 = vsel %vm286, %v549, 0
    %589 = vmatpush.msra.mxu0 0.0
    %590 = vmatpush.msra.mxu0 0.0
    %591 = vmatpush.msra.mxu0 0.0
    %592 = vmatpush.msra.mxu0 0.0
    %593 = vmatpush.msra.mxu0 0.0
    %594 = vmatpush.msra.mxu0 0.0
    %595 = vmatpush.msra.mxu0 0.0
    %596 = vmatpush.msra.mxu0 0.0
    %597 = vmatpush.msra.mxu0 0.0
    %598 = vmatpush.msra.mxu0 0.0
    %599 = vmatpush.msra.mxu0 0.0
    %600 = vmatpush.msra.mxu0 0.0
    %601 = vmatpush.msra.mxu0 0.0
    %602 = vmatpush.msra.mxu0 0.0
    %603 = vmatpush.msra.mxu0 %v553
    %604 = vmatpush.msra.mxu0 %v552
    %605 = vmatmul.f32.gmra.mxu0 %v584
    %v606 = vpop.f32.mrf.mxu0
    %v607 = vadd.f32 0.0, %v606
    %608 = vmatmul.f32.gmra.mxu0 %v587
    %v609 = vpop.f32.mrf.mxu0
    %v610 = vadd.f32 0.0, %v609
    %611 = vdwg.mxu0
    %v613 = vsel %vm286, %v337, 0
    %v616 = vsel %vm286, %v352, 0
    %618 = vmatpush.msra.mxu0 0.0
    %619 = vmatpush.msra.mxu0 0.0
    %620 = vmatpush.msra.mxu0 0.0
    %621 = vmatpush.msra.mxu0 0.0
    %622 = vmatpush.msra.mxu0 0.0
    %623 = vmatpush.msra.mxu0 0.0
    %624 = vmatpush.msra.mxu0 0.0
    %625 = vmatpush.msra.mxu0 0.0
    %626 = vmatpush.msra.mxu0 0.0
    %627 = vmatpush.msra.mxu0 0.0
    %628 = vmatpush.msra.mxu0 0.0
    %629 = vmatpush.msra.mxu0 0.0
    %630 = vmatpush.msra.mxu0 0.0
    %631 = vmatpush.msra.mxu0 0.0
    %632 = vmatpush.msra.mxu0 %v384
    %633 = vmatpush.msra.mxu0 %v383
    %634 = vmatmul.f32.gmra.mxu0 %v613
    %v635 = vpop.f32.mrf.mxu0
    %v636 = vadd.f32 %v578, %v635
    %637 = vmatmul.f32.gmra.mxu0 %v616
    %v638 = vpop.f32.mrf.mxu0
    %v639 = vadd.f32 %v581, %v638
    %640 = vdwg.mxu0
    %v642 = vsel %vm286, %v367, 0
    %v645 = vsel %vm286, %v382, 0
    %647 = vmatpush.msra.mxu0 0.0
    %648 = vmatpush.msra.mxu0 0.0
    %649 = vmatpush.msra.mxu0 0.0
    %650 = vmatpush.msra.mxu0 0.0
    %651 = vmatpush.msra.mxu0 0.0
    %652 = vmatpush.msra.mxu0 0.0
    %653 = vmatpush.msra.mxu0 0.0
    %654 = vmatpush.msra.mxu0 0.0
    %655 = vmatpush.msra.mxu0 0.0
    %656 = vmatpush.msra.mxu0 0.0
    %657 = vmatpush.msra.mxu0 0.0
    %658 = vmatpush.msra.mxu0 0.0
    %659 = vmatpush.msra.mxu0 0.0
    %660 = vmatpush.msra.mxu0 0.0
    %661 = vmatpush.msra.mxu0 %v386
    %662 = vmatpush.msra.mxu0 %v385
    %663 = vmatmul.f32.gmra.mxu0 %v642
    %v664 = vpop.f32.mrf.mxu0
    %v665 = vadd.f32 %v607, %v664
    %666 = vmatmul.f32.gmra.mxu0 %v645
    %v667 = vpop.f32.mrf.mxu0
    %v668 = vadd.f32 %v610, %v667
    %669 = vdwg.mxu0
    %v670 = vperm.slane %v87, 0
    %v671 = vmul.f32 %v126, %v670
    %v672 = vmul.f32 %v129, %v670
    %v673 = vmul.f32 %v132, %v670
    %v674 = vmul.f32 %v135, %v670
    %v676 = vsel %vm95, %v671, 0
    %v679 = vsel %vm95, %v672, 0
    %681 = vmatpush.xpose.msra.mxu0 0.0
    %682 = vmatpush.xpose.msra.mxu0 0.0
    %683 = vmatpush.xpose.msra.mxu0 0.0
    %684 = vmatpush.xpose.msra.mxu0 0.0
    %685 = vmatpush.xpose.msra.mxu0 0.0
    %686 = vmatpush.xpose.msra.mxu0 0.0
    %687 = vmatpush.xpose.msra.mxu0 0.0
    %688 = vmatpush.xpose.msra.mxu0 0.0
    %689 = vmatpush.xpose.msra.mxu0 0.0
    %690 = vmatpush.xpose.msra.mxu0 0.0
    %691 = vmatpush.xpose.msra.mxu0 0.0
    %692 = vmatpush.xpose.msra.mxu0 0.0
    %693 = vmatpush.xpose.msra.mxu0 0.0
    %694 = vmatpush.xpose.msra.mxu0 0.0
    %695 = vmatpush.xpose.msra.mxu0 %v222
    %696 = vmatpush.xpose.msra.mxu0 %v219
    %697 = vmatmul.f32.gmra.mxu0 %v676
    %v698 = vpop.f32.mrf.mxu0
    %v699 = vadd.f32 0.0, %v698
    %700 = vmatmul.f32.gmra.mxu0 %v679
    %v701 = vpop.f32.mrf.mxu0
    %v702 = vadd.f32 0.0, %v701
    %703 = vdwg.mxu0
    %v705 = vsel %vm95, %v673, 0
    %v708 = vsel %vm95, %v674, 0
    %710 = vmatpush.xpose.msra.mxu0 0.0
    %711 = vmatpush.xpose.msra.mxu0 0.0
    %712 = vmatpush.xpose.msra.mxu0 0.0
    %713 = vmatpush.xpose.msra.mxu0 0.0
    %714 = vmatpush.xpose.msra.mxu0 0.0
    %715 = vmatpush.xpose.msra.mxu0 0.0
    %716 = vmatpush.xpose.msra.mxu0 0.0
    %717 = vmatpush.xpose.msra.mxu0 0.0
    %718 = vmatpush.xpose.msra.mxu0 0.0
    %719 = vmatpush.xpose.msra.mxu0 0.0
    %720 = vmatpush.xpose.msra.mxu0 0.0
    %721 = vmatpush.xpose.msra.mxu0 0.0
    %722 = vmatpush.xpose.msra.mxu0 0.0
    %723 = vmatpush.xpose.msra.mxu0 0.0
    %724 = vmatpush.xpose.msra.mxu0 %v257
    %725 = vmatpush.xpose.msra.mxu0 %v254
    %726 = vmatmul.f32.gmra.mxu0 %v705
    %v727 = vpop.f32.mrf.mxu0
    %v728 = vadd.f32 0.0, %v727
    %729 = vmatmul.f32.gmra.mxu0 %v708
    %v730 = vpop.f32.mrf.mxu0
    %v731 = vadd.f32 0.0, %v730
    %732 = vdwg.mxu0
    %v733 = vmul.f32 %v699, 0.35355338
    %v734 = vmul.f32 %v702, 0.35355338
    %v735 = vmul.f32 %v728, 0.35355338
    %v736 = vmul.f32 %v731, 0.35355338
    %v737 = vsel %vm286, %v733, -inf
    %738 = vmax.xlane.f32.xlu0 %v737
    %v739 = vpop.xlane.xlu0 %738
    %v740 = vsel %vm286, %v734, -inf
    %741 = vmax.xlane.f32.xlu0 %v740
    %v742 = vpop.xlane.xlu0 %741
    %v743 = vsel %vm286, %v735, -inf
    %744 = vmax.xlane.f32.xlu0 %v743
    %v745 = vpop.xlane.xlu0 %744
    %v746 = vsel %vm286, %v736, -inf
    %747 = vmax.xlane.f32.xlu0 %v746
    %v748 = vpop.xlane.xlu0 %747
    %v749 = vsub.f32 %v733, %v739
    %v750 = vsub.f32 %v734, %v742
    %v751 = vsub.f32 %v735, %v745
    %v752 = vsub.f32 %v736, %v748
    %v753 = vmul.f32 %v749, 1.442695
    %v754 = vpow.pop %v753
    %v755 = vmul.f32 %v750, 1.442695
    %v756 = vpow.pop %v755
    %v757 = vmul.f32 %v751, 1.442695
    %v758 = vpow.pop %v757
    %v759 = vmul.f32 %v752, 1.442695
    %v760 = vpow.pop %v759
    %v761 = vsel %vm286, %v754, 0.0
    %762 = vadd.xlane.f32.xlu0 %v761
    %v763 = vpop.xlane.xlu0 %762
    %v764 = vsel %vm286, %v756, 0.0
    %765 = vadd.xlane.f32.xlu0 %v764
    %v766 = vpop.xlane.xlu0 %765
    %v767 = vsel %vm286, %v758, 0.0
    %768 = vadd.xlane.f32.xlu0 %v767
    %v769 = vpop.xlane.xlu0 %768
    %v770 = vsel %vm286, %v760, 0.0
    %771 = vadd.xlane.f32.xlu0 %v770
    %v772 = vpop.xlane.xlu0 %771
    %v773 = vrcp.pop %v763
    %v774 = vmul.f32 %v763, %v773
    %v775 = vsub.f32 1.0, %v774
    %v776 = vmul.f32 %v773, %v775
    %v777 = vadd.f32 %v773, %v776
    %vm778 = vweird.f32 %v763
    %vm779 = vweird.f32 %v773
    %vm780 = vmor %vm778, %vm779
    %v781 = vsel %vm780, %v773, %v777
    %v782 = vand.u32 2147483647, %v763
    %vm783 = vcmp.eq.f32.partialorder %v782, 8.507059e+37
    %v784 = vand.u32 %v763, 2147483648
    %v785 = vor.u32 1.1754944e-38, %v784
    %v786 = vsel %vm783, %v785, %v781
    %v787 = vmul.f32 %v754, %v786
    %v788 = vrcp.pop %v766
    %v789 = vmul.f32 %v766, %v788
    %v790 = vsub.f32 1.0, %v789
    %v791 = vmul.f32 %v788, %v790
    %v792 = vadd.f32 %v788, %v791
    %vm793 = vweird.f32 %v766
    %vm794 = vweird.f32 %v788
    %vm795 = vmor %vm793, %vm794
    %v796 = vsel %vm795, %v788, %v792
    %v797 = vand.u32 2147483647, %v766
    %vm798 = vcmp.eq.f32.partialorder %v797, 8.507059e+37
    %v799 = vand.u32 %v766, 2147483648
    %v800 = vor.u32 1.1754944e-38, %v799
    %v801 = vsel %vm798, %v800, %v796
    %v802 = vmul.f32 %v756, %v801
    %v803 = vrcp.pop %v769
    %v804 = vmul.f32 %v769, %v803
    %v805 = vsub.f32 1.0, %v804
    %v806 = vmul.f32 %v803, %v805
    %v807 = vadd.f32 %v803, %v806
    %vm808 = vweird.f32 %v769
    %vm809 = vweird.f32 %v803
    %vm810 = vmor %vm808, %vm809
    %v811 = vsel %vm810, %v803, %v807
    %v812 = vand.u32 2147483647, %v769
    %vm813 = vcmp.eq.f32.partialorder %v812, 8.507059e+37
    %v814 = vand.u32 %v769, 2147483648
    %v815 = vor.u32 1.1754944e-38, %v814
    %v816 = vsel %vm813, %v815, %v811
    %v817 = vmul.f32 %v758, %v816
    %v818 = vrcp.pop %v772
    %v819 = vmul.f32 %v772, %v818
    %v820 = vsub.f32 1.0, %v819
    %v821 = vmul.f32 %v818, %v820
    %v822 = vadd.f32 %v818, %v821
    %vm823 = vweird.f32 %v772
    %vm824 = vweird.f32 %v818
    %vm825 = vmor %vm823, %vm824
    %v826 = vsel %vm825, %v818, %v822
    %v827 = vand.u32 2147483647, %v772
    %vm828 = vcmp.eq.f32.partialorder %v827, 8.507059e+37
    %v829 = vand.u32 %v772, 2147483648
    %v830 = vor.u32 1.1754944e-38, %v829
    %v831 = vsel %vm828, %v830, %v826
    %v832 = vmul.f32 %v760, %v831
    %v833 = vmul.f32 %v196, %v670
    %v834 = vmul.f32 %v199, %v670
    %v835 = vmul.f32 %v202, %v670
    %v836 = vmul.f32 %v205, %v670
    %v838 = vsel %vm286, %v787, 0
    %v841 = vsel %vm286, %v802, 0
    %843 = vmatpush.msra.mxu0 0.0
    %844 = vmatpush.msra.mxu0 0.0
    %845 = vmatpush.msra.mxu0 0.0
    %846 = vmatpush.msra.mxu0 0.0
    %847 = vmatpush.msra.mxu0 0.0
    %848 = vmatpush.msra.mxu0 0.0
    %849 = vmatpush.msra.mxu0 0.0
    %850 = vmatpush.msra.mxu0 0.0
    %851 = vmatpush.msra.mxu0 0.0
    %852 = vmatpush.msra.mxu0 0.0
    %853 = vmatpush.msra.mxu0 0.0
    %854 = vmatpush.msra.mxu0 0.0
    %855 = vmatpush.msra.mxu0 0.0
    %856 = vmatpush.msra.mxu0 0.0
    %857 = vmatpush.msra.mxu0 %v834
    %858 = vmatpush.msra.mxu0 %v833
    %859 = vmatmul.f32.gmra.mxu0 %v838
    %v860 = vpop.f32.mrf.mxu0
    %v861 = vadd.f32 0.0, %v860
    %862 = vmatmul.f32.gmra.mxu0 %v841
    %v863 = vpop.f32.mrf.mxu0
    %v864 = vadd.f32 0.0, %v863
    %865 = vdwg.mxu0
    %v867 = vsel %vm286, %v817, 0
    %v870 = vsel %vm286, %v832, 0
    %872 = vmatpush.msra.mxu0 0.0
    %873 = vmatpush.msra.mxu0 0.0
    %874 = vmatpush.msra.mxu0 0.0
    %875 = vmatpush.msra.mxu0 0.0
    %876 = vmatpush.msra.mxu0 0.0
    %877 = vmatpush.msra.mxu0 0.0
    %878 = vmatpush.msra.mxu0 0.0
    %879 = vmatpush.msra.mxu0 0.0
    %880 = vmatpush.msra.mxu0 0.0
    %881 = vmatpush.msra.mxu0 0.0
    %882 = vmatpush.msra.mxu0 0.0
    %883 = vmatpush.msra.mxu0 0.0
    %884 = vmatpush.msra.mxu0 0.0
    %885 = vmatpush.msra.mxu0 0.0
    %886 = vmatpush.msra.mxu0 %v836
    %887 = vmatpush.msra.mxu0 %v835
    %888 = vmatmul.f32.gmra.mxu0 %v867
    %v889 = vpop.f32.mrf.mxu0
    %v890 = vadd.f32 0.0, %v889
    %891 = vmatmul.f32.gmra.mxu0 %v870
    %v892 = vpop.f32.mrf.mxu0
    %v893 = vadd.f32 0.0, %v892
    %894 = vdwg.mxu0
    %v895 = vadd.f32 %v636, %v861
    %v896 = vadd.f32 %v639, %v864
    %v897 = vadd.f32 %v665, %v890
    %v898 = vadd.f32 %v668, %v893
    %v899 = vperm.slane %v88, 0
    %v900 = vmul.f32 %v126, %v899
    %v901 = vmul.f32 %v129, %v899
    %v902 = vmul.f32 %v132, %v899
    %v903 = vmul.f32 %v135, %v899
    %v905 = vsel %vm95, %v900, 0
    %v908 = vsel %vm95, %v901, 0
    %910 = vmatpush.xpose.msra.mxu0 0.0
    %911 = vmatpush.xpose.msra.mxu0 0.0
    %912 = vmatpush.xpose.msra.mxu0 0.0
    %913 = vmatpush.xpose.msra.mxu0 0.0
    %914 = vmatpush.xpose.msra.mxu0 0.0
    %915 = vmatpush.xpose.msra.mxu0 0.0
    %916 = vmatpush.xpose.msra.mxu0 0.0
    %917 = vmatpush.xpose.msra.mxu0 0.0
    %918 = vmatpush.xpose.msra.mxu0 0.0
    %919 = vmatpush.xpose.msra.mxu0 0.0
    %920 = vmatpush.xpose.msra.mxu0 0.0
    %921 = vmatpush.xpose.msra.mxu0 0.0
    %922 = vmatpush.xpose.msra.mxu0 0.0
    %923 = vmatpush.xpose.msra.mxu0 0.0
    %924 = vmatpush.xpose.msra.mxu0 %v222
    %925 = vmatpush.xpose.msra.mxu0 %v219
    %926 = vmatmul.f32.gmra.mxu0 %v905
    %v927 = vpop.f32.mrf.mxu0
    %v928 = vadd.f32 0.0, %v927
    %929 = vmatmul.f32.gmra.mxu0 %v908
    %v930 = vpop.f32.mrf.mxu0
    %v931 = vadd.f32 0.0, %v930
    %932 = vdwg.mxu0
    %v934 = vsel %vm95, %v902, 0
    %v937 = vsel %vm95, %v903, 0
    %939 = vmatpush.xpose.msra.mxu0 0.0
    %940 = vmatpush.xpose.msra.mxu0 0.0
    %941 = vmatpush.xpose.msra.mxu0 0.0
    %942 = vmatpush.xpose.msra.mxu0 0.0
    %943 = vmatpush.xpose.msra.mxu0 0.0
    %944 = vmatpush.xpose.msra.mxu0 0.0
    %945 = vmatpush.xpose.msra.mxu0 0.0
    %946 = vmatpush.xpose.msra.mxu0 0.0
    %947 = vmatpush.xpose.msra.mxu0 0.0
    %948 = vmatpush.xpose.msra.mxu0 0.0
    %949 = vmatpush.xpose.msra.mxu0 0.0
    %950 = vmatpush.xpose.msra.mxu0 0.0
    %951 = vmatpush.xpose.msra.mxu0 0.0
    %952 = vmatpush.xpose.msra.mxu0 0.0
    %953 = vmatpush.xpose.msra.mxu0 %v257
    %954 = vmatpush.xpose.msra.mxu0 %v254
    %955 = vmatmul.f32.gmra.mxu0 %v934
    %v956 = vpop.f32.mrf.mxu0
    %v957 = vadd.f32 0.0, %v956
    %958 = vmatmul.f32.gmra.mxu0 %v937
    %v959 = vpop.f32.mrf.mxu0
    %v960 = vadd.f32 0.0, %v959
    %961 = vdwg.mxu0
    %v962 = vmul.f32 %v928, 0.35355338
    %v963 = vmul.f32 %v931, 0.35355338
    %v964 = vmul.f32 %v957, 0.35355338
    %v965 = vmul.f32 %v960, 0.35355338
    %v966 = vsel %vm286, %v962, -inf
    %967 = vmax.xlane.f32.xlu0 %v966
    %v968 = vpop.xlane.xlu0 %967
    %v969 = vsel %vm286, %v963, -inf
    %970 = vmax.xlane.f32.xlu0 %v969
    %v971 = vpop.xlane.xlu0 %970
    %v972 = vsel %vm286, %v964, -inf
    %973 = vmax.xlane.f32.xlu0 %v972
    %v974 = vpop.xlane.xlu0 %973
    %v975 = vsel %vm286, %v965, -inf
    %976 = vmax.xlane.f32.xlu0 %v975
    %v977 = vpop.xlane.xlu0 %976
    %v978 = vsub.f32 %v962, %v968
    %v979 = vsub.f32 %v963, %v971
    %v980 = vsub.f32 %v964, %v974
    %v981 = vsub.f32 %v965, %v977
    %v982 = vmul.f32 %v978, 1.442695
    %v983 = vpow.pop %v982
    %v984 = vmul.f32 %v979, 1.442695
    %v985 = vpow.pop %v984
    %v986 = vmul.f32 %v980, 1.442695
    %v987 = vpow.pop %v986
    %v988 = vmul.f32 %v981, 1.442695
    %v989 = vpow.pop %v988
    %v990 = vsel %vm286, %v983, 0.0
    %991 = vadd.xlane.f32.xlu0 %v990
    %v992 = vpop.xlane.xlu0 %991
    %v993 = vsel %vm286, %v985, 0.0
    %994 = vadd.xlane.f32.xlu0 %v993
    %v995 = vpop.xlane.xlu0 %994
    %v996 = vsel %vm286, %v987, 0.0
    %997 = vadd.xlane.f32.xlu0 %v996
    %v998 = vpop.xlane.xlu0 %997
    %v999 = vsel %vm286, %v989, 0.0
    %1000 = vadd.xlane.f32.xlu0 %v999
    %v1001 = vpop.xlane.xlu0 %1000
    %v1002 = vrcp.pop %v992
    %v1003 = vmul.f32 %v992, %v1002
    %v1004 = vsub.f32 1.0, %v1003
    %v1005 = vmul.f32 %v1002, %v1004
    %v1006 = vadd.f32 %v1002, %v1005
    %vm1007 = vweird.f32 %v992
    %vm1008 = vweird.f32 %v1002
    %vm1009 = vmor %vm1007, %vm1008
    %v1010 = vsel %vm1009, %v1002, %v1006
    %v1011 = vand.u32 2147483647, %v992
    %vm1012 = vcmp.eq.f32.partialorder %v1011, 8.507059e+37
    %v1013 = vand.u32 %v992, 2147483648
    %v1014 = vor.u32 1.1754944e-38, %v1013
    %v1015 = vsel %vm1012, %v1014, %v1010
    %v1016 = vmul.f32 %v983, %v1015
    %v1017 = vrcp.pop %v995
    %v1018 = vmul.f32 %v995, %v1017
    %v1019 = vsub.f32 1.0, %v1018
    %v1020 = vmul.f32 %v1017, %v1019
    %v1021 = vadd.f32 %v1017, %v1020
    %vm1022 = vweird.f32 %v995
    %vm1023 = vweird.f32 %v1017
    %vm1024 = vmor %vm1022, %vm1023
    %v1025 = vsel %vm1024, %v1017, %v1021
    %v1026 = vand.u32 2147483647, %v995
    %vm1027 = vcmp.eq.f32.partialorder %v1026, 8.507059e+37
    %v1028 = vand.u32 %v995, 2147483648
    %v1029 = vor.u32 1.1754944e-38, %v1028
    %v1030 = vsel %vm1027, %v1029, %v1025
    %v1031 = vmul.f32 %v985, %v1030
    %v1032 = vrcp.pop %v998
    %v1033 = vmul.f32 %v998, %v1032
    %v1034 = vsub.f32 1.0, %v1033
    %v1035 = vmul.f32 %v1032, %v1034
    %v1036 = vadd.f32 %v1032, %v1035
    %vm1037 = vweird.f32 %v998
    %vm1038 = vweird.f32 %v1032
    %vm1039 = vmor %vm1037, %vm1038
    %v1040 = vsel %vm1039, %v1032, %v1036
    %v1041 = vand.u32 2147483647, %v998
    %vm1042 = vcmp.eq.f32.partialorder %v1041, 8.507059e+37
    %v1043 = vand.u32 %v998, 2147483648
    %v1044 = vor.u32 1.1754944e-38, %v1043
    %v1045 = vsel %vm1042, %v1044, %v1040
    %v1046 = vmul.f32 %v987, %v1045
    %v1047 = vrcp.pop %v1001
    %v1048 = vmul.f32 %v1001, %v1047
    %v1049 = vsub.f32 1.0, %v1048
    %v1050 = vmul.f32 %v1047, %v1049
    %v1051 = vadd.f32 %v1047, %v1050
    %vm1052 = vweird.f32 %v1001
    %vm1053 = vweird.f32 %v1047
    %vm1054 = vmor %vm1052, %vm1053
    %v1055 = vsel %vm1054, %v1047, %v1051
    %v1056 = vand.u32 2147483647, %v1001
    %vm1057 = vcmp.eq.f32.partialorder %v1056, 8.507059e+37
    %v1058 = vand.u32 %v1001, 2147483648
    %v1059 = vor.u32 1.1754944e-38, %v1058
    %v1060 = vsel %vm1057, %v1059, %v1055
    %v1061 = vmul.f32 %v989, %v1060
    %v1062 = vmul.f32 %v196, %v899
    %v1063 = vmul.f32 %v199, %v899
    %v1064 = vmul.f32 %v202, %v899
    %v1065 = vmul.f32 %v205, %v899
    %v1067 = vsel %vm286, %v1016, 0
    %v1070 = vsel %vm286, %v1031, 0
    %1072 = vmatpush.msra.mxu0 0.0
    %1073 = vmatpush.msra.mxu0 0.0
    %1074 = vmatpush.msra.mxu0 0.0
    %1075 = vmatpush.msra.mxu0 0.0
    %1076 = vmatpush.msra.mxu0 0.0
    %1077 = vmatpush.msra.mxu0 0.0
    %1078 = vmatpush.msra.mxu0 0.0
    %1079 = vmatpush.msra.mxu0 0.0
    %1080 = vmatpush.msra.mxu0 0.0
    %1081 = vmatpush.msra.mxu0 0.0
    %1082 = vmatpush.msra.mxu0 0.0
    %1083 = vmatpush.msra.mxu0 0.0
    %1084 = vmatpush.msra.mxu0 0.0
    %1085 = vmatpush.msra.mxu0 0.0
    %1086 = vmatpush.msra.mxu0 %v1063
    %1087 = vmatpush.msra.mxu0 %v1062
    %1088 = vmatmul.f32.gmra.mxu0 %v1067
    %v1089 = vpop.f32.mrf.mxu0
    %v1090 = vadd.f32 0.0, %v1089
    %1091 = vmatmul.f32.gmra.mxu0 %v1070
    %v1092 = vpop.f32.mrf.mxu0
    %v1093 = vadd.f32 0.0, %v1092
    %1094 = vdwg.mxu0
    %v1096 = vsel %vm286, %v1046, 0
    %v1099 = vsel %vm286, %v1061, 0
    %1101 = vmatpush.msra.mxu0 0.0
    %1102 = vmatpush.msra.mxu0 0.0
    %1103 = vmatpush.msra.mxu0 0.0
    %1104 = vmatpush.msra.mxu0 0.0
    %1105 = vmatpush.msra.mxu0 0.0
    %1106 = vmatpush.msra.mxu0 0.0
    %1107 = vmatpush.msra.mxu0 0.0
    %1108 = vmatpush.msra.mxu0 0.0
    %1109 = vmatpush.msra.mxu0 0.0
    %1110 = vmatpush.msra.mxu0 0.0
    %1111 = vmatpush.msra.mxu0 0.0
    %1112 = vmatpush.msra.mxu0 0.0
    %1113 = vmatpush.msra.mxu0 0.0
    %1114 = vmatpush.msra.mxu0 0.0
    %1115 = vmatpush.msra.mxu0 %v1065
    %1116 = vmatpush.msra.mxu0 %v1064
    %1117 = vmatmul.f32.gmra.mxu0 %v1096
    %v1118 = vpop.f32.mrf.mxu0
    %v1119 = vadd.f32 0.0, %v1118
    %1120 = vmatmul.f32.gmra.mxu0 %v1099
    %v1121 = vpop.f32.mrf.mxu0
    %v1122 = vadd.f32 0.0, %v1121
    %1123 = vdwg.mxu0
    %v1124 = vadd.f32 %v895, %v1090
    %v1125 = vadd.f32 %v896, %v1093
    %v1126 = vadd.f32 %v897, %v1119
    %v1127 = vadd.f32 %v898, %v1122
    %v1128 = vld [vmem:[#allocation2 + $0x70] sm:$0xff]
    %v1129 = vld [vmem:[#allocation2 + $0x78] sm:$0xff]
    %v1130 = vld [vmem:[#allocation2 + $0x80] sm:$0xff]
    %v1131 = vld [vmem:[#allocation2 + $0x88] sm:$0xff]
    %v1132 = vld [vmem:[#allocation2 + $0xa8] sm:$0x1]
    %v1133 = vperm.slane %v1132, 0
    %v1135 = vsel %vm95, %v1124, 0
    %v1138 = vsel %vm95, %v1125, 0
    %v1141 = vsel %vm95, %v1126, 0
    %v1144 = vsel %vm95, %v1127, 0
    %1146 = vmatpush.msra.mxu0 0.0
    %1147 = vmatpush.msra.mxu0 0.0
    %1148 = vmatpush.msra.mxu0 0.0
    %1149 = vmatpush.msra.mxu0 0.0
    %1150 = vmatpush.msra.mxu0 0.0
    %1151 = vmatpush.msra.mxu0 0.0
    %1152 = vmatpush.msra.mxu0 0.0
    %1153 = vmatpush.msra.mxu0 0.0
    %1154 = vmatpush.msra.mxu0 0.0
    %1155 = vmatpush.msra.mxu0 0.0
    %1156 = vmatpush.msra.mxu0 0.0
    %1157 = vmatpush.msra.mxu0 0.0
    %1158 = vmatpush.msra.mxu0 %v1131
    %1159 = vmatpush.msra.mxu0 %v1130
    %1160 = vmatpush.msra.mxu0 %v1129
    %1161 = vmatpush.msra.mxu0 %v1128
    %1162 = vmatmul.f32.gmra.mxu0 %v1135
    %v1163 = vpop.f32.mrf.mxu0
    %v1164 = vadd.f32 %v1133, %v1163
    %1165 = vmatmul.f32.gmra.mxu0 %v1138
    %v1166 = vpop.f32.mrf.mxu0
    %v1167 = vadd.f32 %v1133, %v1166
    %1168 = vmatmul.f32.gmra.mxu0 %v1141
    %v1169 = vpop.f32.mrf.mxu0
    %v1170 = vadd.f32 %v1133, %v1169
    %1171 = vmatmul.f32.gmra.mxu0 %v1144
    %v1172 = vpop.f32.mrf.mxu0
    %v1173 = vadd.f32 %v1133, %v1172
    %1174 = vdwg.mxu0
    %v1175 = vadd.f32 %v81, %v1164
    %v1176 = vadd.f32 %v82, %v1167
    %v1177 = vadd.f32 %v83, %v1170
    %v1178 = vadd.f32 %v84, %v1173
    %v1179 = vld [vmem:[#allocation2 + $0x160] sm:$0x1]
    %v1180 = vld [vmem:[#allocation2 + $0x168] sm:$0x1]
    %v1181 = vsel %vm95, %v1175, 0.0
    %1182 = vadd.xlane.f32.xlu0 %v1181
    %v1183 = vpop.xlane.xlu0 %1182
    %v1184 = vsel %vm95, %v1176, 0.0
    %1185 = vadd.xlane.f32.xlu0 %v1184
    %v1186 = vpop.xlane.xlu0 %1185
    %v1187 = vsel %vm95, %v1177, 0.0
    %1188 = vadd.xlane.f32.xlu0 %v1187
    %v1189 = vpop.xlane.xlu0 %1188
    %v1190 = vsel %vm95, %v1178, 0.0
    %1191 = vadd.xlane.f32.xlu0 %v1190
    %v1192 = vpop.xlane.xlu0 %1191
    %v1193 = vrcp.pop 32.0
    %v1194 = vmul.f32 32.0, %v1193
    %v1195 = vsub.f32 1.0, %v1194
    %v1196 = vmul.f32 %v1193, %v1195
    %v1197 = vadd.f32 %v1193, %v1196
    %vm1198 = vweird.f32 %v1193
    %v1199 = vsel %vm1198, %v1193, %v1197
    %v1200 = vmul.f32 %v1183, %v1199
    %v1201 = vmul.f32 %v1186, %v1199
    %v1202 = vmul.f32 %v1189, %v1199
    %v1203 = vmul.f32 %v1192, %v1199
    %v1204 = vsub.f32 %v1175, %v1200
    %v1205 = vsub.f32 %v1176, %v1201
    %v1206 = vsub.f32 %v1177, %v1202
    %v1207 = vsub.f32 %v1178, %v1203
    %v1208 = vmul.f32 %v1204, %v1204
    %v1209 = vmul.f32 %v1205, %v1205
    %v1210 = vmul.f32 %v1206, %v1206
    %v1211 = vmul.f32 %v1207, %v1207
    %v1212 = vsel %vm95, %v1208, 0.0
    %1213 = vadd.xlane.f32.xlu0 %v1212
    %v1214 = vpop.xlane.xlu0 %1213
    %v1215 = vsel %vm95, %v1209, 0.0
    %1216 = vadd.xlane.f32.xlu0 %v1215
    %v1217 = vpop.xlane.xlu0 %1216
    %v1218 = vsel %vm95, %v1210, 0.0
    %1219 = vadd.xlane.f32.xlu0 %v1218
    %v1220 = vpop.xlane.xlu0 %1219
    %v1221 = vsel %vm95, %v1211, 0.0
    %1222 = vadd.xlane.f32.xlu0 %v1221
    %v1223 = vpop.xlane.xlu0 %1222
    %v1224 = vmul.f32 %v1214, %v1199
    %v1225 = vmul.f32 %v1217, %v1199
    %v1226 = vmul.f32 %v1220, %v1199
    %v1227 = vmul.f32 %v1223, %v1199
    %v1228 = vadd.f32 %v1224, 1e-05
    %v1229 = vadd.f32 %v1225, 1e-05
    %v1230 = vadd.f32 %v1226, 1e-05
    %v1231 = vadd.f32 %v1227, 1e-05
    %v1232 = vrsqrt.pop %v1228
    %v1233 = vmul.f32 %v1232, %v1228
    %v1234 = vmul.f32 %v1233, %v1232
    %v1235 = vmul.f32 0.5, %v1234
    %v1236 = vsub.f32 1.5, %v1235
    %v1237 = vmul.f32 %v1232, %v1236
    %vm1238 = vweird.f32 %v1228
    %vm1239 = vweird.f32 %v1232
    %vm1240 = vmor %vm1238, %vm1239
    %v1241 = vsel %vm1240, %v1232, %v1237
    %v1242 = vrsqrt.pop %v1229
    %v1243 = vmul.f32 %v1242, %v1229
    %v1244 = vmul.f32 %v1243, %v1242
    %v1245 = vmul.f32 0.5, %v1244
    %v1246 = vsub.f32 1.5, %v1245
    %v1247 = vmul.f32 %v1242, %v1246
    %vm1248 = vweird.f32 %v1229
    %vm1249 = vweird.f32 %v1242
    %vm1250 = vmor %vm1248, %vm1249
    %v1251 = vsel %vm1250, %v1242, %v1247
    %v1252 = vrsqrt.pop %v1230
    %v1253 = vmul.f32 %v1252, %v1230
    %v1254 = vmul.f32 %v1253, %v1252
    %v1255 = vmul.f32 0.5, %v1254
    %v1256 = vsub.f32 1.5, %v1255
    %v1257 = vmul.f32 %v1252, %v1256
    %vm1258 = vweird.f32 %v1230
    %vm1259 = vweird.f32 %v1252
    %vm1260 = vmor %vm1258, %vm1259
    %v1261 = vsel %vm1260, %v1252, %v1257
    %v1262 = vrsqrt.pop %v1231
    %v1263 = vmul.f32 %v1262, %v1231
    %v1264 = vmul.f32 %v1263, %v1262
    %v1265 = vmul.f32 0.5, %v1264
    %v1266 = vsub.f32 1.5, %v1265
    %v1267 = vmul.f32 %v1262, %v1266
    %vm1268 = vweird.f32 %v1231
    %vm1269 = vweird.f32 %v1262
    %vm1270 = vmor %vm1268, %vm1269
    %v1271 = vsel %vm1270, %v1262, %v1267
    %v1272 = vmul.f32 %v1204, %v1241
    %v1273 = vmul.f32 %v1205, %v1251
    %v1274 = vmul.f32 %v1206, %v1261
    %v1275 = vmul.f32 %v1207, %v1271
    %v1276 = vperm.slane %v1179, 0
    %v1277 = vmul.f32 %v1272, %v1276
    %v1278 = vmul.f32 %v1273, %v1276
    %v1279 = vmul.f32 %v1274, %v1276
    %v1280 = vmul.f32 %v1275, %v1276
    %v1281 = vperm.slane %v1180, 0
    %v1282 = vadd.f32 %v1277, %v1281
    %v1283 = vadd.f32 %v1278, %v1281
    %v1284 = vadd.f32 %v1279, %v1281
    %v1285 = vadd.f32 %v1280, %v1281
    %v1286 = vld [vmem:[#allocation2 + $0xb0] sm:$0xff]
    %v1287 = vld [vmem:[#allocation2 + $0xb8] sm:$0xff]
    %v1288 = vld [vmem:[#allocation2 + $0xc0] sm:$0xff]
    %v1289 = vld [vmem:[#allocation2 + $0xc8] sm:$0xff]
    %v1290 = vld [vmem:[#allocation2 + $0xd0] sm:$0x1]
    %v1291 = vperm.slane %v1290, 0
    %v1293 = vsel %vm95, %v1282, 0
    %v1296 = vsel %vm95, %v1283, 0
    %v1299 = vsel %vm95, %v1284, 0
    %v1302 = vsel %vm95, %v1285, 0
    %1304 = vmatpush.msra.mxu0 0.0
    %1305 = vmatpush.msra.mxu0 0.0
    %1306 = vmatpush.msra.mxu0 0.0
    %1307 = vmatpush.msra.mxu0 0.0
    %1308 = vmatpush.msra.mxu0 0.0
    %1309 = vmatpush.msra.mxu0 0.0
    %1310 = vmatpush.msra.mxu0 0.0
    %1311 = vmatpush.msra.mxu0 0.0
    %1312 = vmatpush.msra.mxu0 0.0
    %1313 = vmatpush.msra.mxu0 0.0
    %1314 = vmatpush.msra.mxu0 0.0
    %1315 = vmatpush.msra.mxu0 0.0
    %1316 = vmatpush.msra.mxu0 %v1289
    %1317 = vmatpush.msra.mxu0 %v1288
    %1318 = vmatpush.msra.mxu0 %v1287
    %1319 = vmatpush.msra.mxu0 %v1286
    %1320 = vmatmul.f32.gmra.mxu0 %v1293
    %v1321 = vpop.f32.mrf.mxu0
    %v1322 = vadd.f32 %v1291, %v1321
    %1323 = vmatmul.f32.gmra.mxu0 %v1296
    %v1324 = vpop.f32.mrf.mxu0
    %v1325 = vadd.f32 %v1291, %v1324
    %1326 = vmatmul.f32.gmra.mxu0 %v1299
    %v1327 = vpop.f32.mrf.mxu0
    %v1328 = vadd.f32 %v1291, %v1327
    %1329 = vmatmul.f32.gmra.mxu0 %v1302
    %v1330 = vpop.f32.mrf.mxu0
    %v1331 = vadd.f32 %v1291, %v1330
    %1332 = vdwg.mxu0
    %v1333 = vmax.f32 %v1322, 0.0
    %v1334 = vmax.f32 %v1325, 0.0
    %v1335 = vmax.f32 %v1328, 0.0
    %v1336 = vmax.f32 %v1331, 0.0
    %v1337 = vld [vmem:[#allocation2 + $0xd8] sm:$0xff]
    %v1338 = vld [vmem:[#allocation2 + $0xe0] sm:$0xff]
    %v1339 = vld [vmem:[#allocation2 + $0xe8] sm:$0xff]
    %v1340 = vld [vmem:[#allocation2 + $0xf0] sm:$0xff]
    %v1341 = vld [vmem:[#allocation2 + $0xf8] sm:$0xff]
    %v1342 = vld [vmem:[#allocation2 + $0x100] sm:$0xff]
    %v1343 = vld [vmem:[#allocation2 + $0x108] sm:$0xff]
    %v1344 = vld [vmem:[#allocation2 + $0x110] sm:$0xff]
    %v1345 = vld [vmem:[#allocation2 + $0x118] sm:$0xff]
    %v1346 = vld [vmem:[#allocation2 + $0x120] sm:$0xff]
    %v1347 = vld [vmem:[#allocation2 + $0x128] sm:$0xff]
    %v1348 = vld [vmem:[#allocation2 + $0x130] sm:$0xff]
    %v1349 = vld [vmem:[#allocation2 + $0x138] sm:$0xff]
    %v1350 = vld [vmem:[#allocation2 + $0x140] sm:$0xff]
    %v1351 = vld [vmem:[#allocation2 + $0x148] sm:$0xff]
    %v1352 = vld [vmem:[#allocation2 + $0x150] sm:$0xff]
    %v1353 = vld [vmem:[#allocation2 + $0x158] sm:$0x1]
    %v1354 = vperm.slane %v1353, 0
    %1355 = vmatpush.msra.mxu0 %v1352
    %1356 = vmatpush.msra.mxu0 %v1351
    %1357 = vmatpush.msra.mxu0 %v1350
    %1358 = vmatpush.msra.mxu0 %v1349
    %1359 = vmatpush.msra.mxu0 %v1348
    %1360 = vmatpush.msra.mxu0 %v1347
    %1361 = vmatpush.msra.mxu0 %v1346
    %1362 = vmatpush.msra.mxu0 %v1345
    %1363 = vmatpush.msra.mxu0 %v1344
    %1364 = vmatpush.msra.mxu0 %v1343
    %1365 = vmatpush.msra.mxu0 %v1342
    %1366 = vmatpush.msra.mxu0 %v1341
    %1367 = vmatpush.msra.mxu0 %v1340
    %1368 = vmatpush.msra.mxu0 %v1339
    %1369 = vmatpush.msra.mxu0 %v1338
    %1370 = vmatpush.msra.mxu0 %v1337
    %1371 = vmatmul.f32.gmra.mxu0 %v1333
    %v1372 = vpop.f32.mrf.mxu0
    %v1373 = vadd.f32 %v1354, %v1372
    %1374 = vmatmul.f32.gmra.mxu0 %v1334
    %v1375 = vpop.f32.mrf.mxu0
    %v1376 = vadd.f32 %v1354, %v1375
    %1377 = vmatmul.f32.gmra.mxu0 %v1335
    %v1378 = vpop.f32.mrf.mxu0
    %v1379 = vadd.f32 %v1354, %v1378
    %1380 = vmatmul.f32.gmra.mxu0 %v1336
    %v1381 = vpop.f32.mrf.mxu0
    %v1382 = vadd.f32 %v1354, %v1381
    %1383 = vdwg.mxu0
    %v1384 = vadd.f32 %v1282, %v1373
    %v1385 = vadd.f32 %v1283, %v1376
    %v1386 = vadd.f32 %v1284, %v1379
    %v1387 = vadd.f32 %v1285, %v1382
    %v1388 = vld [vmem:[#allocation2 + $0x170] sm:$0x1]
    %v1389 = vld [vmem:[#allocation2 + $0x178] sm:$0x1]
    %v1390 = vsel %vm95, %v1384, 0.0
    %1391 = vadd.xlane.f32.xlu0 %v1390
    %v1392 = vpop.xlane.xlu0 %1391
    %v1393 = vsel %vm95, %v1385, 0.0
    %1394 = vadd.xlane.f32.xlu0 %v1393
    %v1395 = vpop.xlane.xlu0 %1394
    %v1396 = vsel %vm95, %v1386, 0.0
    %1397 = vadd.xlane.f32.xlu0 %v1396
    %v1398 = vpop.xlane.xlu0 %1397
    %v1399 = vsel %vm95, %v1387, 0.0
    %1400 = vadd.xlane.f32.xlu0 %v1399
    %v1401 = vpop.xlane.xlu0 %1400
    %v1402 = vmul.f32 %v1392, %v1199
    %v1403 = vmul.f32 %v1395, %v1199
    %v1404 = vmul.f32 %v1398, %v1199
    %v1405 = vmul.f32 %v1401, %v1199
    %v1406 = vsub.f32 %v1384, %v1402
    %v1407 = vsub.f32 %v1385, %v1403
    %v1408 = vsub.f32 %v1386, %v1404
    %v1409 = vsub.f32 %v1387, %v1405
    %v1410 = vmul.f32 %v1406, %v1406
    %v1411 = vmul.f32 %v1407, %v1407
    %v1412 = vmul.f32 %v1408, %v1408
    %v1413 = vmul.f32 %v1409, %v1409
    %v1414 = vsel %vm95, %v1410, 0.0
    %1415 = vadd.xlane.f32.xlu0 %v1414
    %v1416 = vpop.xlane.xlu0 %1415
    %v1417 = vsel %vm95, %v1411, 0.0
    %1418 = vadd.xlane.f32.xlu0 %v1417
    %v1419 = vpop.xlane.xlu0 %1418
    %v1420 = vsel %vm95, %v1412, 0.0
    %1421 = vadd.xlane.f32.xlu0 %v1420
    %v1422 = vpop.xlane.xlu0 %1421
    %v1423 = vsel %vm95, %v1413, 0.0
    %1424 = vadd.xlane.f32.xlu0 %v1423
    %v1425 = vpop.xlane.xlu0 %1424
    %v1426 = vmul.f32 %v1416, %v1199
    %v1427 = vmul.f32 %v1419, %v1199
    %v1428 = vmul.f32 %v1422, %v1199
    %v1429 = vmul.f32 %v1425, %v1199
    %v1430 = vadd.f32 %v1426, 1e-05
    %v1431 = vadd.f32 %v1427, 1e-05
    %v1432 = vadd.f32 %v1428, 1e-05
    %v1433 = vadd.f32 %v1429, 1e-05
    %v1434 = vrsqrt.pop %v1430
    %v1435 = vmul.f32 %v1434, %v1430
    %v1436 = vmul.f32 %v1435, %v1434
    %v1437 = vmul.f32 0.5, %v1436
    %v1438 = vsub.f32 1.5, %v1437
    %v1439 = vmul.f32 %v1434, %v1438
    %vm1440 = vweird.f32 %v1430
    %vm1441 = vweird.f32 %v1434
    %vm1442 = vmor %vm1440, %vm1441
    %v1443 = vsel %vm1442, %v1434, %v1439
    %v1444 = vrsqrt.pop %v1431
    %v1445 = vmul.f32 %v1444, %v1431
    %v1446 = vmul.f32 %v1445, %v1444
    %v1447 = vmul.f32 0.5, %v1446
    %v1448 = vsub.f32 1.5, %v1447
    %v1449 = vmul.f32 %v1444, %v1448
    %vm1450 = vweird.f32 %v1431
    %vm1451 = vweird.f32 %v1444
    %vm1452 = vmor %vm1450, %vm1451
    %v1453 = vsel %vm1452, %v1444, %v1449
    %v1454 = vrsqrt.pop %v1432
    %v1455 = vmul.f32 %v1454, %v1432
    %v1456 = vmul.f32 %v1455, %v1454
    %v1457 = vmul.f32 0.5, %v1456
    %v1458 = vsub.f32 1.5, %v1457
    %v1459 = vmul.f32 %v1454, %v1458
    %vm1460 = vweird.f32 %v1432
    %vm1461 = vweird.f32 %v1454
    %vm1462 = vmor %vm1460, %vm1461
    %v1463 = vsel %vm1462, %v1454, %v1459
    %v1464 = vrsqrt.pop %v1433
    %v1465 = vmul.f32 %v1464, %v1433
    %v1466 = vmul.f32 %v1465, %v1464
    %v1467 = vmul.f32 0.5, %v1466
    %v1468 = vsub.f32 1.5, %v1467
    %v1469 = vmul.f32 %v1464, %v1468
    %vm1470 = vweird.f32 %v1433
    %vm1471 = vweird.f32 %v1464
    %vm1472 = vmor %vm1470, %vm1471
    %v1473 = vsel %vm1472, %v1464, %v1469
    %v1474 = vmul.f32 %v1406, %v1443
    %v1475 = vmul.f32 %v1407, %v1453
    %v1476 = vmul.f32 %v1408, %v1463
    %v1477 = vmul.f32 %v1409, %v1473
    %v1478 = vperm.slane %v1388, 0
    %v1479 = vmul.f32 %v1474, %v1478
    %v1480 = vmul.f32 %v1475, %v1478
    %v1481 = vmul.f32 %v1476, %v1478
    %v1482 = vmul.f32 %v1477, %v1478
    %v1483 = vperm.slane %v1389, 0
    %v1484 = vadd.f32 %v1479, %v1483
    %v1485 = vadd.f32 %v1480, %v1483
    %v1486 = vadd.f32 %v1481, %v1483
    %v1487 = vadd.f32 %v1482, %v1483
    %v1488 = vld [vmem:[#allocation2 + $0x180] sm:$0xff]
    %v1489 = vld [vmem:[#allocation2 + $0x188] sm:$0xff]
    %v1490 = vld [vmem:[#allocation2 + $0x190] sm:$0xff]
    %v1491 = vld [vmem:[#allocation2 + $0x198] sm:$0xff]
    %v1492 = vld [vmem:[#allocation2 + $0x200] sm:$0x1]
    %v1493 = vperm.slane %v1492, 0
    %v1495 = vsel %vm95, %v1484, 0
    %v1498 = vsel %vm95, %v1485, 0
    %v1501 = vsel %vm95, %v1486, 0
    %v1504 = vsel %vm95, %v1487, 0
    %1506 = vmatpush.msra.mxu0 0.0
    %1507 = vmatpush.msra.mxu0 0.0
    %1508 = vmatpush.msra.mxu0 0.0
    %1509 = vmatpush.msra.mxu0 0.0
    %1510 = vmatpush.msra.mxu0 0.0
    %1511 = vmatpush.msra.mxu0 0.0
    %1512 = vmatpush.msra.mxu0 0.0
    %1513 = vmatpush.msra.mxu0 0.0
    %1514 = vmatpush.msra.mxu0 0.0
    %1515 = vmatpush.msra.mxu0 0.0
    %1516 = vmatpush.msra.mxu0 0.0
    %1517 = vmatpush.msra.mxu0 0.0
    %1518 = vmatpush.msra.mxu0 %v1491
    %1519 = vmatpush.msra.mxu0 %v1490
    %1520 = vmatpush.msra.mxu0 %v1489
    %1521 = vmatpush.msra.mxu0 %v1488
    %1522 = vmatmul.f32.gmra.mxu0 %v1495
    %v1523 = vpop.f32.mrf.mxu0
    %v1524 = vadd.f32 %v1493, %v1523
    %1525 = vmatmul.f32.gmra.mxu0 %v1498
    %v1526 = vpop.f32.mrf.mxu0
    %v1527 = vadd.f32 %v1493, %v1526
    %1528 = vmatmul.f32.gmra.mxu0 %v1501
    %v1529 = vpop.f32.mrf.mxu0
    %v1530 = vadd.f32 %v1493, %v1529
    %1531 = vmatmul.f32.gmra.mxu0 %v1504
    %v1532 = vpop.f32.mrf.mxu0
    %v1533 = vadd.f32 %v1493, %v1532
    %1534 = vdwg.mxu0
    %v1535 = vld [vmem:[#allocation2 + $0x1a0] sm:$0xff]
    %v1536 = vld [vmem:[#allocation2 + $0x1a8] sm:$0xff]
    %v1537 = vld [vmem:[#allocation2 + $0x1b0] sm:$0xff]
    %v1538 = vld [vmem:[#allocation2 + $0x1b8] sm:$0xff]
    %v1539 = vld [vmem:[#allocation2 + $0x208] sm:$0x1]
    %v1540 = vperm.slane %v1539, 0
    %1541 = vmatpush.msra.mxu0 0.0
    %1542 = vmatpush.msra.mxu0 0.0
    %1543 = vmatpush.msra.mxu0 0.0
    %1544 = vmatpush.msra.mxu0 0.0
    %1545 = vmatpush.msra.mxu0 0.0
    %1546 = vmatpush.msra.mxu0 0.0
    %1547 = vmatpush.msra.mxu0 0.0
    %1548 = vmatpush.msra.mxu0 0.0
    %1549 = vmatpush.msra.mxu0 0.0
    %1550 = vmatpush.msra.mxu0 0.0
    %1551 = vmatpush.msra.mxu0 0.0
    %1552 = vmatpush.msra.mxu0 0.0
    %1553 = vmatpush.msra.mxu0 %v1538
    %1554 = vmatpush.msra.mxu0 %v1537
    %1555 = vmatpush.msra.mxu0 %v1536
    %1556 = vmatpush.msra.mxu0 %v1535
    %1557 = vmatmul.f32.gmra.mxu0 %v1495
    %v1558 = vpop.f32.mrf.mxu0
    %v1559 = vadd.f32 %v1540, %v1558
    %1560 = vmatmul.f32.gmra.mxu0 %v1498
    %v1561 = vpop.f32.mrf.mxu0
    %v1562 = vadd.f32 %v1540, %v1561
    %1563 = vmatmul.f32.gmra.mxu0 %v1501
    %v1564 = vpop.f32.mrf.mxu0
    %v1565 = vadd.f32 %v1540, %v1564
    %1566 = vmatmul.f32.gmra.mxu0 %v1504
    %v1567 = vpop.f32.mrf.mxu0
    %v1568 = vadd.f32 %v1540, %v1567
    %1569 = vdwg.mxu0
    %v1570 = vld [vmem:[#allocation2 + $0x1c0] sm:$0xff]
    %v1571 = vld [vmem:[#allocation2 + $0x1c8] sm:$0xff]
    %v1572 = vld [vmem:[#allocation2 + $0x1d0] sm:$0xff]
    %v1573 = vld [vmem:[#allocation2 + $0x1d8] sm:$0xff]
    %v1574 = vld [vmem:[#allocation2 + $0x210] sm:$0x1]
    %v1575 = vperm.slane %v1574, 0
    %1576 = vmatpush.msra.mxu0 0.0
    %1577 = vmatpush.msra.mxu0 0.0
    %1578 = vmatpush.msra.mxu0 0.0
    %1579 = vmatpush.msra.mxu0 0.0
    %1580 = vmatpush.msra.mxu0 0.0
    %1581 = vmatpush.msra.mxu0 0.0
    %1582 = vmatpush.msra.mxu0 0.0
    %1583 = vmatpush.msra.mxu0 0.0
    %1584 = vmatpush.msra.mxu0 0.0
    %1585 = vmatpush.msra.mxu0 0.0
    %1586 = vmatpush.msra.mxu0 0.0
    %1587 = vmatpush.msra.mxu0 0.0
    %1588 = vmatpush.msra.mxu0 %v1573
    %1589 = vmatpush.msra.mxu0 %v1572
    %1590 = vmatpush.msra.mxu0 %v1571
    %1591 = vmatpush.msra.mxu0 %v1570
    %1592 = vmatmul.f32.gmra.mxu0 %v1495
    %v1593 = vpop.f32.mrf.mxu0
    %v1594 = vadd.f32 %v1575, %v1593
    %1595 = vmatmul.f32.gmra.mxu0 %v1498
    %v1596 = vpop.f32.mrf.mxu0
    %v1597 = vadd.f32 %v1575, %v1596
    %1598 = vmatmul.f32.gmra.mxu0 %v1501
    %v1599 = vpop.f32.mrf.mxu0
    %v1600 = vadd.f32 %v1575, %v1599
    %1601 = vmatmul.f32.gmra.mxu0 %v1504
    %v1602 = vpop.f32.mrf.mxu0
    %v1603 = vadd.f32 %v1575, %v1602
    %1604 = vdwg.mxu0
    %v1605 = vmul.f32 %v1524, %v207
    %v1606 = vmul.f32 %v1527, %v207
    %v1607 = vmul.f32 %v1530, %v207
    %v1608 = vmul.f32 %v1533, %v207
    %v1610 = vsel %vm95, %v1605, 0
    %v1613 = vsel %vm95, %v1606, 0
    %v1616 = vsel %vm95, %v1559, 0
    %v1619 = vsel %vm95, %v1562, 0
    %1621 = vmatpush.xpose.msra.mxu0 0.0
    %1622 = vmatpush.xpose.msra.mxu0 0.0
    %1623 = vmatpush.xpose.msra.mxu0 0.0
    %1624 = vmatpush.xpose.msra.mxu0 0.0
    %1625 = vmatpush.xpose.msra.mxu0 0.0
    %1626 = vmatpush.xpose.msra.mxu0 0.0
    %1627 = vmatpush.xpose.msra.mxu0 0.0
    %1628 = vmatpush.xpose.msra.mxu0 0.0
    %1629 = vmatpush.xpose.msra.mxu0 0.0
    %1630 = vmatpush.xpose.msra.mxu0 0.0
    %1631 = vmatpush.xpose.msra.mxu0 0.0
    %1632 = vmatpush.xpose.msra.mxu0 0.0
    %1633 = vmatpush.xpose.msra.mxu0 0.0
    %1634 = vmatpush.xpose.msra.mxu0 0.0
    %1635 = vmatpush.xpose.msra.mxu0 %v1619
    %1636 = vmatpush.xpose.msra.mxu0 %v1616
    %1637 = vmatmul.f32.gmra.mxu0 %v1610
    %v1638 = vpop.f32.mrf.mxu0
    %v1639 = vadd.f32 0.0, %v1638
    %1640 = vmatmul.f32.gmra.mxu0 %v1613
    %v1641 = vpop.f32.mrf.mxu0
    %v1642 = vadd.f32 0.0, %v1641
    %1643 = vdwg.mxu0
    %v1645 = vsel %vm95, %v1607, 0
    %v1648 = vsel %vm95, %v1608, 0
    %v1651 = vsel %vm95, %v1565, 0
    %v1654 = vsel %vm95, %v1568, 0
    %1656 = vmatpush.xpose.msra.mxu0 0.0
    %1657 = vmatpush.xpose.msra.mxu0 0.0
    %1658 = vmatpush.xpose.msra.mxu0 0.0
    %1659 = vmatpush.xpose.msra.mxu0 0.0
    %1660 = vmatpush.xpose.msra.mxu0 0.0
    %1661 = vmatpush.xpose.msra.mxu0 0.0
    %1662 = vmatpush.xpose.msra.mxu0 0.0
    %1663 = vmatpush.xpose.msra.mxu0 0.0
    %1664 = vmatpush.xpose.msra.mxu0 0.0
    %1665 = vmatpush.xpose.msra.mxu0 0.0
    %1666 = vmatpush.xpose.msra.mxu0 0.0
    %1667 = vmatpush.xpose.msra.mxu0 0.0
    %1668 = vmatpush.xpose.msra.mxu0 0.0
    %1669 = vmatpush.xpose.msra.mxu0 0.0
    %1670 = vmatpush.xpose.msra.mxu0 %v1654
    %1671 = vmatpush.xpose.msra.mxu0 %v1651
    %1672 = vmatmul.f32.gmra.mxu0 %v1645
    %v1673 = vpop.f32.mrf.mxu0
    %v1674 = vadd.f32 0.0, %v1673
    %1675 = vmatmul.f32.gmra.mxu0 %v1648
    %v1676 = vpop.f32.mrf.mxu0
    %v1677 = vadd.f32 0.0, %v1676
    %1678 = vdwg.mxu0
    %v1679 = vmul.f32 %v1639, 0.35355338
    %v1680 = vmul.f32 %v1642, 0.35355338
    %v1681 = vmul.f32 %v1674, 0.35355338
    %v1682 = vmul.f32 %v1677, 0.35355338
    %v1683 = vsel %vm286, %v1679, -inf
    %1684 = vmax.xlane.f32.xlu0 %v1683
    %v1685 = vpop.xlane.xlu0 %1684
    %v1686 = vsel %vm286, %v1680, -inf
    %1687 = vmax.xlane.f32.xlu0 %v1686
    %v1688 = vpop.xlane.xlu0 %1687
    %v1689 = vsel %vm286, %v1681, -inf
    %1690 = vmax.xlane.f32.xlu0 %v1689
    %v1691 = vpop.xlane.xlu0 %1690
    %v1692 = vsel %vm286, %v1682, -inf
    %1693 = vmax.xlane.f32.xlu0 %v1692
    %v1694 = vpop.xlane.xlu0 %1693
    %v1695 = vsub.f32 %v1679, %v1685
    %v1696 = vsub.f32 %v1680, %v1688
    %v1697 = vsub.f32 %v1681, %v1691
    %v1698 = vsub.f32 %v1682, %v1694
    %v1699 = vmul.f32 %v1695, 1.442695
    %v1700 = vpow.pop %v1699
    %v1701 = vmul.f32 %v1696, 1.442695
    %v1702 = vpow.pop %v1701
    %v1703 = vmul.f32 %v1697, 1.442695
    %v1704 = vpow.pop %v1703
    %v1705 = vmul.f32 %v1698, 1.442695
    %v1706 = vpow.pop %v1705
    %v1707 = vsel %vm286, %v1700, 0.0
    %1708 = vadd.xlane.f32.xlu0 %v1707
    %v1709 = vpop.xlane.xlu0 %1708
    %v1710 = vsel %vm286, %v1702, 0.0
    %1711 = vadd.xlane.f32.xlu0 %v1710
    %v1712 = vpop.xlane.xlu0 %1711
    %v1713 = vsel %vm286, %v1704, 0.0
    %1714 = vadd.xlane.f32.xlu0 %v1713
    %v1715 = vpop.xlane.xlu0 %1714
    %v1716 = vsel %vm286, %v1706, 0.0
    %1717 = vadd.xlane.f32.xlu0 %v1716
    %v1718 = vpop.xlane.xlu0 %1717
    %v1719 = vrcp.pop %v1709
    %v1720 = vmul.f32 %v1709, %v1719
    %v1721 = vsub.f32 1.0, %v1720
    %v1722 = vmul.f32 %v1719, %v1721
    %v1723 = vadd.f32 %v1719, %v1722
    %vm1724 = vweird.f32 %v1709
    %vm1725 = vweird.f32 %v1719
    %vm1726 = vmor %vm1724, %vm1725
    %v1727 = vsel %vm1726, %v1719, %v1723
    %v1728 = vand.u32 2147483647, %v1709
    %vm1729 = vcmp.eq.f32.partialorder %v1728, 8.507059e+37
    %v1730 = vand.u32 %v1709, 2147483648
    %v1731 = vor.u32 1.1754944e-38, %v1730
    %v1732 = vsel %vm1729, %v1731, %v1727
    %v1733 = vmul.f32 %v1700, %v1732
    %v1734 = vrcp.pop %v1712
    %v1735 = vmul.f32 %v1712, %v1734
    %v1736 = vsub.f32 1.0, %v1735
    %v1737 = vmul.f32 %v1734, %v1736
    %v1738 = vadd.f32 %v1734, %v1737
    %vm1739 = vweird.f32 %v1712
    %vm1740 = vweird.f32 %v1734
    %vm1741 = vmor %vm1739, %vm1740
    %v1742 = vsel %vm1741, %v1734, %v1738
    %v1743 = vand.u32 2147483647, %v1712
    %vm1744 = vcmp.eq.f32.partialorder %v1743, 8.507059e+37
    %v1745 = vand.u32 %v1712, 2147483648
    %v1746 = vor.u32 1.1754944e-38, %v1745
    %v1747 = vsel %vm1744, %v1746, %v1742
    %v1748 = vmul.f32 %v1702, %v1747
    %v1749 = vrcp.pop %v1715
    %v1750 = vmul.f32 %v1715, %v1749
    %v1751 = vsub.f32 1.0, %v1750
    %v1752 = vmul.f32 %v1749, %v1751
    %v1753 = vadd.f32 %v1749, %v1752
    %vm1754 = vweird.f32 %v1715
    %vm1755 = vweird.f32 %v1749
    %vm1756 = vmor %vm1754, %vm1755
    %v1757 = vsel %vm1756, %v1749, %v1753
    %v1758 = vand.u32 2147483647, %v1715
    %vm1759 = vcmp.eq.f32.partialorder %v1758, 8.507059e+37
    %v1760 = vand.u32 %v1715, 2147483648
    %v1761 = vor.u32 1.1754944e-38, %v1760
    %v1762 = vsel %vm1759, %v1761, %v1757
    %v1763 = vmul.f32 %v1704, %v1762
    %v1764 = vrcp.pop %v1718
    %v1765 = vmul.f32 %v1718, %v1764
    %v1766 = vsub.f32 1.0, %v1765
    %v1767 = vmul.f32 %v1764, %v1766
    %v1768 = vadd.f32 %v1764, %v1767
    %vm1769 = vweird.f32 %v1718
    %vm1770 = vweird.f32 %v1764
    %vm1771 = vmor %vm1769, %vm1770
    %v1772 = vsel %vm1771, %v1764, %v1768
    %v1773 = vand.u32 2147483647, %v1718
    %vm1774 = vcmp.eq.f32.partialorder %v1773, 8.507059e+37
    %v1775 = vand.u32 %v1718, 2147483648
    %v1776 = vor.u32 1.1754944e-38, %v1775
    %v1777 = vsel %vm1774, %v1776, %v1772
    %v1778 = vmul.f32 %v1706, %v1777
    %v1779 = vmul.f32 %v1594, %v207
    %v1780 = vmul.f32 %v1597, %v207
    %v1781 = vmul.f32 %v1600, %v207
    %v1782 = vmul.f32 %v1603, %v207
    %v1783 = vmul.f32 %v1524, %v387
    %v1784 = vmul.f32 %v1527, %v387
    %v1785 = vmul.f32 %v1530, %v387
    %v1786 = vmul.f32 %v1533, %v387
    %v1788 = vsel %vm95, %v1783, 0
    %v1791 = vsel %vm95, %v1784, 0
    %1793 = vmatpush.xpose.msra.mxu0 0.0
    %1794 = vmatpush.xpose.msra.mxu0 0.0
    %1795 = vmatpush.xpose.msra.mxu0 0.0
    %1796 = vmatpush.xpose.msra.mxu0 0.0
    %1797 = vmatpush.xpose.msra.mxu0 0.0
    %1798 = vmatpush.xpose.msra.mxu0 0.0
    %1799 = vmatpush.xpose.msra.mxu0 0.0
    %1800 = vmatpush.xpose.msra.mxu0 0.0
    %1801 = vmatpush.xpose.msra.mxu0 0.0
    %1802 = vmatpush.xpose.msra.mxu0 0.0
    %1803 = vmatpush.xpose.msra.mxu0 0.0
    %1804 = vmatpush.xpose.msra.mxu0 0.0
    %1805 = vmatpush.xpose.msra.mxu0 0.0
    %1806 = vmatpush.xpose.msra.mxu0 0.0
    %1807 = vmatpush.xpose.msra.mxu0 %v1619
    %1808 = vmatpush.xpose.msra.mxu0 %v1616
    %1809 = vmatmul.f32.gmra.mxu0 %v1788
    %v1810 = vpop.f32.mrf.mxu0
    %v1811 = vadd.f32 0.0, %v1810
    %1812 = vmatmul.f32.gmra.mxu0 %v1791
    %v1813 = vpop.f32.mrf.mxu0
    %v1814 = vadd.f32 0.0, %v1813
    %1815 = vdwg.mxu0
    %v1817 = vsel %vm95, %v1785, 0
    %v1820 = vsel %vm95, %v1786, 0
    %1822 = vmatpush.xpose.msra.mxu0 0.0
    %1823 = vmatpush.xpose.msra.mxu0 0.0
    %1824 = vmatpush.xpose.msra.mxu0 0.0
    %1825 = vmatpush.xpose.msra.mxu0 0.0
    %1826 = vmatpush.xpose.msra.mxu0 0.0
    %1827 = vmatpush.xpose.msra.mxu0 0.0
    %1828 = vmatpush.xpose.msra.mxu0 0.0
    %1829 = vmatpush.xpose.msra.mxu0 0.0
    %1830 = vmatpush.xpose.msra.mxu0 0.0
    %1831 = vmatpush.xpose.msra.mxu0 0.0
    %1832 = vmatpush.xpose.msra.mxu0 0.0
    %1833 = vmatpush.xpose.msra.mxu0 0.0
    %1834 = vmatpush.xpose.msra.mxu0 0.0
    %1835 = vmatpush.xpose.msra.mxu0 0.0
    %1836 = vmatpush.xpose.msra.mxu0 %v1654
    %1837 = vmatpush.xpose.msra.mxu0 %v1651
    %1838 = vmatmul.f32.gmra.mxu0 %v1817
    %v1839 = vpop.f32.mrf.mxu0
    %v1840 = vadd.f32 0.0, %v1839
    %1841 = vmatmul.f32.gmra.mxu0 %v1820
    %v1842 = vpop.f32.mrf.mxu0
    %v1843 = vadd.f32 0.0, %v1842
    %1844 = vdwg.mxu0
    %v1845 = vmul.f32 %v1811, 0.35355338
    %v1846 = vmul.f32 %v1814, 0.35355338
    %v1847 = vmul.f32 %v1840, 0.35355338
    %v1848 = vmul.f32 %v1843, 0.35355338
    %v1849 = vsel %vm286, %v1845, -inf
    %1850 = vmax.xlane.f32.xlu0 %v1849
    %v1851 = vpop.xlane.xlu0 %1850
    %v1852 = vsel %vm286, %v1846, -inf
    %1853 = vmax.xlane.f32.xlu0 %v1852
    %v1854 = vpop.xlane.xlu0 %1853
    %v1855 = vsel %vm286, %v1847, -inf
    %1856 = vmax.xlane.f32.xlu0 %v1855
    %v1857 = vpop.xlane.xlu0 %1856
    %v1858 = vsel %vm286, %v1848, -inf
    %1859 = vmax.xlane.f32.xlu0 %v1858
    %v1860 = vpop.xlane.xlu0 %1859
    %v1861 = vsub.f32 %v1845, %v1851
    %v1862 = vsub.f32 %v1846, %v1854
    %v1863 = vsub.f32 %v1847, %v1857
    %v1864 = vsub.f32 %v1848, %v1860
    %v1865 = vmul.f32 %v1861, 1.442695
    %v1866 = vpow.pop %v1865
    %v1867 = vmul.f32 %v1862, 1.442695
    %v1868 = vpow.pop %v1867
    %v1869 = vmul.f32 %v1863, 1.442695
    %v1870 = vpow.pop %v1869
    %v1871 = vmul.f32 %v1864, 1.442695
    %v1872 = vpow.pop %v1871
    %v1873 = vsel %vm286, %v1866, 0.0
    %1874 = vadd.xlane.f32.xlu0 %v1873
    %v1875 = vpop.xlane.xlu0 %1874
    %v1876 = vsel %vm286, %v1868, 0.0
    %1877 = vadd.xlane.f32.xlu0 %v1876
    %v1878 = vpop.xlane.xlu0 %1877
    %v1879 = vsel %vm286, %v1870, 0.0
    %1880 = vadd.xlane.f32.xlu0 %v1879
    %v1881 = vpop.xlane.xlu0 %1880
    %v1882 = vsel %vm286, %v1872, 0.0
    %1883 = vadd.xlane.f32.xlu0 %v1882
    %v1884 = vpop.xlane.xlu0 %1883
    %v1885 = vrcp.pop %v1875
    %v1886 = vmul.f32 %v1875, %v1885
    %v1887 = vsub.f32 1.0, %v1886
    %v1888 = vmul.f32 %v1885, %v1887
    %v1889 = vadd.f32 %v1885, %v1888
    %vm1890 = vweird.f32 %v1875
    %vm1891 = vweird.f32 %v1885
    %vm1892 = vmor %vm1890, %vm1891
    %v1893 = vsel %vm1892, %v1885, %v1889
    %v1894 = vand.u32 2147483647, %v1875
    %vm1895 = vcmp.eq.f32.partialorder %v1894, 8.507059e+37
    %v1896 = vand.u32 %v1875, 2147483648
    %v1897 = vor.u32 1.1754944e-38, %v1896
    %v1898 = vsel %vm1895, %v1897, %v1893
    %v1899 = vmul.f32 %v1866, %v1898
    %v1900 = vrcp.pop %v1878
    %v1901 = vmul.f32 %v1878, %v1900
    %v1902 = vsub.f32 1.0, %v1901
    %v1903 = vmul.f32 %v1900, %v1902
    %v1904 = vadd.f32 %v1900, %v1903
    %vm1905 = vweird.f32 %v1878
    %vm1906 = vweird.f32 %v1900
    %vm1907 = vmor %vm1905, %vm1906
    %v1908 = vsel %vm1907, %v1900, %v1904
    %v1909 = vand.u32 2147483647, %v1878
    %vm1910 = vcmp.eq.f32.partialorder %v1909, 8.507059e+37
    %v1911 = vand.u32 %v1878, 2147483648
    %v1912 = vor.u32 1.1754944e-38, %v1911
    %v1913 = vsel %vm1910, %v1912, %v1908
    %v1914 = vmul.f32 %v1868, %v1913
    %v1915 = vrcp.pop %v1881
    %v1916 = vmul.f32 %v1881, %v1915
    %v1917 = vsub.f32 1.0, %v1916
    %v1918 = vmul.f32 %v1915, %v1917
    %v1919 = vadd.f32 %v1915, %v1918
    %vm1920 = vweird.f32 %v1881
    %vm1921 = vweird.f32 %v1915
    %vm1922 = vmor %vm1920, %vm1921
    %v1923 = vsel %vm1922, %v1915, %v1919
    %v1924 = vand.u32 2147483647, %v1881
    %vm1925 = vcmp.eq.f32.partialorder %v1924, 8.507059e+37
    %v1926 = vand.u32 %v1881, 2147483648
    %v1927 = vor.u32 1.1754944e-38, %v1926
    %v1928 = vsel %vm1925, %v1927, %v1923
    %v1929 = vmul.f32 %v1870, %v1928
    %v1930 = vrcp.pop %v1884
    %v1931 = vmul.f32 %v1884, %v1930
    %v1932 = vsub.f32 1.0, %v1931
    %v1933 = vmul.f32 %v1930, %v1932
    %v1934 = vadd.f32 %v1930, %v1933
    %vm1935 = vweird.f32 %v1884
    %vm1936 = vweird.f32 %v1930
    %vm1937 = vmor %vm1935, %vm1936
    %v1938 = vsel %vm1937, %v1930, %v1934
    %v1939 = vand.u32 2147483647, %v1884
    %vm1940 = vcmp.eq.f32.partialorder %v1939, 8.507059e+37
    %v1941 = vand.u32 %v1884, 2147483648
    %v1942 = vor.u32 1.1754944e-38, %v1941
    %v1943 = vsel %vm1940, %v1942, %v1938
    %v1944 = vmul.f32 %v1872, %v1943
    %v1945 = vmul.f32 %v1594, %v387
    %v1946 = vmul.f32 %v1597, %v387
    %v1947 = vmul.f32 %v1600, %v387
    %v1948 = vmul.f32 %v1603, %v387
    %v1950 = vsel %vm286, %v1899, 0
    %v1953 = vsel %vm286, %v1914, 0
    %1955 = vmatpush.msra.mxu0 0.0
    %1956 = vmatpush.msra.mxu0 0.0
    %1957 = vmatpush.msra.mxu0 0.0
    %1958 = vmatpush.msra.mxu0 0.0
    %1959 = vmatpush.msra.mxu0 0.0
    %1960 = vmatpush.msra.mxu0 0.0
    %1961 = vmatpush.msra.mxu0 0.0
    %1962 = vmatpush.msra.mxu0 0.0
    %1963 = vmatpush.msra.mxu0 0.0
    %1964 = vmatpush.msra.mxu0 0.0
    %1965 = vmatpush.msra.mxu0 0.0
    %1966 = vmatpush.msra.mxu0 0.0
    %1967 = vmatpush.msra.mxu0 0.0
    %1968 = vmatpush.msra.mxu0 0.0
    %1969 = vmatpush.msra.mxu0 %v1946
    %1970 = vmatpush.msra.mxu0 %v1945
    %1971 = vmatmul.f32.gmra.mxu0 %v1950
    %v1972 = vpop.f32.mrf.mxu0
    %v1973 = vadd.f32 0.0, %v1972
    %1974 = vmatmul.f32.gmra.mxu0 %v1953
    %v1975 = vpop.f32.mrf.mxu0
    %v1976 = vadd.f32 0.0, %v1975
    %1977 = vdwg.mxu0
    %v1979 = vsel %vm286, %v1929, 0
    %v1982 = vsel %vm286, %v1944, 0
    %1984 = vmatpush.msra.mxu0 0.0
    %1985 = vmatpush.msra.mxu0 0.0
    %1986 = vmatpush.msra.mxu0 0.0
    %1987 = vmatpush.msra.mxu0 0.0
    %1988 = vmatpush.msra.mxu0 0.0
    %1989 = vmatpush.msra.mxu0 0.0
    %1990 = vmatpush.msra.mxu0 0.0
    %1991 = vmatpush.msra.mxu0 0.0
    %1992 = vmatpush.msra.mxu0 0.0
    %1993 = vmatpush.msra.mxu0 0.0
    %1994 = vmatpush.msra.mxu0 0.0
    %1995 = vmatpush.msra.mxu0 0.0
    %1996 = vmatpush.msra.mxu0 0.0
    %1997 = vmatpush.msra.mxu0 0.0
    %1998 = vmatpush.msra.mxu0 %v1948
    %1999 = vmatpush.msra.mxu0 %v1947
    %2000 = vmatmul.f32.gmra.mxu0 %v1979
    %v2001 = vpop.f32.mrf.mxu0
    %v2002 = vadd.f32 0.0, %v2001
    %2003 = vmatmul.f32.gmra.mxu0 %v1982
    %v2004 = vpop.f32.mrf.mxu0
    %v2005 = vadd.f32 0.0, %v2004
    %2006 = vdwg.mxu0
    %v2008 = vsel %vm286, %v1733, 0
    %v2011 = vsel %vm286, %v1748, 0
    %2013 = vmatpush.msra.mxu0 0.0
    %2014 = vmatpush.msra.mxu0 0.0
    %2015 = vmatpush.msra.mxu0 0.0
    %2016 = vmatpush.msra.mxu0 0.0
    %2017 = vmatpush.msra.mxu0 0.0
    %2018 = vmatpush.msra.mxu0 0.0
    %2019 = vmatpush.msra.mxu0 0.0
    %2020 = vmatpush.msra.mxu0 0.0
    %2021 = vmatpush.msra.mxu0 0.0
    %2022 = vmatpush.msra.mxu0 0.0
    %2023 = vmatpush.msra.mxu0 0.0
    %2024 = vmatpush.msra.mxu0 0.0
    %2025 = vmatpush.msra.mxu0 0.0
    %2026 = vmatpush.msra.mxu0 0.0
    %2027 = vmatpush.msra.mxu0 %v1780
    %2028 = vmatpush.msra.mxu0 %v1779
    %2029 = vmatmul.f32.gmra.mxu0 %v2008
    %v2030 = vpop.f32.mrf.mxu0
    %v2031 = vadd.f32 %v1973, %v2030
    %2032 = vmatmul.f32.gmra.mxu0 %v2011
    %v2033 = vpop.f32.mrf.mxu0
    %v2034 = vadd.f32 %v1976, %v2033
    %2035 = vdwg.mxu0
    %v2037 = vsel %vm286, %v1763, 0
    %v2040 = vsel %vm286, %v1778, 0
    %2042 = vmatpush.msra.mxu0 0.0
    %2043 = vmatpush.msra.mxu0 0.0
    %2044 = vmatpush.msra.mxu0 0.0
    %2045 = vmatpush.msra.mxu0 0.0
    %2046 = vmatpush.msra.mxu0 0.0
    %2047 = vmatpush.msra.mxu0 0.0
    %2048 = vmatpush.msra.mxu0 0.0
    %2049 = vmatpush.msra.mxu0 0.0
    %2050 = vmatpush.msra.mxu0 0.0
    %2051 = vmatpush.msra.mxu0 0.0
    %2052 = vmatpush.msra.mxu0 0.0
    %2053 = vmatpush.msra.mxu0 0.0
    %2054 = vmatpush.msra.mxu0 0.0
    %2055 = vmatpush.msra.mxu0 0.0
    %2056 = vmatpush.msra.mxu0 %v1782
    %2057 = vmatpush.msra.mxu0 %v1781
    %2058 = vmatmul.f32.gmra.mxu0 %v2037
    %v2059 = vpop.f32.mrf.mxu0
    %v2060 = vadd.f32 %v2002, %v2059
    %2061 = vmatmul.f32.gmra.mxu0 %v2040
    %v2062 = vpop.f32.mrf.mxu0
    %v2063 = vadd.f32 %v2005, %v2062
    %2064 = vdwg.mxu0
    %v2065 = vmul.f32 %v1524, %v670
    %v2066 = vmul.f32 %v1527, %v670
    %v2067 = vmul.f32 %v1530, %v670
    %v2068 = vmul.f32 %v1533, %v670
    %v2070 = vsel %vm95, %v2065, 0
    %v2073 = vsel %vm95, %v2066, 0
    %2075 = vmatpush.xpose.msra.mxu0 0.0
    %2076 = vmatpush.xpose.msra.mxu0 0.0
    %2077 = vmatpush.xpose.msra.mxu0 0.0
    %2078 = vmatpush.xpose.msra.mxu0 0.0
    %2079 = vmatpush.xpose.msra.mxu0 0.0
    %2080 = vmatpush.xpose.msra.mxu0 0.0
    %2081 = vmatpush.xpose.msra.mxu0 0.0
    %2082 = vmatpush.xpose.msra.mxu0 0.0
    %2083 = vmatpush.xpose.msra.mxu0 0.0
    %2084 = vmatpush.xpose.msra.mxu0 0.0
    %2085 = vmatpush.xpose.msra.mxu0 0.0
    %2086 = vmatpush.xpose.msra.mxu0 0.0
    %2087 = vmatpush.xpose.msra.mxu0 0.0
    %2088 = vmatpush.xpose.msra.mxu0 0.0
    %2089 = vmatpush.xpose.msra.mxu0 %v1619
    %2090 = vmatpush.xpose.msra.mxu0 %v1616
    %2091 = vmatmul.f32.gmra.mxu0 %v2070
    %v2092 = vpop.f32.mrf.mxu0
    %v2093 = vadd.f32 0.0, %v2092
    %2094 = vmatmul.f32.gmra.mxu0 %v2073
    %v2095 = vpop.f32.mrf.mxu0
    %v2096 = vadd.f32 0.0, %v2095
    %2097 = vdwg.mxu0
    %v2099 = vsel %vm95, %v2067, 0
    %v2102 = vsel %vm95, %v2068, 0
    %2104 = vmatpush.xpose.msra.mxu0 0.0
    %2105 = vmatpush.xpose.msra.mxu0 0.0
    %2106 = vmatpush.xpose.msra.mxu0 0.0
    %2107 = vmatpush.xpose.msra.mxu0 0.0
    %2108 = vmatpush.xpose.msra.mxu0 0.0
    %2109 = vmatpush.xpose.msra.mxu0 0.0
    %2110 = vmatpush.xpose.msra.mxu0 0.0
    %2111 = vmatpush.xpose.msra.mxu0 0.0
    %2112 = vmatpush.xpose.msra.mxu0 0.0
    %2113 = vmatpush.xpose.msra.mxu0 0.0
    %2114 = vmatpush.xpose.msra.mxu0 0.0
    %2115 = vmatpush.xpose.msra.mxu0 0.0
    %2116 = vmatpush.xpose.msra.mxu0 0.0
    %2117 = vmatpush.xpose.msra.mxu0 0.0
    %2118 = vmatpush.xpose.msra.mxu0 %v1654
    %2119 = vmatpush.xpose.msra.mxu0 %v1651
    %2120 = vmatmul.f32.gmra.mxu0 %v2099
    %v2121 = vpop.f32.mrf.mxu0
    %v2122 = vadd.f32 0.0, %v2121
    %2123 = vmatmul.f32.gmra.mxu0 %v2102
    %v2124 = vpop.f32.mrf.mxu0
    %v2125 = vadd.f32 0.0, %v2124
    %2126 = vdwg.mxu0
    %v2127 = vmul.f32 %v2093, 0.35355338
    %v2128 = vmul.f32 %v2096, 0.35355338
    %v2129 = vmul.f32 %v2122, 0.35355338
    %v2130 = vmul.f32 %v2125, 0.35355338
    %v2131 = vsel %vm286, %v2127, -inf
    %2132 = vmax.xlane.f32.xlu0 %v2131
    %v2133 = vpop.xlane.xlu0 %2132
    %v2134 = vsel %vm286, %v2128, -inf
    %2135 = vmax.xlane.f32.xlu0 %v2134
    %v2136 = vpop.xlane.xlu0 %2135
    %v2137 = vsel %vm286, %v2129, -inf
    %2138 = vmax.xlane.f32.xlu0 %v2137
    %v2139 = vpop.xlane.xlu0 %2138
    %v2140 = vsel %vm286, %v2130, -inf
    %2141 = vmax.xlane.f32.xlu0 %v2140
    %v2142 = vpop.xlane.xlu0 %2141
    %v2143 = vsub.f32 %v2127, %v2133
    %v2144 = vsub.f32 %v2128, %v2136
    %v2145 = vsub.f32 %v2129, %v2139
    %v2146 = vsub.f32 %v2130, %v2142
    %v2147 = vmul.f32 %v2143, 1.442695
    %v2148 = vpow.pop %v2147
    %v2149 = vmul.f32 %v2144, 1.442695
    %v2150 = vpow.pop %v2149
    %v2151 = vmul.f32 %v2145, 1.442695
    %v2152 = vpow.pop %v2151
    %v2153 = vmul.f32 %v2146, 1.442695
    %v2154 = vpow.pop %v2153
    %v2155 = vsel %vm286, %v2148, 0.0
    %2156 = vadd.xlane.f32.xlu0 %v2155
    %v2157 = vpop.xlane.xlu0 %2156
    %v2158 = vsel %vm286, %v2150, 0.0
    %2159 = vadd.xlane.f32.xlu0 %v2158
    %v2160 = vpop.xlane.xlu0 %2159
    %v2161 = vsel %vm286, %v2152, 0.0
    %2162 = vadd.xlane.f32.xlu0 %v2161
    %v2163 = vpop.xlane.xlu0 %2162
    %v2164 = vsel %vm286, %v2154, 0.0
    %2165 = vadd.xlane.f32.xlu0 %v2164
    %v2166 = vpop.xlane.xlu0 %2165
    %v2167 = vrcp.pop %v2157
    %v2168 = vmul.f32 %v2157, %v2167
    %v2169 = vsub.f32 1.0, %v2168
    %v2170 = vmul.f32 %v2167, %v2169
    %v2171 = vadd.f32 %v2167, %v2170
    %vm2172 = vweird.f32 %v2157
    %vm2173 = vweird.f32 %v2167
    %vm2174 = vmor %vm2172, %vm2173
    %v2175 = vsel %vm2174, %v2167, %v2171
    %v2176 = vand.u32 2147483647, %v2157
    %vm2177 = vcmp.eq.f32.partialorder %v2176, 8.507059e+37
    %v2178 = vand.u32 %v2157, 2147483648
    %v2179 = vor.u32 1.1754944e-38, %v2178
    %v2180 = vsel %vm2177, %v2179, %v2175
    %v2181 = vmul.f32 %v2148, %v2180
    %v2182 = vrcp.pop %v2160
    %v2183 = vmul.f32 %v2160, %v2182
    %v2184 = vsub.f32 1.0, %v2183
    %v2185 = vmul.f32 %v2182, %v2184
    %v2186 = vadd.f32 %v2182, %v2185
    %vm2187 = vweird.f32 %v2160
    %vm2188 = vweird.f32 %v2182
    %vm2189 = vmor %vm2187, %vm2188
    %v2190 = vsel %vm2189, %v2182, %v2186
    %v2191 = vand.u32 2147483647, %v2160
    %vm2192 = vcmp.eq.f32.partialorder %v2191, 8.507059e+37
    %v2193 = vand.u32 %v2160, 2147483648
    %v2194 = vor.u32 1.1754944e-38, %v2193
    %v2195 = vsel %vm2192, %v2194, %v2190
    %v2196 = vmul.f32 %v2150, %v2195
    %v2197 = vrcp.pop %v2163
    %v2198 = vmul.f32 %v2163, %v2197
    %v2199 = vsub.f32 1.0, %v2198
    %v2200 = vmul.f32 %v2197, %v2199
    %v2201 = vadd.f32 %v2197, %v2200
    %vm2202 = vweird.f32 %v2163
    %vm2203 = vweird.f32 %v2197
    %vm2204 = vmor %vm2202, %vm2203
    %v2205 = vsel %vm2204, %v2197, %v2201
    %v2206 = vand.u32 2147483647, %v2163
    %vm2207 = vcmp.eq.f32.partialorder %v2206, 8.507059e+37
    %v2208 = vand.u32 %v2163, 2147483648
    %v2209 = vor.u32 1.1754944e-38, %v2208
    %v2210 = vsel %vm2207, %v2209, %v2205
    %v2211 = vmul.f32 %v2152, %v2210
    %v2212 = vrcp.pop %v2166
    %v2213 = vmul.f32 %v2166, %v2212
    %v2214 = vsub.f32 1.0, %v2213
    %v2215 = vmul.f32 %v2212, %v2214
    %v2216 = vadd.f32 %v2212, %v2215
    %vm2217 = vweird.f32 %v2166
    %vm2218 = vweird.f32 %v2212
    %vm2219 = vmor %vm2217, %vm2218
    %v2220 = vsel %vm2219, %v2212, %v2216
    %v2221 = vand.u32 2147483647, %v2166
    %vm2222 = vcmp.eq.f32.partialorder %v2221, 8.507059e+37
    %v2223 = vand.u32 %v2166, 2147483648
    %v2224 = vor.u32 1.1754944e-38, %v2223
    %v2225 = vsel %vm2222, %v2224, %v2220
    %v2226 = vmul.f32 %v2154, %v2225
    %v2227 = vmul.f32 %v1594, %v670
    %v2228 = vmul.f32 %v1597, %v670
    %v2229 = vmul.f32 %v1600, %v670
    %v2230 = vmul.f32 %v1603, %v670
    %v2232 = vsel %vm286, %v2181, 0
    %v2235 = vsel %vm286, %v2196, 0
    %2237 = vmatpush.msra.mxu0 0.0
    %2238 = vmatpush.msra.mxu0 0.0
    %2239 = vmatpush.msra.mxu0 0.0
    %2240 = vmatpush.msra.mxu0 0.0
    %2241 = vmatpush.msra.mxu0 0.0
    %2242 = vmatpush.msra.mxu0 0.0
    %2243 = vmatpush.msra.mxu0 0.0
    %2244 = vmatpush.msra.mxu0 0.0
    %2245 = vmatpush.msra.mxu0 0.0
    %2246 = vmatpush.msra.mxu0 0.0
    %2247 = vmatpush.msra.mxu0 0.0
    %2248 = vmatpush.msra.mxu0 0.0
    %2249 = vmatpush.msra.mxu0 0.0
    %2250 = vmatpush.msra.mxu0 0.0
    %2251 = vmatpush.msra.mxu0 %v2228
    %2252 = vmatpush.msra.mxu0 %v2227
    %2253 = vmatmul.f32.gmra.mxu0 %v2232
    %v2254 = vpop.f32.mrf.mxu0
    %v2255 = vadd.f32 0.0, %v2254
    %2256 = vmatmul.f32.gmra.mxu0 %v2235
    %v2257 = vpop.f32.mrf.mxu0
    %v2258 = vadd.f32 0.0, %v2257
    %2259 = vdwg.mxu0
    %v2261 = vsel %vm286, %v2211, 0
    %v2264 = vsel %vm286, %v2226, 0
    %2266 = vmatpush.msra.mxu0 0.0
    %2267 = vmatpush.msra.mxu0 0.0
    %2268 = vmatpush.msra.mxu0 0.0
    %2269 = vmatpush.msra.mxu0 0.0
    %2270 = vmatpush.msra.mxu0 0.0
    %2271 = vmatpush.msra.mxu0 0.0
    %2272 = vmatpush.msra.mxu0 0.0
    %2273 = vmatpush.msra.mxu0 0.0
    %2274 = vmatpush.msra.mxu0 0.0
    %2275 = vmatpush.msra.mxu0 0.0
    %2276 = vmatpush.msra.mxu0 0.0
    %2277 = vmatpush.msra.mxu0 0.0
    %2278 = vmatpush.msra.mxu0 0.0
    %2279 = vmatpush.msra.mxu0 0.0
    %2280 = vmatpush.msra.mxu0 %v2230
    %2281 = vmatpush.msra.mxu0 %v2229
    %2282 = vmatmul.f32.gmra.mxu0 %v2261
    %v2283 = vpop.f32.mrf.mxu0
    %v2284 = vadd.f32 0.0, %v2283
    %2285 = vmatmul.f32.gmra.mxu0 %v2264
    %v2286 = vpop.f32.mrf.mxu0
    %v2287 = vadd.f32 0.0, %v2286
    %2288 = vdwg.mxu0
    %v2289 = vadd.f32 %v2031, %v2255
    %v2290 = vadd.f32 %v2034, %v2258
    %v2291 = vadd.f32 %v2060, %v2284
    %v2292 = vadd.f32 %v2063, %v2287
    %v2293 = vmul.f32 %v1524, %v899
    %v2294 = vmul.f32 %v1527, %v899
    %v2295 = vmul.f32 %v1530, %v899
    %v2296 = vmul.f32 %v1533, %v899
    %v2298 = vsel %vm95, %v2293, 0
    %v2301 = vsel %vm95, %v2294, 0
    %2303 = vmatpush.xpose.msra.mxu0 0.0
    %2304 = vmatpush.xpose.msra.mxu0 0.0
    %2305 = vmatpush.xpose.msra.mxu0 0.0
    %2306 = vmatpush.xpose.msra.mxu0 0.0
    %2307 = vmatpush.xpose.msra.mxu0 0.0
    %2308 = vmatpush.xpose.msra.mxu0 0.0
    %2309 = vmatpush.xpose.msra.mxu0 0.0
    %2310 = vmatpush.xpose.msra.mxu0 0.0
    %2311 = vmatpush.xpose.msra.mxu0 0.0
    %2312 = vmatpush.xpose.msra.mxu0 0.0
    %2313 = vmatpush.xpose.msra.mxu0 0.0
    %2314 = vmatpush.xpose.msra.mxu0 0.0
    %2315 = vmatpush.xpose.msra.mxu0 0.0
    %2316 = vmatpush.xpose.msra.mxu0 0.0
    %2317 = vmatpush.xpose.msra.mxu0 %v1619
    %2318 = vmatpush.xpose.msra.mxu0 %v1616
    %2319 = vmatmul.f32.gmra.mxu0 %v2298
    %v2320 = vpop.f32.mrf.mxu0
    %v2321 = vadd.f32 0.0, %v2320
    %2322 = vmatmul.f32.gmra.mxu0 %v2301
    %v2323 = vpop.f32.mrf.mxu0
    %v2324 = vadd.f32 0.0, %v2323
    %2325 = vdwg.mxu0
    %v2327 = vsel %vm95, %v2295, 0
    %v2330 = vsel %vm95, %v2296, 0
    %2332 = vmatpush.xpose.msra.mxu0 0.0
    %2333 = vmatpush.xpose.msra.mxu0 0.0
    %2334 = vmatpush.xpose.msra.mxu0 0.0
    %2335 = vmatpush.xpose.msra.mxu0 0.0
    %2336 = vmatpush.xpose.msra.mxu0 0.0
    %2337 = vmatpush.xpose.msra.mxu0 0.0
    %2338 = vmatpush.xpose.msra.mxu0 0.0
    %2339 = vmatpush.xpose.msra.mxu0 0.0
    %2340 = vmatpush.xpose.msra.mxu0 0.0
    %2341 = vmatpush.xpose.msra.mxu0 0.0
    %2342 = vmatpush.xpose.msra.mxu0 0.0
    %2343 = vmatpush.xpose.msra.mxu0 0.0
    %2344 = vmatpush.xpose.msra.mxu0 0.0
    %2345 = vmatpush.xpose.msra.mxu0 0.0
    %2346 = vmatpush.xpose.msra.mxu0 %v1654
    %2347 = vmatpush.xpose.msra.mxu0 %v1651
    %2348 = vmatmul.f32.gmra.mxu0 %v2327
    %v2349 = vpop.f32.mrf.mxu0
    %v2350 = vadd.f32 0.0, %v2349
    %2351 = vmatmul.f32.gmra.mxu0 %v2330
    %v2352 = vpop.f32.mrf.mxu0
    %v2353 = vadd.f32 0.0, %v2352
    %2354 = vdwg.mxu0
    %v2355 = vmul.f32 %v2321, 0.35355338
    %v2356 = vmul.f32 %v2324, 0.35355338
    %v2357 = vmul.f32 %v2350, 0.35355338
    %v2358 = vmul.f32 %v2353, 0.35355338
    %v2359 = vsel %vm286, %v2355, -inf
    %2360 = vmax.xlane.f32.xlu0 %v2359
    %v2361 = vpop.xlane.xlu0 %2360
    %v2362 = vsel %vm286, %v2356, -inf
    %2363 = vmax.xlane.f32.xlu0 %v2362
    %v2364 = vpop.xlane.xlu0 %2363
    %v2365 = vsel %vm286, %v2357, -inf
    %2366 = vmax.xlane.f32.xlu0 %v2365
    %v2367 = vpop.xlane.xlu0 %2366
    %v2368 = vsel %vm286, %v2358, -inf
    %2369 = vmax.xlane.f32.xlu0 %v2368
    %v2370 = vpop.xlane.xlu0 %2369
    %v2371 = vsub.f32 %v2355, %v2361
    %v2372 = vsub.f32 %v2356, %v2364
    %v2373 = vsub.f32 %v2357, %v2367
    %v2374 = vsub.f32 %v2358, %v2370
    %v2375 = vmul.f32 %v2371, 1.442695
    %v2376 = vpow.pop %v2375
    %v2377 = vmul.f32 %v2372, 1.442695
    %v2378 = vpow.pop %v2377
    %v2379 = vmul.f32 %v2373, 1.442695
    %v2380 = vpow.pop %v2379
    %v2381 = vmul.f32 %v2374, 1.442695
    %v2382 = vpow.pop %v2381
    %v2383 = vsel %vm286, %v2376, 0.0
    %2384 = vadd.xlane.f32.xlu0 %v2383
    %v2385 = vpop.xlane.xlu0 %2384
    %v2386 = vsel %vm286, %v2378, 0.0
    %2387 = vadd.xlane.f32.xlu0 %v2386
    %v2388 = vpop.xlane.xlu0 %2387
    %v2389 = vsel %vm286, %v2380, 0.0
    %2390 = vadd.xlane.f32.xlu0 %v2389
    %v2391 = vpop.xlane.xlu0 %2390
    %v2392 = vsel %vm286, %v2382, 0.0
    %2393 = vadd.xlane.f32.xlu0 %v2392
    %v2394 = vpop.xlane.xlu0 %2393
    %v2395 = vrcp.pop %v2385
    %v2396 = vmul.f32 %v2385, %v2395
    %v2397 = vsub.f32 1.0, %v2396
    %v2398 = vmul.f32 %v2395, %v2397
    %v2399 = vadd.f32 %v2395, %v2398
    %vm2400 = vweird.f32 %v2385
    %vm2401 = vweird.f32 %v2395
    %vm2402 = vmor %vm2400, %vm2401
    %v2403 = vsel %vm2402, %v2395, %v2399
    %v2404 = vand.u32 2147483647, %v2385
    %vm2405 = vcmp.eq.f32.partialorder %v2404, 8.507059e+37
    %v2406 = vand.u32 %v2385, 2147483648
    %v2407 = vor.u32 1.1754944e-38, %v2406
    %v2408 = vsel %vm2405, %v2407, %v2403
    %v2409 = vmul.f32 %v2376, %v2408
    %v2410 = vrcp.pop %v2388
    %v2411 = vmul.f32 %v2388, %v2410
    %v2412 = vsub.f32 1.0, %v2411
    %v2413 = vmul.f32 %v2410, %v2412
    %v2414 = vadd.f32 %v2410, %v2413
    %vm2415 = vweird.f32 %v2388
    %vm2416 = vweird.f32 %v2410
    %vm2417 = vmor %vm2415, %vm2416
    %v2418 = vsel %vm2417, %v2410, %v2414
    %v2419 = vand.u32 2147483647, %v2388
    %vm2420 = vcmp.eq.f32.partialorder %v2419, 8.507059e+37
    %v2421 = vand.u32 %v2388, 2147483648
    %v2422 = vor.u32 1.1754944e-38, %v2421
    %v2423 = vsel %vm2420, %v2422, %v2418
    %v2424 = vmul.f32 %v2378, %v2423
    %v2425 = vrcp.pop %v2391
    %v2426 = vmul.f32 %v2391, %v2425
    %v2427 = vsub.f32 1.0, %v2426
    %v2428 = vmul.f32 %v2425, %v2427
    %v2429 = vadd.f32 %v2425, %v2428
    %vm2430 = vweird.f32 %v2391
    %vm2431 = vweird.f32 %v2425
    %vm2432 = vmor %vm2430, %vm2431
    %v2433 = vsel %vm2432, %v2425, %v2429
    %v2434 = vand.u32 2147483647, %v2391
    %vm2435 = vcmp.eq.f32.partialorder %v2434, 8.507059e+37
    %v2436 = vand.u32 %v2391, 2147483648
    %v2437 = vor.u32 1.1754944e-38, %v2436
    %v2438 = vsel %vm2435, %v2437, %v2433
    %v2439 = vmul.f32 %v2380, %v2438
    %v2440 = vrcp.pop %v2394
    %v2441 = vmul.f32 %v2394, %v2440
    %v2442 = vsub.f32 1.0, %v2441
    %v2443 = vmul.f32 %v2440, %v2442
    %v2444 = vadd.f32 %v2440, %v2443
    %vm2445 = vweird.f32 %v2394
    %vm2446 = vweird.f32 %v2440
    %vm2447 = vmor %vm2445, %vm2446
    %v2448 = vsel %vm2447, %v2440, %v2444
    %v2449 = vand.u32 2147483647, %v2394
    %vm2450 = vcmp.eq.f32.partialorder %v2449, 8.507059e+37
    %v2451 = vand.u32 %v2394, 2147483648
    %v2452 = vor.u32 1.1754944e-38, %v2451
    %v2453 = vsel %vm2450, %v2452, %v2448
    %v2454 = vmul.f32 %v2382, %v2453
    %v2455 = vmul.f32 %v1594, %v899
    %v2456 = vmul.f32 %v1597, %v899
    %v2457 = vmul.f32 %v1600, %v899
    %v2458 = vmul.f32 %v1603, %v899
    %v2460 = vsel %vm286, %v2409, 0
    %v2463 = vsel %vm286, %v2424, 0
    %2465 = vmatpush.msra.mxu0 0.0
    %2466 = vmatpush.msra.mxu0 0.0
    %2467 = vmatpush.msra.mxu0 0.0
    %2468 = vmatpush.msra.mxu0 0.0
    %2469 = vmatpush.msra.mxu0 0.0
    %2470 = vmatpush.msra.mxu0 0.0
    %2471 = vmatpush.msra.mxu0 0.0
    %2472 = vmatpush.msra.mxu0 0.0
    %2473 = vmatpush.msra.mxu0 0.0
    %2474 = vmatpush.msra.mxu0 0.0
    %2475 = vmatpush.msra.mxu0 0.0
    %2476 = vmatpush.msra.mxu0 0.0
    %2477 = vmatpush.msra.mxu0 0.0
    %2478 = vmatpush.msra.mxu0 0.0
    %2479 = vmatpush.msra.mxu0 %v2456
    %2480 = vmatpush.msra.mxu0 %v2455
    %2481 = vmatmul.f32.gmra.mxu0 %v2460
    %v2482 = vpop.f32.mrf.mxu0
    %v2483 = vadd.f32 0.0, %v2482
    %2484 = vmatmul.f32.gmra.mxu0 %v2463
    %v2485 = vpop.f32.mrf.mxu0
    %v2486 = vadd.f32 0.0, %v2485
    %2487 = vdwg.mxu0
    %v2489 = vsel %vm286, %v2439, 0
    %v2492 = vsel %vm286, %v2454, 0
    %2494 = vmatpush.msra.mxu0 0.0
    %2495 = vmatpush.msra.mxu0 0.0
    %2496 = vmatpush.msra.mxu0 0.0
    %2497 = vmatpush.msra.mxu0 0.0
    %2498 = vmatpush.msra.mxu0 0.0
    %2499 = vmatpush.msra.mxu0 0.0
    %2500 = vmatpush.msra.mxu0 0.0
    %2501 = vmatpush.msra.mxu0 0.0
    %2502 = vmatpush.msra.mxu0 0.0
    %2503 = vmatpush.msra.mxu0 0.0
    %2504 = vmatpush.msra.mxu0 0.0
    %2505 = vmatpush.msra.mxu0 0.0
    %2506 = vmatpush.msra.mxu0 0.0
    %2507 = vmatpush.msra.mxu0 0.0
    %2508 = vmatpush.msra.mxu0 %v2458
    %2509 = vmatpush.msra.mxu0 %v2457
    %2510 = vmatmul.f32.gmra.mxu0 %v2489
    %v2511 = vpop.f32.mrf.mxu0
    %v2512 = vadd.f32 0.0, %v2511
    %2513 = vmatmul.f32.gmra.mxu0 %v2492
    %v2514 = vpop.f32.mrf.mxu0
    %v2515 = vadd.f32 0.0, %v2514
    %2516 = vdwg.mxu0
    %v2517 = vadd.f32 %v2289, %v2483
    %v2518 = vadd.f32 %v2290, %v2486
    %v2519 = vadd.f32 %v2291, %v2512
    %v2520 = vadd.f32 %v2292, %v2515
    %v2521 = vld [vmem:[#allocation2 + $0x1e0] sm:$0xff]
    %v2522 = vld [vmem:[#allocation2 + $0x1e8] sm:$0xff]
    %v2523 = vld [vmem:[#allocation2 + $0x1f0] sm:$0xff]
    %v2524 = vld [vmem:[#allocation2 + $0x1f8] sm:$0xff]
    %v2525 = vld [vmem:[#allocation2 + $0x218] sm:$0x1]
    %v2526 = vperm.slane %v2525, 0
    %v2528 = vsel %vm95, %v2517, 0
    %v2531 = vsel %vm95, %v2518, 0
    %v2534 = vsel %vm95, %v2519, 0
    %v2537 = vsel %vm95, %v2520, 0
    %2539 = vmatpush.msra.mxu0 0.0
    %2540 = vmatpush.msra.mxu0 0.0
    %2541 = vmatpush.msra.mxu0 0.0
    %2542 = vmatpush.msra.mxu0 0.0
    %2543 = vmatpush.msra.mxu0 0.0
    %2544 = vmatpush.msra.mxu0 0.0
    %2545 = vmatpush.msra.mxu0 0.0
    %2546 = vmatpush.msra.mxu0 0.0
    %2547 = vmatpush.msra.mxu0 0.0
    %2548 = vmatpush.msra.mxu0 0.0
    %2549 = vmatpush.msra.mxu0 0.0
    %2550 = vmatpush.msra.mxu0 0.0
    %2551 = vmatpush.msra.mxu0 %v2524
    %2552 = vmatpush.msra.mxu0 %v2523
    %2553 = vmatpush.msra.mxu0 %v2522
    %2554 = vmatpush.msra.mxu0 %v2521
    %2555 = vmatmul.f32.gmra.mxu0 %v2528
    %v2556 = vpop.f32.mrf.mxu0
    %v2557 = vadd.f32 %v2526, %v2556
    %2558 = vmatmul.f32.gmra.mxu0 %v2531
    %v2559 = vpop.f32.mrf.mxu0
    %v2560 = vadd.f32 %v2526, %v2559
    %2561 = vmatmul.f32.gmra.mxu0 %v2534
    %v2562 = vpop.f32.mrf.mxu0
    %v2563 = vadd.f32 %v2526, %v2562
    %2564 = vmatmul.f32.gmra.mxu0 %v2537
    %v2565 = vpop.f32.mrf.mxu0
    %v2566 = vadd.f32 %v2526, %v2565
    %2567 = vdwg.mxu0
    %v2568 = vadd.f32 %v1484, %v2557
    %v2569 = vadd.f32 %v1485, %v2560
    %v2570 = vadd.f32 %v1486, %v2563
    %v2571 = vadd.f32 %v1487, %v2566
    %v2572 = vld [vmem:[#allocation2 + $0x2d0] sm:$0x1]
    %v2573 = vld [vmem:[#allocation2 + $0x2d8] sm:$0x1]
    %v2574 = vsel %vm95, %v2568, 0.0
    %2575 = vadd.xlane.f32.xlu0 %v2574
    %v2576 = vpop.xlane.xlu0 %2575
    %v2577 = vsel %vm95, %v2569, 0.0
    %2578 = vadd.xlane.f32.xlu0 %v2577
    %v2579 = vpop.xlane.xlu0 %2578
    %v2580 = vsel %vm95, %v2570, 0.0
    %2581 = vadd.xlane.f32.xlu0 %v2580
    %v2582 = vpop.xlane.xlu0 %2581
    %v2583 = vsel %vm95, %v2571, 0.0
    %2584 = vadd.xlane.f32.xlu0 %v2583
    %v2585 = vpop.xlane.xlu0 %2584
    %v2586 = vmul.f32 %v2576, %v1199
    %v2587 = vmul.f32 %v2579, %v1199
    %v2588 = vmul.f32 %v2582, %v1199
    %v2589 = vmul.f32 %v2585, %v1199
    %v2590 = vsub.f32 %v2568, %v2586
    %v2591 = vsub.f32 %v2569, %v2587
    %v2592 = vsub.f32 %v2570, %v2588
    %v2593 = vsub.f32 %v2571, %v2589
    %v2594 = vmul.f32 %v2590, %v2590
    %v2595 = vmul.f32 %v2591, %v2591
    %v2596 = vmul.f32 %v2592, %v2592
    %v2597 = vmul.f32 %v2593, %v2593
    %v2598 = vsel %vm95, %v2594, 0.0
    %2599 = vadd.xlane.f32.xlu0 %v2598
    %v2600 = vpop.xlane.xlu0 %2599
    %v2601 = vsel %vm95, %v2595, 0.0
    %2602 = vadd.xlane.f32.xlu0 %v2601
    %v2603 = vpop.xlane.xlu0 %2602
    %v2604 = vsel %vm95, %v2596, 0.0
    %2605 = vadd.xlane.f32.xlu0 %v2604
    %v2606 = vpop.xlane.xlu0 %2605
    %v2607 = vsel %vm95, %v2597, 0.0
    %2608 = vadd.xlane.f32.xlu0 %v2607
    %v2609 = vpop.xlane.xlu0 %2608
    %v2610 = vmul.f32 %v2600, %v1199
    %v2611 = vmul.f32 %v2603, %v1199
    %v2612 = vmul.f32 %v2606, %v1199
    %v2613 = vmul.f32 %v2609, %v1199
    %v2614 = vadd.f32 %v2610, 1e-05
    %v2615 = vadd.f32 %v2611, 1e-05
    %v2616 = vadd.f32 %v2612, 1e-05
    %v2617 = vadd.f32 %v2613, 1e-05
    %v2618 = vrsqrt.pop %v2614
    %v2619 = vmul.f32 %v2618, %v2614
    %v2620 = vmul.f32 %v2619, %v2618
    %v2621 = vmul.f32 0.5, %v2620
    %v2622 = vsub.f32 1.5, %v2621
    %v2623 = vmul.f32 %v2618, %v2622
    %vm2624 = vweird.f32 %v2614
    %vm2625 = vweird.f32 %v2618
    %vm2626 = vmor %vm2624, %vm2625
    %v2627 = vsel %vm2626, %v2618, %v2623
    %v2628 = vrsqrt.pop %v2615
    %v2629 = vmul.f32 %v2628, %v2615
    %v2630 = vmul.f32 %v2629, %v2628
    %v2631 = vmul.f32 0.5, %v2630
    %v2632 = vsub.f32 1.5, %v2631
    %v2633 = vmul.f32 %v2628, %v2632
    %vm2634 = vweird.f32 %v2615
    %vm2635 = vweird.f32 %v2628
    %vm2636 = vmor %vm2634, %vm2635
    %v2637 = vsel %vm2636, %v2628, %v2633
    %v2638 = vrsqrt.pop %v2616
    %v2639 = vmul.f32 %v2638, %v2616
    %v2640 = vmul.f32 %v2639, %v2638
    %v2641 = vmul.f32 0.5, %v2640
    %v2642 = vsub.f32 1.5, %v2641
    %v2643 = vmul.f32 %v2638, %v2642
    %vm2644 = vweird.f32 %v2616
    %vm2645 = vweird.f32 %v2638
    %vm2646 = vmor %vm2644, %vm2645
    %v2647 = vsel %vm2646, %v2638, %v2643
    %v2648 = vrsqrt.pop %v2617
    %v2649 = vmul.f32 %v2648, %v2617
    %v2650 = vmul.f32 %v2649, %v2648
    %v2651 = vmul.f32 0.5, %v2650
    %v2652 = vsub.f32 1.5, %v2651
    %v2653 = vmul.f32 %v2648, %v2652
    %vm2654 = vweird.f32 %v2617
    %vm2655 = vweird.f32 %v2648
    %vm2656 = vmor %vm2654, %vm2655
    %v2657 = vsel %vm2656, %v2648, %v2653
    %v2658 = vmul.f32 %v2590, %v2627
    %v2659 = vmul.f32 %v2591, %v2637
    %v2660 = vmul.f32 %v2592, %v2647
    %v2661 = vmul.f32 %v2593, %v2657
    %v2662 = vperm.slane %v2572, 0
    %v2663 = vmul.f32 %v2658, %v2662
    %v2664 = vmul.f32 %v2659, %v2662
    %v2665 = vmul.f32 %v2660, %v2662
    %v2666 = vmul.f32 %v2661, %v2662
    %v2667 = vperm.slane %v2573, 0
    %v2668 = vadd.f32 %v2663, %v2667
    %v2669 = vadd.f32 %v2664, %v2667
    %v2670 = vadd.f32 %v2665, %v2667
    %v2671 = vadd.f32 %v2666, %v2667
    %v2672 = vld [vmem:[#allocation2 + $0x220] sm:$0xff]
    %v2673 = vld [vmem:[#allocation2 + $0x228] sm:$0xff]
    %v2674 = vld [vmem:[#allocation2 + $0x230] sm:$0xff]
    %v2675 = vld [vmem:[#allocation2 + $0x238] sm:$0xff]
    %v2676 = vld [vmem:[#allocation2 + $0x240] sm:$0x1]
    %v2677 = vperm.slane %v2676, 0
    %v2679 = vsel %vm95, %v2668, 0
    %v2682 = vsel %vm95, %v2669, 0
    %v2685 = vsel %vm95, %v2670, 0
    %v2688 = vsel %vm95, %v2671, 0
    %2690 = vmatpush.msra.mxu0 0.0
    %2691 = vmatpush.msra.mxu0 0.0
    %2692 = vmatpush.msra.mxu0 0.0
    %2693 = vmatpush.msra.mxu0 0.0
    %2694 = vmatpush.msra.mxu0 0.0
    %2695 = vmatpush.msra.mxu0 0.0
    %2696 = vmatpush.msra.mxu0 0.0
    %2697 = vmatpush.msra.mxu0 0.0
    %2698 = vmatpush.msra.mxu0 0.0
    %2699 = vmatpush.msra.mxu0 0.0
    %2700 = vmatpush.msra.mxu0 0.0
    %2701 = vmatpush.msra.mxu0 0.0
    %2702 = vmatpush.msra.mxu0 %v2675
    %2703 = vmatpush.msra.mxu0 %v2674
    %2704 = vmatpush.msra.mxu0 %v2673
    %2705 = vmatpush.msra.mxu0 %v2672
    %2706 = vmatmul.f32.gmra.mxu0 %v2679
    %v2707 = vpop.f32.mrf.mxu0
    %v2708 = vadd.f32 %v2677, %v2707
    %2709 = vmatmul.f32.gmra.mxu0 %v2682
    %v2710 = vpop.f32.mrf.mxu0
    %v2711 = vadd.f32 %v2677, %v2710
    %2712 = vmatmul.f32.gmra.mxu0 %v2685
    %v2713 = vpop.f32.mrf.mxu0
    %v2714 = vadd.f32 %v2677, %v2713
    %2715 = vmatmul.f32.gmra.mxu0 %v2688
    %v2716 = vpop.f32.mrf.mxu0
    %v2717 = vadd.f32 %v2677, %v2716
    %2718 = vdwg.mxu0
    %v2719 = vmax.f32 %v2708, 0.0
    %v2720 = vmax.f32 %v2711, 0.0
    %v2721 = vmax.f32 %v2714, 0.0
    %v2722 = vmax.f32 %v2717, 0.0
    %v2723 = vld [vmem:[#allocation2 + $0x248] sm:$0xff]
    %v2724 = vld [vmem:[#allocation2 + $0x250] sm:$0xff]
    %v2725 = vld [vmem:[#allocation2 + $0x258] sm:$0xff]
    %v2726 = vld [vmem:[#allocation2 + $0x260] sm:$0xff]
    %v2727 = vld [vmem:[#allocation2 + $0x268] sm:$0xff]
    %v2728 = vld [vmem:[#allocation2 + $0x270] sm:$0xff]
    %v2729 = vld [vmem:[#allocation2 + $0x278] sm:$0xff]
    %v2730 = vld [vmem:[#allocation2 + $0x280] sm:$0xff]
    %v2731 = vld [vmem:[#allocation2 + $0x288] sm:$0xff]
    %v2732 = vld [vmem:[#allocation2 + $0x290] sm:$0xff]
    %v2733 = vld [vmem:[#allocation2 + $0x298] sm:$0xff]
    %v2734 = vld [vmem:[#allocation2 + $0x2a0] sm:$0xff]
    %v2735 = vld [vmem:[#allocation2 + $0x2a8] sm:$0xff]
    %v2736 = vld [vmem:[#allocation2 + $0x2b0] sm:$0xff]
    %v2737 = vld [vmem:[#allocation2 + $0x2b8] sm:$0xff]
    %v2738 = vld [vmem:[#allocation2 + $0x2c0] sm:$0xff]
    %v2739 = vld [vmem:[#allocation2 + $0x2c8] sm:$0x1]
    %v2740 = vperm.slane %v2739, 0
    %2741 = vmatpush.msra.mxu0 %v2738
    %2742 = vmatpush.msra.mxu0 %v2737
    %2743 = vmatpush.msra.mxu0 %v2736
    %2744 = vmatpush.msra.mxu0 %v2735
    %2745 = vmatpush.msra.mxu0 %v2734
    %2746 = vmatpush.msra.mxu0 %v2733
    %2747 = vmatpush.msra.mxu0 %v2732
    %2748 = vmatpush.msra.mxu0 %v2731
    %2749 = vmatpush.msra.mxu0 %v2730
    %2750 = vmatpush.msra.mxu0 %v2729
    %2751 = vmatpush.msra.mxu0 %v2728
    %2752 = vmatpush.msra.mxu0 %v2727
    %2753 = vmatpush.msra.mxu0 %v2726
    %2754 = vmatpush.msra.mxu0 %v2725
    %2755 = vmatpush.msra.mxu0 %v2724
    %2756 = vmatpush.msra.mxu0 %v2723
    %2757 = vmatmul.f32.gmra.mxu0 %v2719
    %v2758 = vpop.f32.mrf.mxu0
    %v2759 = vadd.f32 %v2740, %v2758
    %2760 = vmatmul.f32.gmra.mxu0 %v2720
    %v2761 = vpop.f32.mrf.mxu0
    %v2762 = vadd.f32 %v2740, %v2761
    %2763 = vmatmul.f32.gmra.mxu0 %v2721
    %v2764 = vpop.f32.mrf.mxu0
    %v2765 = vadd.f32 %v2740, %v2764
    %2766 = vmatmul.f32.gmra.mxu0 %v2722
    %v2767 = vpop.f32.mrf.mxu0
    %v2768 = vadd.f32 %v2740, %v2767
    %2769 = vdwg.mxu0
    %v2770 = vadd.f32 %v2668, %v2759
    %v2771 = vadd.f32 %v2669, %v2762
    %v2772 = vadd.f32 %v2670, %v2765
    %v2773 = vadd.f32 %v2671, %v2768
    %v2774 = vld [vmem:[#allocation2 + $0x2e0] sm:$0x1]
    %v2775 = vld [vmem:[#allocation2 + $0x2e8] sm:$0x1]
    %v2776 = vsel %vm95, %v2770, 0.0
    %2777 = vadd.xlane.f32.xlu0 %v2776
    %v2778 = vpop.xlane.xlu0 %2777
    %v2779 = vsel %vm95, %v2771, 0.0
    %2780 = vadd.xlane.f32.xlu0 %v2779
    %v2781 = vpop.xlane.xlu0 %2780
    %v2782 = vsel %vm95, %v2772, 0.0
    %2783 = vadd.xlane.f32.xlu0 %v2782
    %v2784 = vpop.xlane.xlu0 %2783
    %v2785 = vsel %vm95, %v2773, 0.0
    %2786 = vadd.xlane.f32.xlu0 %v2785
    %v2787 = vpop.xlane.xlu0 %2786
    %v2788 = vmul.f32 %v2778, %v1199
    %v2789 = vmul.f32 %v2781, %v1199
    %v2790 = vmul.f32 %v2784, %v1199
    %v2791 = vmul.f32 %v2787, %v1199
    %v2792 = vsub.f32 %v2770, %v2788
    %v2793 = vsub.f32 %v2771, %v2789
    %v2794 = vsub.f32 %v2772, %v2790
    %v2795 = vsub.f32 %v2773, %v2791
    %v2796 = vmul.f32 %v2792, %v2792
    %v2797 = vmul.f32 %v2793, %v2793
    %v2798 = vmul.f32 %v2794, %v2794
    %v2799 = vmul.f32 %v2795, %v2795
    %v2800 = vsel %vm95, %v2796, 0.0
    %2801 = vadd.xlane.f32.xlu0 %v2800
    %v2802 = vpop.xlane.xlu0 %2801
    %v2803 = vsel %vm95, %v2797, 0.0
    %2804 = vadd.xlane.f32.xlu0 %v2803
    %v2805 = vpop.xlane.xlu0 %2804
    %v2806 = vsel %vm95, %v2798, 0.0
    %2807 = vadd.xlane.f32.xlu0 %v2806
    %v2808 = vpop.xlane.xlu0 %2807
    %v2809 = vsel %vm95, %v2799, 0.0
    %2810 = vadd.xlane.f32.xlu0 %v2809
    %v2811 = vpop.xlane.xlu0 %2810
    %v2812 = vmul.f32 %v2802, %v1199
    %v2813 = vmul.f32 %v2805, %v1199
    %v2814 = vmul.f32 %v2808, %v1199
    %v2815 = vmul.f32 %v2811, %v1199
    %v2816 = vadd.f32 %v2812, 1e-05
    %v2817 = vadd.f32 %v2813, 1e-05
    %v2818 = vadd.f32 %v2814, 1e-05
    %v2819 = vadd.f32 %v2815, 1e-05
    %v2820 = vrsqrt.pop %v2816
    %v2821 = vmul.f32 %v2820, %v2816
    %v2822 = vmul.f32 %v2821, %v2820
    %v2823 = vmul.f32 0.5, %v2822
    %v2824 = vsub.f32 1.5, %v2823
    %v2825 = vmul.f32 %v2820, %v2824
    %vm2826 = vweird.f32 %v2816
    %vm2827 = vweird.f32 %v2820
    %vm2828 = vmor %vm2826, %vm2827
    %v2829 = vsel %vm2828, %v2820, %v2825
    %v2830 = vrsqrt.pop %v2817
    %v2831 = vmul.f32 %v2830, %v2817
    %v2832 = vmul.f32 %v2831, %v2830
    %v2833 = vmul.f32 0.5, %v2832
    %v2834 = vsub.f32 1.5, %v2833
    %v2835 = vmul.f32 %v2830, %v2834
    %vm2836 = vweird.f32 %v2817
    %vm2837 = vweird.f32 %v2830
    %vm2838 = vmor %vm2836, %vm2837
    %v2839 = vsel %vm2838, %v2830, %v2835
    %v2840 = vrsqrt.pop %v2818
    %v2841 = vmul.f32 %v2840, %v2818
    %v2842 = vmul.f32 %v2841, %v2840
    %v2843 = vmul.f32 0.5, %v2842
    %v2844 = vsub.f32 1.5, %v2843
    %v2845 = vmul.f32 %v2840, %v2844
    %vm2846 = vweird.f32 %v2818
    %vm2847 = vweird.f32 %v2840
    %vm2848 = vmor %vm2846, %vm2847
    %v2849 = vsel %vm2848, %v2840, %v2845
    %v2850 = vrsqrt.pop %v2819
    %v2851 = vmul.f32 %v2850, %v2819
    %v2852 = vmul.f32 %v2851, %v2850
    %v2853 = vmul.f32 0.5, %v2852
    %v2854 = vsub.f32 1.5, %v2853
    %v2855 = vmul.f32 %v2850, %v2854
    %vm2856 = vweird.f32 %v2819
    %vm2857 = vweird.f32 %v2850
    %vm2858 = vmor %vm2856, %vm2857
    %v2859 = vsel %vm2858, %v2850, %v2855
    %v2860 = vmul.f32 %v2792, %v2829
    %v2861 = vmul.f32 %v2793, %v2839
    %v2862 = vmul.f32 %v2794, %v2849
    %v2863 = vmul.f32 %v2795, %v2859
    %v2864 = vperm.slane %v2774, 0
    %v2865 = vmul.f32 %v2860, %v2864
    %v2866 = vmul.f32 %v2861, %v2864
    %v2867 = vmul.f32 %v2862, %v2864
    %v2868 = vmul.f32 %v2863, %v2864
    %v2869 = vperm.slane %v2775, 0
    %v2870 = vadd.f32 %v2865, %v2869
    %v2871 = vadd.f32 %v2866, %v2869
    %v2872 = vadd.f32 %v2867, %v2869
    %v2873 = vadd.f32 %v2868, %v2869
    %v2874 = vld [vmem:[#allocation2 + $0x2f0] sm:$0xff]
    %v2875 = vld [vmem:[#allocation2 + $0x2f8] sm:$0xff]
    %v2876 = vld [vmem:[#allocation2 + $0x300] sm:$0xff]
    %v2877 = vld [vmem:[#allocation2 + $0x308] sm:$0xff]
    %v2878 = vld [vmem:[#allocation2 + $0x310] sm:$0x1]
    %v2879 = vperm.slane %v2878, 0
    %v2881 = vsel %vm95, %v2870, 0
    %v2884 = vsel %vm95, %v2871, 0
    %v2887 = vsel %vm95, %v2872, 0
    %v2890 = vsel %vm95, %v2873, 0
    %2892 = vmatpush.msra.mxu0 0.0
    %2893 = vmatpush.msra.mxu0 0.0
    %2894 = vmatpush.msra.mxu0 0.0
    %2895 = vmatpush.msra.mxu0 0.0
    %2896 = vmatpush.msra.mxu0 0.0
    %2897 = vmatpush.msra.mxu0 0.0
    %2898 = vmatpush.msra.mxu0 0.0
    %2899 = vmatpush.msra.mxu0 0.0
    %2900 = vmatpush.msra.mxu0 0.0
    %2901 = vmatpush.msra.mxu0 0.0
    %2902 = vmatpush.msra.mxu0 0.0
    %2903 = vmatpush.msra.mxu0 0.0
    %2904 = vmatpush.msra.mxu0 %v2877
    %2905 = vmatpush.msra.mxu0 %v2876
    %2906 = vmatpush.msra.mxu0 %v2875
    %2907 = vmatpush.msra.mxu0 %v2874
    %2908 = vmatmul.f32.gmra.mxu0 %v2881
    %v2909 = vpop.f32.mrf.mxu0
    %v2910 = vadd.f32 %v2879, %v2909
    %2911 = vmatmul.f32.gmra.mxu0 %v2884
    %v2912 = vpop.f32.mrf.mxu0
    %v2913 = vadd.f32 %v2879, %v2912
    %2914 = vmatmul.f32.gmra.mxu0 %v2887
    %v2915 = vpop.f32.mrf.mxu0
    %v2916 = vadd.f32 %v2879, %v2915
    %2917 = vmatmul.f32.gmra.mxu0 %v2890
    %v2918 = vpop.f32.mrf.mxu0
    %v2919 = vadd.f32 %v2879, %v2918
    %2920 = vdwg.mxu0
    %v2921 = vtanh.pop %v2910
    %v2922 = vtanh.pop %v2913
    %v2923 = vtanh.pop %v2916
    %v2924 = vtanh.pop %v2919
    %v2925 = vld [vmem:[#allocation2 + $0x318] sm:$0x1]
    %v2926 = vperm.slane %v2925, 0
    %v2927 = vmul.f32 %v2921, %v2926
    %v2928 = vmul.f32 %v2922, %v2926
    %v2929 = vmul.f32 %v2923, %v2926
    %v2930 = vmul.f32 %v2924, %v2926
    %v2931 = vsel %vm95, %v2927, 0.0
    %2932 = vadd.xlane.f32.xlu0 %v2931
    %v2933 = vpop.xlane.xlu0 %2932
    %v2934 = vsel %vm95, %v2928, 0.0
    %2935 = vadd.xlane.f32.xlu0 %v2934
    %v2936 = vpop.xlane.xlu0 %2935
    %v2937 = vsel %vm95, %v2929, 0.0
    %2938 = vadd.xlane.f32.xlu0 %v2937
    %v2939 = vpop.xlane.xlu0 %2938
    %v2940 = vsel %vm95, %v2930, 0.0
    %2941 = vadd.xlane.f32.xlu0 %v2940
    %v2942 = vpop.xlane.xlu0 %2941
    %v2943 = vmax.f32 %v2933, %v2936
    %v2944 = vrot.slane %v2943, 4
    %v2945 = vmax.f32 %v2943, %v2944
    %v2946 = vrot.slane %v2945, 2
    %v2947 = vmax.f32 %v2945, %v2946
    %v2948 = vrot.slane %v2947, 1
    %v2949 = vmax.f32 %v2947, %v2948
    %v2950 = vmax.f32 %v2939, %v2942
    %v2951 = vrot.slane %v2950, 4
    %v2952 = vmax.f32 %v2950, %v2951
    %v2953 = vrot.slane %v2952, 2
    %v2954 = vmax.f32 %v2952, %v2953
    %v2955 = vrot.slane %v2954, 1
    %v2956 = vmax.f32 %v2954, %v2955
    %v2957 = vsub.f32 %v2933, %v2949
    %v2958 = vsub.f32 %v2936, %v2949
    %v2959 = vsub.f32 %v2939, %v2956
    %v2960 = vsub.f32 %v2942, %v2956
    %v2961 = vmul.f32 %v2957, 1.442695
    %v2962 = vpow.pop %v2961
    %v2963 = vmul.f32 %v2958, 1.442695
    %v2964 = vpow.pop %v2963
    %v2965 = vmul.f32 %v2959, 1.442695
    %v2966 = vpow.pop %v2965
    %v2967 = vmul.f32 %v2960, 1.442695
    %v2968 = vpow.pop %v2967
    %v2969 = vadd.f32 %v2962, %v2964
    %v2970 = vrot.slane %v2969, 4
    %v2971 = vadd.f32 %v2969, %v2970
    %v2972 = vrot.slane %v2971, 2
    %v2973 = vadd.f32 %v2971, %v2972
    %v2974 = vrot.slane %v2973, 1
    %v2975 = vadd.f32 %v2973, %v2974
    %v2976 = vadd.f32 %v2966, %v2968
    %v2977 = vrot.slane %v2976, 4
    %v2978 = vadd.f32 %v2976, %v2977
    %v2979 = vrot.slane %v2978, 2
    %v2980 = vadd.f32 %v2978, %v2979
    %v2981 = vrot.slane %v2980, 1
    %v2982 = vadd.f32 %v2980, %v2981
    %v2983 = vrcp.pop %v2975
    %v2984 = vmul.f32 %v2975, %v2983
    %v2985 = vsub.f32 1.0, %v2984
    %v2986 = vmul.f32 %v2983, %v2985
    %v2987 = vadd.f32 %v2983, %v2986
    %vm2988 = vweird.f32 %v2975
    %vm2989 = vweird.f32 %v2983
    %vm2990 = vmor %vm2988, %vm2989
    %v2991 = vsel %vm2990, %v2983, %v2987
    %v2992 = vand.u32 2147483647, %v2975
    %vm2993 = vcmp.eq.f32.partialorder %v2992, 8.507059e+37
    %v2994 = vand.u32 %v2975, 2147483648
    %v2995 = vor.u32 1.1754944e-38, %v2994
    %v2996 = vsel %vm2993, %v2995, %v2991
    %v2997 = vmul.f32 %v2962, %v2996
    %v2998 = vmul.f32 %v2964, %v2996
    %v2999 = vrcp.pop %v2982
    %v3000 = vmul.f32 %v2982, %v2999
    %v3001 = vsub.f32 1.0, %v3000
    %v3002 = vmul.f32 %v2999, %v3001
    %v3003 = vadd.f32 %v2999, %v3002
    %vm3004 = vweird.f32 %v2982
    %vm3005 = vweird.f32 %v2999
    %vm3006 = vmor %vm3004, %vm3005
    %v3007 = vsel %vm3006, %v2999, %v3003
    %v3008 = vand.u32 2147483647, %v2982
    %vm3009 = vcmp.eq.f32.partialorder %v3008, 8.507059e+37
    %v3010 = vand.u32 %v2982, 2147483648
    %v3011 = vor.u32 1.1754944e-38, %v3010
    %v3012 = vsel %vm3009, %v3011, %v3007
    %v3013 = vmul.f32 %v2966, %v3012
    %v3014 = vmul.f32 %v2968, %v3012
    %v3015 = vmul.f32 %v2870, %v2997
    %v3016 = vmul.f32 %v2871, %v2998
    %v3017 = vmul.f32 %v2872, %v3013
    %v3018 = vmul.f32 %v2873, %v3014
    %v3019 = vsel %vm95, %v3015, 0.0
    %v3020 = vsel %vm95, %v3016, 0.0
    %v3021 = vadd.f32 %v3019, %v3020
    %v3022 = vrot.slane %v3021, 4
    %v3023 = vadd.f32 %v3021, %v3022
    %v3024 = vrot.slane %v3023, 2
    %v3025 = vadd.f32 %v3023, %v3024
    %v3026 = vrot.slane %v3025, 1
    %v3027 = vadd.f32 %v3025, %v3026
    %v3028 = vsel %vm95, %v3017, 0.0
    %v3029 = vsel %vm95, %v3018, 0.0
    %v3030 = vadd.f32 %v3028, %v3029
    %v3031 = vrot.slane %v3030, 4
    %v3032 = vadd.f32 %v3030, %v3031
    %v3033 = vrot.slane %v3032, 2
    %v3034 = vadd.f32 %v3032, %v3033
    %v3035 = vrot.slane %v3034, 1
    %v3036 = vadd.f32 %v3034, %v3035
    %v3037 = vld [vmem:[#allocation2 + $0x320] sm:$0xff]
    %v3038 = vld [vmem:[#allocation2 + $0x328] sm:$0xff]
    %v3039 = vld [vmem:[#allocation2 + $0x330] sm:$0xff]
    %v3040 = vld [vmem:[#allocation2 + $0x338] sm:$0xff]
    %v3041 = vld [vmem:[#allocation2 + $0x340] sm:$0x1]
    %v3042 = vperm.slane %v3041, 0
    %vm3045 = vcmask 1041409
    %v3046 = vsel %vm3045, %v3036, %v3027
    %v3047 = vsel %vm95, %v3046, 0
    %3049 = vmatpush.msra.mxu0 0.0
    %3050 = vmatpush.msra.mxu0 0.0
    %3051 = vmatpush.msra.mxu0 0.0
    %3052 = vmatpush.msra.mxu0 0.0
    %3053 = vmatpush.msra.mxu0 0.0
    %3054 = vmatpush.msra.mxu0 0.0
    %3055 = vmatpush.msra.mxu0 0.0
    %3056 = vmatpush.msra.mxu0 0.0
    %3057 = vmatpush.msra.mxu0 0.0
    %3058 = vmatpush.msra.mxu0 0.0
    %3059 = vmatpush.msra.mxu0 0.0
    %3060 = vmatpush.msra.mxu0 0.0
    %3061 = vmatpush.msra.mxu0 %v3040
    %3062 = vmatpush.msra.mxu0 %v3039
    %3063 = vmatpush.msra.mxu0 %v3038
    %3064 = vmatpush.msra.mxu0 %v3037
    %3065 = vmatmul.f32.gmra.mxu0 %v3047
    %v3066 = vpop.f32.mrf.mxu0
    %v3067 = vadd.f32 %v3042, %v3066
    %3068 = vdwg.mxu0
    %v3069 = vmax.f32 %v3067, 0.0
    %v3070 = vld [vmem:[#allocation2 + $0x348] sm:$0xff]
    %v3071 = vld [vmem:[#allocation2 + $0x350] sm:$0xff]
    %v3072 = vld [vmem:[#allocation2 + $0x358] sm:$0xff]
    %v3073 = vld [vmem:[#allocation2 + $0x360] sm:$0x1]
    %v3074 = vperm.slane %v3073, 0
    %vm3075 = vcmask 195584
    %v3077 = vsel %vm3075, %v3069, 0
    %3079 = vmatpush.msra.mxu0 0.0
    %3080 = vmatpush.msra.mxu0 0.0
    %3081 = vmatpush.msra.mxu0 0.0
    %3082 = vmatpush.msra.mxu0 0.0
    %3083 = vmatpush.msra.mxu0 0.0
    %3084 = vmatpush.msra.mxu0 0.0
    %3085 = vmatpush.msra.mxu0 0.0
    %3086 = vmatpush.msra.mxu0 0.0
    %3087 = vmatpush.msra.mxu0 0.0
    %3088 = vmatpush.msra.mxu0 0.0
    %3089 = vmatpush.msra.mxu0 0.0
    %3090 = vmatpush.msra.mxu0 0.0
    %3091 = vmatpush.msra.mxu0 0.0
    %3092 = vmatpush.msra.mxu0 %v3072
    %3093 = vmatpush.msra.mxu0 %v3071
    %3094 = vmatpush.msra.mxu0 %v3070
    %3095 = vmatmul.f32.gmra.mxu0 %v3077
    %v3096 = vpop.f32.mrf.mxu0
    %v3097 = vadd.f32 %v3074, %v3096
    %3098 = vdwg.mxu0
    %3099 = vst [vmem:[#allocation5] sm:$0x3] %v3097
    // Predicated region
    $region14: #{tpu_custom_call.1} parent=1 // pred_check
      _
    $region15: #{tpu_custom_call.1} parent=1 // pred_check_branch
      %3101 = sbr.rel (0) target = $region17
    $region16: #{tpu_custom_call.1} parent=1 // pred_region
      %3103 = vsyncadd [#allocation4], 0
      %s3105 = sshll.u32 [#allocation5], 4
      %s3106 = int_to_ptr.vmem [resolvable:$true] %s3105
      %s3107 = sshll.u32 %s2, 4
      %s3108 = int_to_ptr.hbm [resolvable:$true] %s3107
      %3110 = dma.vmem_to_hbm [thread:$0]  %s3106, 32, %s3108, [#allocation4]
    $region17: #{tpu_custom_call.1} parent=1 // pred_fallthru
      _
    // Predicated region
    $region18: #{tpu_custom_call.1} parent=1 // pred_check
      _
    $region19: #{tpu_custom_call.1} parent=1 // pred_check_branch
      %3112 = sbr.rel (0) target = $region21
    $region20: #{tpu_custom_call.1} parent=1 // pred_region
      %3114 = dma.done [#allocation4], 32
    $region21: #{tpu_custom_call.1} parent=1 // pred_fallthru
      _
    %3115 = vsyncpa [#allocation3], 1
    %3116 = vsyncpa [#allocation4], 1

</llo_original>
